<compile_context>
chip_gen: v7x
topology: tpu7x:2x2x1
jax: 0.10.0
libtpu: 0.0.40
codegen_flags: <defaults>
</compile_context>

<pallas_src>
from functools import partial
import math

import jax
import jax.numpy as jnp
from jax.experimental import pallas as pl
from jax.experimental.pallas import tpu as pltpu


# --------------------------- static tiling helpers ---------------------------

def _largest_divisor_leq(n, cap):
    cap = max(1, min(n, cap))
    for d in range(cap, 0, -1):
        if n % d == 0:
            return d
    return 1


def _pick_block(dim, candidates):
    """Largest candidate that divides `dim`; otherwise no tiling (full dim)."""
    for c in candidates:
        if c <= dim and dim % c == 0:
            return c
    return dim


def _pick_conv_row_tile(ho, wo):
    # Aim for ~256 MXU rows per tile; tile height must divide Ho (no padding).
    th = _largest_divisor_leq(ho, max(1, 256 // max(wo, 1)))
    if (th * wo) % 8 != 0:
        th = ho          # full-height tile: output block equals full array dim
    return th


def _pick_pool_row_tile(ho, wo, c, itemsize, budget=8 << 20):
    best = 1
    for th in range(1, ho + 1):
        if ho % th:
            continue
        if 4 * th * wo * c * itemsize > budget:   # input block bytes
            break
        best = th
    return best


# ------------------------- conv 3x3 / stride 2 kernel ------------------------

def _conv3x3_s2_kernel(x_ref, halo_ref, w_ref, bias_ref, o_ref, acc_ref, *,
                       th, wo):
    """One (batch, row-tile, Cout-tile, Cin-tile) grid step.

    x_ref:    (1, 4, th, wo+1, bk)  stride-2 phase planes of the padded input
    halo_ref: (1, 4, 1,  wo+1, bk)  the one extra phase row below the tile
    w_ref:    (3, 3, bk, bn)        bias_ref: (1, bn)
    o_ref:    (1, th*wo, bn)        acc_ref: (th*wo, bn) f32 scratch
    """
    k = pl.program_id(3)

    @pl.when(k == 0)
    def _init():
        acc_ref[...] = jnp.zeros_like(acc_ref)

    part = jnp.zeros(acc_ref.shape, jnp.float32)
    for pi in range(2):                  # phase row parity
        for pj in range(2):              # phase col parity
            ph = 2 * pi + pj
            base = x_ref[0, ph]                          # (th, wo+1, bk)
            if pi == 0:                                  # dh=1 taps need halo
                win = jnp.concatenate([base, halo_ref[0, ph]], axis=0)
            else:
                win = base
            for dh in range(2 - pi):
                for dw in range(2 - pj):
                    i, j = 2 * dh + pi, 2 * dw + pj      # 3x3 tap position
                    tap = win[dh:dh + th, dw:dw + wo, :]
                    tap = tap.reshape(th * wo, tap.shape[-1])
                    part = part + jnp.dot(tap, w_ref[i, j],
                                          preferred_element_type=jnp.float32)
    acc_ref[...] += part

    @pl.when(k == pl.num_programs(3) - 1)
    def _finalize():
        o_ref[0] = (acc_ref[...] + bias_ref[...]).astype(o_ref.dtype)


def conv3x3_stride2(xph, w, bias, *, batch, ho, wo, cin, cout, out_dtype,
                    single_buffer_consts):
    """xph: (B, 4, Ho+1, Wo+1, Cin) phase planes; w: (3,3,Cin,Cout);
    bias: (Cout,) f32.  Returns (B, Ho*Wo, Cout)."""
    th = _pick_conv_row_tile(ho, wo)
    bk = _pick_block(cin, (512, 256, 128))       # K (Cin) tile
    bn = _pick_block(cout, (256, 128))           # N (Cout) tile
    gh, gn, gk = ho // th, cout // bn, cin // bk
    grid = (batch, gh, gn, gk)

    const_kwargs = {}
    if single_buffer_consts and gn == 1 and gk == 1:
        # weight/bias are grid-invariant: one pipeline buffer is enough.
        const_kwargs = dict(pipeline_mode=pl.Buffered(1))

    in_specs = [
        pl.BlockSpec((1, 4, th, wo + 1, bk),
                     lambda b, h, n, k: (b, 0, h, 0, k)),
        pl.BlockSpec((1, 4, 1, wo + 1, bk),              # +1-row halo view
                     lambda b, h, n, k: (b, 0, h * th + th, 0, k)),
        pl.BlockSpec((3, 3, bk, bn),
                     lambda b, h, n, k: (0, 0, k, n), **const_kwargs),
        pl.BlockSpec((1, bn),
                     lambda b, h, n, k: (0, n), **const_kwargs),
    ]
    out_spec = pl.BlockSpec((1, th * wo, bn), lambda b, h, n, k: (b, h, n))

    itm = jnp.dtype(xph.dtype).itemsize
    w_buf = 1 if (single_buffer_consts and gn == 1 and gk == 1) else 2
    est = (2 * 4 * (th + 1) * (wo + 1) * bk * itm          # x + halo, double buffered
           + w_buf * 9 * bk * bn * itm + 2 * bn * 4
           + 2 * th * wo * bn * jnp.dtype(out_dtype).itemsize
           + th * wo * bn * 4)                             # f32 accumulator
    vmem_limit = int(min(128 << 20, max(32 << 20, est + (8 << 20))))

    return pl.pallas_call(
        partial(_conv3x3_s2_kernel, th=th, wo=wo),
        out_shape=jax.ShapeDtypeStruct((batch, ho * wo, cout), out_dtype),
        grid=grid,
        in_specs=in_specs,
        out_specs=out_spec,
        scratch_shapes=[pltpu.VMEM((th * wo, bn), jnp.float32)],
        compiler_params=pltpu.CompilerParams(
            dimension_semantics=("parallel", "parallel", "parallel", "arbitrary"),
            vmem_limit_bytes=vmem_limit),
    )(xph, xph, w, bias.reshape(1, cout))


# --------------------------- 2x2 average-pool kernel -------------------------

def _avgpool2x2_kernel(x_ref, o_ref):
    # x_ref: (1, 2*th, Wo, 2*C)   o_ref: (1, th, Wo, C)
    th, wo, c = o_ref.shape[1], o_ref.shape[2], o_ref.shape[3]
    x = x_ref[0].astype(jnp.float32)
    x = x.reshape(th, 2, wo, 2 * c)
    s = x[:, 0] + x[:, 1]               # adjacent-row sum
    s = s[:, :, :c] + s[:, :, c:]       # adjacent-col sum (lane halves)
    o_ref[0] = (s * 0.25).astype(o_ref.dtype)


def avgpool2x2_stride2(x_nhwc):
    b, h, w, c = x_nhwc.shape
    ho, wo = h // 2, w // 2
    if h != 2 * ho or w != 2 * wo:      # PyTorch AvgPool2d floors odd dims
        x_nhwc = x_nhwc[:, :2 * ho, :2 * wo, :]
    xr = x_nhwc.reshape(b, 2 * ho, wo, 2 * c)   # free reshape: W pair -> lanes
    itm = jnp.dtype(xr.dtype).itemsize
    th = _pick_pool_row_tile(ho, wo, c, itm)
    blk = 2 * th * wo * 2 * c * itm + th * wo * c * itm
    vmem_limit = int(min(128 << 20, max(32 << 20, 2 * blk + (8 << 20))))
    return pl.pallas_call(
        _avgpool2x2_kernel,
        out_shape=jax.ShapeDtypeStruct((b, ho, wo, c), x_nhwc.dtype),
        grid=(b, ho // th),
        in_specs=[pl.BlockSpec((1, 2 * th, wo, 2 * c), lambda i, j: (i, j, 0, 0))],
        out_specs=pl.BlockSpec((1, th, wo, c), lambda i, j: (i, j, 0, 0)),
        compiler_params=pltpu.CompilerParams(
            dimension_semantics=("parallel", "parallel"),
            vmem_limit_bytes=vmem_limit),
    )(xr)


# ---------------------------------- module -----------------------------------

class DownsamplePallas:
    """Pallas TPU port of Downsample.forward (dims=2)."""

    def __init__(self, channels, use_conv, dims=2, out_channels=None,
                 padding=1, seed=0, compute_dtype=jnp.bfloat16):
        if dims != 2:
            # TODO(synk): dims=1 / dims=3 (Conv1d/Conv3d, AvgPool1d/AvgPool3d)
            # variants of Downsample are not ported; only dims=2 is implemented.
            raise NotImplementedError("only dims=2 is implemented")
        self.channels = channels
        self.out_channels = out_channels or channels
        self.use_conv = use_conv
        self.dims = dims
        self.padding = padding
        self.compute_dtype = compute_dtype
        self._single_buffer_consts = None

        if use_conv:
            # torch Conv2d default init: U(-1/sqrt(fan_in), 1/sqrt(fan_in))
            fan_in = channels * 3 * 3
            bound = 1.0 / math.sqrt(fan_in)
            kw_key, kb_key = jax.random.split(jax.random.PRNGKey(seed))
            self.weight = jax.random.uniform(
                kw_key, (self.out_channels, channels, 3, 3),
                minval=-bound, maxval=bound, dtype=jnp.float32)
            self.bias = jax.random.uniform(
                kb_key, (self.out_channels,),
                minval=-bound, maxval=bound, dtype=jnp.float32)
            # (kh, kw, Cin, Cout) in bf16 for the MXU; f32 master kept above.
            self.w_mat = jnp.transpose(self.weight, (2, 3, 1, 0)).astype(
                compute_dtype)
        else:
            assert self.channels == self.out_channels

    def __call__(self, x):
        assert x.shape[1] == self.channels
        B, C, H, W = x.shape
        # TODO(synk): if the surrounding model is NHWC, these two transposes
        # (and the final one) can be dropped entirely.
        x_nhwc = jnp.transpose(x, (0, 2, 3, 1))

        if self.use_conv:
            p = self.padding
            Ho = (H + 2 * p - 3) // 2 + 1
            Wo = (W + 2 * p - 3) // 2 + 1
            Hn, Wn = 2 * Ho + 2, 2 * Wo + 2
            xp = jnp.pad(x_nhwc,
                         ((0, 0), (p, Hn - H - p), (p, Wn - W - p), (0, 0)))
            # Space-to-depth into the 4 stride-2 phase planes (layout only).
            xph = xp.reshape(B, Ho + 1, 2, Wo + 1, 2, C)
            xph = jnp.transpose(xph, (0, 2, 4, 1, 3, 5))
            xph = xph.reshape(B, 4, Ho + 1, Wo + 1, C).astype(self.compute_dtype)

            kwargs = dict(batch=B, ho=Ho, wo=Wo, cin=C, cout=self.out_channels,
                          out_dtype=x.dtype)
            if self._single_buffer_consts is None:
                try:
                    y = jax.block_until_ready(conv3x3_stride2(
                        xph, self.w_mat, self.bias,
                        single_buffer_consts=True, **kwargs))
                    self._single_buffer_consts = True
                except Exception:
                    y = conv3x3_stride2(xph, self.w_mat, self.bias,
                                        single_buffer_consts=False, **kwargs)
                    self._single_buffer_consts = False
            else:
                y = conv3x3_stride2(
                    xph, self.w_mat, self.bias,
                    single_buffer_consts=self._single_buffer_consts, **kwargs)
            # TODO(synk): for Cout < 128 the stores are masked (vst.msk); a
            # lane-dense (B, Ho, Wo*Cout) output layout would help there.
            y = y.reshape(B, Ho, Wo, self.out_channels)
        else:
            y = avgpool2x2_stride2(x_nhwc)

        return jnp.transpose(y, (0, 3, 1, 2))              # back to NCHW

    forward = __call__


# ----------------------------------- main -------------------------------------

if __name__ == "__main__":
    B, C, H, W = 2, 4, 16, 16
    key = jax.random.PRNGKey(0)
    x = jax.random.normal(key, (B, C, H, W), dtype=jnp.float32)

    # --- use_conv=True: fused stride-2 3x3 conv ---
    m_conv = DownsamplePallas(C, use_conv=True, dims=2, padding=1, seed=0)
    y_conv = jax.block_until_ready(m_conv(x))
    assert y_conv.shape == (B, C, H // 2, W // 2) and y_conv.dtype == jnp.float32

    ref_f32 = jax.lax.conv_general_dilated(
        x, m_conv.weight, window_strides=(2, 2), padding=((1, 1), (1, 1)),
        dimension_numbers=("NCHW", "OIHW", "NCHW"),
        precision=jax.lax.Precision.HIGHEST) + m_conv.bias.reshape(1, -1, 1, 1)
    assert jnp.allclose(y_conv, ref_f32, atol=3e-2, rtol=3e-2)

    # Same-operand-precision reference (bf16 operands, f32 accumulation).
    ref_bf16 = jax.lax.conv_general_dilated(
        x.astype(jnp.bfloat16), m_conv.weight.astype(jnp.bfloat16),
        window_strides=(2, 2), padding=((1, 1), (1, 1)),
        dimension_numbers=("NCHW", "OIHW", "NCHW"),
        preferred_element_type=jnp.float32) + m_conv.bias.reshape(1, -1, 1, 1)
    assert jnp.allclose(y_conv, ref_bf16, atol=5e-3, rtol=5e-3)

    # --- second conv config: Cout != Cin, odd-ish spatial tile path ---
    x2 = jax.random.normal(jax.random.PRNGKey(1), (2, C, 12, 12),
                           dtype=jnp.float32)
    m_conv2 = DownsamplePallas(C, use_conv=True, dims=2, out_channels=8,
                               padding=1, seed=1)
    y2 = jax.block_until_ready(m_conv2(x2))
    assert y2.shape == (2, 8, 6, 6)
    ref2 = jax.lax.conv_general_dilated(
        x2, m_conv2.weight, window_strides=(2, 2), padding=((1, 1), (1, 1)),
        dimension_numbers=("NCHW", "OIHW", "NCHW"),
        precision=jax.lax.Precision.HIGHEST) + m_conv2.bias.reshape(1, -1, 1, 1)
    assert jnp.allclose(y2, ref2, atol=3e-2, rtol=3e-2)

    # --- use_conv=False: 2x2 stride-2 average pool ---
    m_pool = DownsamplePallas(C, use_conv=False, dims=2)
    y_pool = jax.block_until_ready(m_pool(x))
    assert y_pool.shape == (B, C, H // 2, W // 2)
    ref_pool = x.reshape(B, C, H // 2, 2, W // 2, 2).mean(axis=(3, 5))
    assert jnp.allclose(y_pool, ref_pool, atol=1e-5, rtol=1e-5)

    print("KERNEL_OK")
</pallas_src>

<mosaic_0001>
module attributes {stable_mosaic.version = 11 : i64} {
  func.func @_conv3x3_s2_kernel(%arg0: i32, %arg1: i32, %arg2: i32, %arg3: i32, %arg4: memref<1x4x8x9x4xbf16, #tpu.memory_space<vmem>>, %arg5: memref<1x4x1x9x4xbf16, #tpu.memory_space<vmem>>, %arg6: memref<3x3x4x4xbf16, #tpu.memory_space<vmem>>, %arg7: memref<1x4xf32, #tpu.memory_space<vmem>>, %arg8: memref<1x64x4xf32, #tpu.memory_space<vmem>>, %arg9: memref<64x4xf32, #tpu.memory_space<vmem>>) attributes {dimension_semantics = [#tpu.dimension_semantics<parallel>, #tpu.dimension_semantics<parallel>, #tpu.dimension_semantics<parallel>, #tpu.dimension_semantics<arbitrary>], iteration_bounds = array<i64: 2, 1, 1, 1>, scalar_prefetch = 0 : i64, scratch_operands = 1 : i64, tpu.core_type = #tpu.core_type<tc>, window_params = [{transform_indices = @transform_0, window_bounds = array<i64: 1, 4, 8, 9, 4>}, {transform_indices = @transform_1, window_bounds = array<i64: 1, 4, 1, 9, 4>}, {pipeline_mode = #tpu.pipeline_mode<synchronous>, transform_indices = @transform_2, window_bounds = array<i64: 3, 3, 4, 4>}, {pipeline_mode = #tpu.pipeline_mode<synchronous>, transform_indices = @transform_3, window_bounds = array<i64: 1, 4>}, {transform_indices = @transform_4, window_bounds = array<i64: 1, 64, 4>}]} {
    %c0_i32 = arith.constant 0 : i32
    %0 = arith.cmpi eq, %arg3, %c0_i32 : i32
    %1 = arith.extui %0 : i1 to i32
    %c0_i32_0 = arith.constant 0 : i32
    %2 = arith.cmpi ne, %1, %c0_i32_0 : i32
    scf.if %2 {
      %cst_78 = arith.constant 0.000000e+00 : f32
      %78 = vector.broadcast %cst_78 : f32 to vector<64x4xf32>
      %c0_79 = arith.constant 0 : index
      %c0_80 = arith.constant 0 : index
      %79 = vector.load %arg9[%c0_79, %c0_80] : memref<64x4xf32, #tpu.memory_space<vmem>>, vector<64x4xf32>
      tpu.vector_store %arg9[%c0_79, %c0_80], %78 {strides = array<i32>} : memref<64x4xf32, #tpu.memory_space<vmem>>, vector<64x4xf32>,
    } else {
    }
    %cst = arith.constant 0.000000e+00 : f32
    %3 = vector.broadcast %cst : f32 to vector<64x4xf32>
    %c0 = arith.constant 0 : index
    %c0_1 = arith.constant 0 : index
    %c0_2 = arith.constant 0 : index
    %c0_3 = arith.constant 0 : index
    %c0_4 = arith.constant 0 : index
    %4 = vector.load %arg4[%c0, %c0_1, %c0_2, %c0_3, %c0_4] : memref<1x4x8x9x4xbf16, #tpu.memory_space<vmem>>, vector<1x1x8x9x4xbf16>
    %5 = vector.shape_cast %4 : vector<1x1x8x9x4xbf16> to vector<8x9x4xbf16>
    %c0_5 = arith.constant 0 : index
    %c0_6 = arith.constant 0 : index
    %c0_7 = arith.constant 0 : index
    %c0_8 = arith.constant 0 : index
    %c0_9 = arith.constant 0 : index
    %6 = vector.load %arg5[%c0_5, %c0_6, %c0_7, %c0_8, %c0_9] : memref<1x4x1x9x4xbf16, #tpu.memory_space<vmem>>, vector<1x1x1x9x4xbf16>
    %7 = vector.shape_cast %6 : vector<1x1x1x9x4xbf16> to vector<1x9x4xbf16>
    %8 = tpu.concatenate %5, %7 in 0 : vector<8x9x4xbf16>, vector<1x9x4xbf16> -> vector<9x9x4xbf16>
    %9 = vector.extract_strided_slice %8 {offsets = [0, 0, 0], sizes = [8, 8, 4], strides = [1, 1, 1]} : vector<9x9x4xbf16> to vector<8x8x4xbf16>
    %10 = vector.shape_cast %9 : vector<8x8x4xbf16> to vector<64x4xbf16>
    %c0_10 = arith.constant 0 : index
    %c0_11 = arith.constant 0 : index
    %c0_12 = arith.constant 0 : index
    %c0_13 = arith.constant 0 : index
    %11 = vector.load %arg6[%c0_10, %c0_11, %c0_12, %c0_13] : memref<3x3x4x4xbf16, #tpu.memory_space<vmem>>, vector<1x1x4x4xbf16>
    %12 = vector.shape_cast %11 : vector<1x1x4x4xbf16> to vector<4x4xbf16>
    %cst_14 = arith.constant dense<0.000000e+00> : vector<64x4xf32>
    %13 = tpu.matmul %10, %12, %cst_14 {dimension_numbers = #tpu.dot_dimension_numbers<[1], [0], [0], [1], [0, 0, 1, 1], [], []>} : vector<64x4xbf16>, vector<4x4xbf16>, vector<64x4xf32> -> vector<64x4xf32>
    %14 = arith.addf %3, %13 : vector<64x4xf32>
    %15 = vector.extract_strided_slice %8 {offsets = [0, 1, 0], sizes = [8, 8, 4], strides = [1, 1, 1]} : vector<9x9x4xbf16> to vector<8x8x4xbf16>
    %16 = vector.shape_cast %15 : vector<8x8x4xbf16> to vector<64x4xbf16>
    %c0_15 = arith.constant 0 : index
    %c2 = arith.constant 2 : index
    %c0_16 = arith.constant 0 : index
    %c0_17 = arith.constant 0 : index
    %17 = vector.load %arg6[%c0_15, %c2, %c0_16, %c0_17] : memref<3x3x4x4xbf16, #tpu.memory_space<vmem>>, vector<1x1x4x4xbf16>
    %18 = vector.shape_cast %17 : vector<1x1x4x4xbf16> to vector<4x4xbf16>
    %cst_18 = arith.constant dense<0.000000e+00> : vector<64x4xf32>
    %19 = tpu.matmul %16, %18, %cst_18 {dimension_numbers = #tpu.dot_dimension_numbers<[1], [0], [0], [1], [0, 0, 1, 1], [], []>} : vector<64x4xbf16>, vector<4x4xbf16>, vector<64x4xf32> -> vector<64x4xf32>
    %20 = arith.addf %14, %19 : vector<64x4xf32>
    %21 = vector.extract_strided_slice %8 {offsets = [1, 0, 0], sizes = [8, 8, 4], strides = [1, 1, 1]} : vector<9x9x4xbf16> to vector<8x8x4xbf16>
    %22 = vector.shape_cast %21 : vector<8x8x4xbf16> to vector<64x4xbf16>
    %c2_19 = arith.constant 2 : index
    %c0_20 = arith.constant 0 : index
    %c0_21 = arith.constant 0 : index
    %c0_22 = arith.constant 0 : index
    %23 = vector.load %arg6[%c2_19, %c0_20, %c0_21, %c0_22] : memref<3x3x4x4xbf16, #tpu.memory_space<vmem>>, vector<1x1x4x4xbf16>
    %24 = vector.shape_cast %23 : vector<1x1x4x4xbf16> to vector<4x4xbf16>
    %cst_23 = arith.constant dense<0.000000e+00> : vector<64x4xf32>
    %25 = tpu.matmul %22, %24, %cst_23 {dimension_numbers = #tpu.dot_dimension_numbers<[1], [0], [0], [1], [0, 0, 1, 1], [], []>} : vector<64x4xbf16>, vector<4x4xbf16>, vector<64x4xf32> -> vector<64x4xf32>
    %26 = arith.addf %20, %25 : vector<64x4xf32>
    %27 = vector.extract_strided_slice %8 {offsets = [1, 1, 0], sizes = [8, 8, 4], strides = [1, 1, 1]} : vector<9x9x4xbf16> to vector<8x8x4xbf16>
    %28 = vector.shape_cast %27 : vector<8x8x4xbf16> to vector<64x4xbf16>
    %c2_24 = arith.constant 2 : index
    %c2_25 = arith.constant 2 : index
    %c0_26 = arith.constant 0 : index
    %c0_27 = arith.constant 0 : index
    %29 = vector.load %arg6[%c2_24, %c2_25, %c0_26, %c0_27] : memref<3x3x4x4xbf16, #tpu.memory_space<vmem>>, vector<1x1x4x4xbf16>
    %30 = vector.shape_cast %29 : vector<1x1x4x4xbf16> to vector<4x4xbf16>
    %cst_28 = arith.constant dense<0.000000e+00> : vector<64x4xf32>
    %31 = tpu.matmul %28, %30, %cst_28 {dimension_numbers = #tpu.dot_dimension_numbers<[1], [0], [0], [1], [0, 0, 1, 1], [], []>} : vector<64x4xbf16>, vector<4x4xbf16>, vector<64x4xf32> -> vector<64x4xf32>
    %32 = arith.addf %26, %31 : vector<64x4xf32>
    %c0_29 = arith.constant 0 : index
    %c1 = arith.constant 1 : index
    %c0_30 = arith.constant 0 : index
    %c0_31 = arith.constant 0 : index
    %c0_32 = arith.constant 0 : index
    %33 = vector.load %arg4[%c0_29, %c1, %c0_30, %c0_31, %c0_32] : memref<1x4x8x9x4xbf16, #tpu.memory_space<vmem>>, vector<1x1x8x9x4xbf16>
    %34 = vector.shape_cast %33 : vector<1x1x8x9x4xbf16> to vector<8x9x4xbf16>
    %c0_33 = arith.constant 0 : index
    %c1_34 = arith.constant 1 : index
    %c0_35 = arith.constant 0 : index
    %c0_36 = arith.constant 0 : index
    %c0_37 = arith.constant 0 : index
    %35 = vector.load %arg5[%c0_33, %c1_34, %c0_35, %c0_36, %c0_37] : memref<1x4x1x9x4xbf16, #tpu.memory_space<vmem>>, vector<1x1x1x9x4xbf16>
    %36 = vector.shape_cast %35 : vector<1x1x1x9x4xbf16> to vector<1x9x4xbf16>
    %37 = tpu.concatenate %34, %36 in 0 : vector<8x9x4xbf16>, vector<1x9x4xbf16> -> vector<9x9x4xbf16>
    %38 = vector.extract_strided_slice %37 {offsets = [0, 0, 0], sizes = [8, 8, 4], strides = [1, 1, 1]} : vector<9x9x4xbf16> to vector<8x8x4xbf16>
    %39 = vector.shape_cast %38 : vector<8x8x4xbf16> to vector<64x4xbf16>
    %c0_38 = arith.constant 0 : index
    %c1_39 = arith.constant 1 : index
    %c0_40 = arith.constant 0 : index
    %c0_41 = arith.constant 0 : index
    %40 = vector.load %arg6[%c0_38, %c1_39, %c0_40, %c0_41] : memref<3x3x4x4xbf16, #tpu.memory_space<vmem>>, vector<1x1x4x4xbf16>
    %41 = vector.shape_cast %40 : vector<1x1x4x4xbf16> to vector<4x4xbf16>
    %cst_42 = arith.constant dense<0.000000e+00> : vector<64x4xf32>
    %42 = tpu.matmul %39, %41, %cst_42 {dimension_numbers = #tpu.dot_dimension_numbers<[1], [0], [0], [1], [0, 0, 1, 1], [], []>} : vector<64x4xbf16>, vector<4x4xbf16>, vector<64x4xf32> -> vector<64x4xf32>
    %43 = arith.addf %32, %42 : vector<64x4xf32>
    %44 = vector.extract_strided_slice %37 {offsets = [1, 0, 0], sizes = [8, 8, 4], strides = [1, 1, 1]} : vector<9x9x4xbf16> to vector<8x8x4xbf16>
    %45 = vector.shape_cast %44 : vector<8x8x4xbf16> to vector<64x4xbf16>
    %c2_43 = arith.constant 2 : index
    %c1_44 = arith.constant 1 : index
    %c0_45 = arith.constant 0 : index
    %c0_46 = arith.constant 0 : index
    %46 = vector.load %arg6[%c2_43, %c1_44, %c0_45, %c0_46] : memref<3x3x4x4xbf16, #tpu.memory_space<vmem>>, vector<1x1x4x4xbf16>
    %47 = vector.shape_cast %46 : vector<1x1x4x4xbf16> to vector<4x4xbf16>
    %cst_47 = arith.constant dense<0.000000e+00> : vector<64x4xf32>
    %48 = tpu.matmul %45, %47, %cst_47 {dimension_numbers = #tpu.dot_dimension_numbers<[1], [0], [0], [1], [0, 0, 1, 1], [], []>} : vector<64x4xbf16>, vector<4x4xbf16>, vector<64x4xf32> -> vector<64x4xf32>
    %49 = arith.addf %43, %48 : vector<64x4xf32>
    %c0_48 = arith.constant 0 : index
    %c2_49 = arith.constant 2 : index
    %c0_50 = arith.constant 0 : index
    %c0_51 = arith.constant 0 : index
    %c0_52 = arith.constant 0 : index
    %50 = vector.load %arg4[%c0_48, %c2_49, %c0_50, %c0_51, %c0_52] : memref<1x4x8x9x4xbf16, #tpu.memory_space<vmem>>, vector<1x1x8x9x4xbf16>
    %51 = vector.shape_cast %50 : vector<1x1x8x9x4xbf16> to vector<8x9x4xbf16>
    %52 = vector.extract_strided_slice %51 {offsets = [0, 0, 0], sizes = [8, 8, 4], strides = [1, 1, 1]} : vector<8x9x4xbf16> to vector<8x8x4xbf16>
    %53 = vector.shape_cast %52 : vector<8x8x4xbf16> to vector<64x4xbf16>
    %c1_53 = arith.constant 1 : index
    %c0_54 = arith.constant 0 : index
    %c0_55 = arith.constant 0 : index
    %c0_56 = arith.constant 0 : index
    %54 = vector.load %arg6[%c1_53, %c0_54, %c0_55, %c0_56] : memref<3x3x4x4xbf16, #tpu.memory_space<vmem>>, vector<1x1x4x4xbf16>
    %55 = vector.shape_cast %54 : vector<1x1x4x4xbf16> to vector<4x4xbf16>
    %cst_57 = arith.constant dense<0.000000e+00> : vector<64x4xf32>
    %56 = tpu.matmul %53, %55, %cst_57 {dimension_numbers = #tpu.dot_dimension_numbers<[1], [0], [0], [1], [0, 0, 1, 1], [], []>} : vector<64x4xbf16>, vector<4x4xbf16>, vector<64x4xf32> -> vector<64x4xf32>
    %57 = arith.addf %49, %56 : vector<64x4xf32>
    %58 = vector.extract_strided_slice %51 {offsets = [0, 1, 0], sizes = [8, 8, 4], strides = [1, 1, 1]} : vector<8x9x4xbf16> to vector<8x8x4xbf16>
    %59 = vector.shape_cast %58 : vector<8x8x4xbf16> to vector<64x4xbf16>
    %c1_58 = arith.constant 1 : index
    %c2_59 = arith.constant 2 : index
    %c0_60 = arith.constant 0 : index
    %c0_61 = arith.constant 0 : index
    %60 = vector.load %arg6[%c1_58, %c2_59, %c0_60, %c0_61] : memref<3x3x4x4xbf16, #tpu.memory_space<vmem>>, vector<1x1x4x4xbf16>
    %61 = vector.shape_cast %60 : vector<1x1x4x4xbf16> to vector<4x4xbf16>
    %cst_62 = arith.constant dense<0.000000e+00> : vector<64x4xf32>
    %62 = tpu.matmul %59, %61, %cst_62 {dimension_numbers = #tpu.dot_dimension_numbers<[1], [0], [0], [1], [0, 0, 1, 1], [], []>} : vector<64x4xbf16>, vector<4x4xbf16>, vector<64x4xf32> -> vector<64x4xf32>
    %63 = arith.addf %57, %62 : vector<64x4xf32>
    %c0_63 = arith.constant 0 : index
    %c3 = arith.constant 3 : index
    %c0_64 = arith.constant 0 : index
    %c0_65 = arith.constant 0 : index
    %c0_66 = arith.constant 0 : index
    %64 = vector.load %arg4[%c0_63, %c3, %c0_64, %c0_65, %c0_66] : memref<1x4x8x9x4xbf16, #tpu.memory_space<vmem>>, vector<1x1x8x9x4xbf16>
    %65 = vector.shape_cast %64 : vector<1x1x8x9x4xbf16> to vector<8x9x4xbf16>
    %66 = vector.extract_strided_slice %65 {offsets = [0, 0, 0], sizes = [8, 8, 4], strides = [1, 1, 1]} : vector<8x9x4xbf16> to vector<8x8x4xbf16>
    %67 = vector.shape_cast %66 : vector<8x8x4xbf16> to vector<64x4xbf16>
    %c1_67 = arith.constant 1 : index
    %c1_68 = arith.constant 1 : index
    %c0_69 = arith.constant 0 : index
    %c0_70 = arith.constant 0 : index
    %68 = vector.load %arg6[%c1_67, %c1_68, %c0_69, %c0_70] : memref<3x3x4x4xbf16, #tpu.memory_space<vmem>>, vector<1x1x4x4xbf16>
    %69 = vector.shape_cast %68 : vector<1x1x4x4xbf16> to vector<4x4xbf16>
    %cst_71 = arith.constant dense<0.000000e+00> : vector<64x4xf32>
    %70 = tpu.matmul %67, %69, %cst_71 {dimension_numbers = #tpu.dot_dimension_numbers<[1], [0], [0], [1], [0, 0, 1, 1], [], []>} : vector<64x4xbf16>, vector<4x4xbf16>, vector<64x4xf32> -> vector<64x4xf32>
    %71 = arith.addf %63, %70 : vector<64x4xf32>
    %c0_72 = arith.constant 0 : index
    %c0_73 = arith.constant 0 : index
    %72 = vector.load %arg9[%c0_72, %c0_73] : memref<64x4xf32, #tpu.memory_space<vmem>>, vector<64x4xf32>
    %73 = arith.addf %72, %71 : vector<64x4xf32>
    %c0_74 = arith.constant 0 : index
    %c0_75 = arith.constant 0 : index
    %74 = vector.load %arg9[%c0_74, %c0_75] : memref<64x4xf32, #tpu.memory_space<vmem>>, vector<64x4xf32>
    tpu.vector_store %arg9[%c0_74, %c0_75], %73 {strides = array<i32>} : memref<64x4xf32, #tpu.memory_space<vmem>>, vector<64x4xf32>,
    %c0_i32_76 = arith.constant 0 : i32
    %75 = arith.cmpi eq, %arg3, %c0_i32_76 : i32
    %76 = arith.extui %75 : i1 to i32
    %c0_i32_77 = arith.constant 0 : i32
    %77 = arith.cmpi ne, %76, %c0_i32_77 : i32
    scf.if %77 {
      %c0_78 = arith.constant 0 : index
      %c0_79 = arith.constant 0 : index
      %78 = vector.load %arg9[%c0_78, %c0_79] : memref<64x4xf32, #tpu.memory_space<vmem>>, vector<64x4xf32>
      %c0_80 = arith.constant 0 : index
      %c0_81 = arith.constant 0 : index
      %79 = vector.load %arg7[%c0_80, %c0_81] : memref<1x4xf32, #tpu.memory_space<vmem>>, vector<1x4xf32>
      %80 = vector.broadcast %79 : vector<1x4xf32> to vector<64x4xf32>
      %81 = arith.addf %78, %80 : vector<64x4xf32>
      %c0_82 = arith.constant 0 : index
      %c0_83 = arith.constant 0 : index
      %c0_84 = arith.constant 0 : index
      %82 = vector.load %arg8[%c0_82, %c0_83, %c0_84] : memref<1x64x4xf32, #tpu.memory_space<vmem>>, vector<1x64x4xf32>
      %83 = vector.shape_cast %82 : vector<1x64x4xf32> to vector<64x4xf32>
      %84 = vector.shape_cast %81 : vector<64x4xf32> to vector<1x64x4xf32>
      tpu.vector_store %arg8[%c0_82, %c0_83, %c0_84], %84 {strides = array<i32>} : memref<1x64x4xf32, #tpu.memory_space<vmem>>, vector<1x64x4xf32>,
    } else {
    }
    return
  }
  func.func @transform_0(%arg0: i32, %arg1: i32, %arg2: i32, %arg3: i32) -> (i32, i32, i32, i32, i32) {
    %c0_i32 = arith.constant 0 : i32
    %c0_i32_0 = arith.constant 0 : i32
    %c0_i32_1 = arith.constant 0 : i32
    return %arg0, %c0_i32, %arg1, %c0_i32_0, %arg3 : i32, i32, i32, i32, i32
  }
  func.func @transform_1(%arg0: i32, %arg1: i32, %arg2: i32, %arg3: i32) -> (i32, i32, i32, i32, i32) {
    %c8_i32 = arith.constant 8 : i32
    %0 = arith.muli %arg1, %c8_i32 : i32
    %c8_i32_0 = arith.constant 8 : i32
    %1 = arith.addi %0, %c8_i32_0 : i32
    %c0_i32 = arith.constant 0 : i32
    %c0_i32_1 = arith.constant 0 : i32
    %c0_i32_2 = arith.constant 0 : i32
    return %arg0, %c0_i32, %1, %c0_i32_1, %arg3 : i32, i32, i32, i32, i32
  }
  func.func @transform_2(%arg0: i32, %arg1: i32, %arg2: i32, %arg3: i32) -> (i32, i32, i32, i32) {
    %c0_i32 = arith.constant 0 : i32
    %c0_i32_0 = arith.constant 0 : i32
    %c0_i32_1 = arith.constant 0 : i32
    return %c0_i32, %c0_i32_0, %arg3, %arg2 : i32, i32, i32, i32
  }
  func.func @transform_3(%arg0: i32, %arg1: i32, %arg2: i32, %arg3: i32) -> (i32, i32) {
    %c0_i32 = arith.constant 0 : i32
    %c0_i32_0 = arith.constant 0 : i32
    return %c0_i32, %arg2 : i32, i32
  }
  func.func @transform_4(%arg0: i32, %arg1: i32, %arg2: i32, %arg3: i32) -> (i32, i32, i32) {
    %c0_i32 = arith.constant 0 : i32
    return %arg0, %arg1, %arg2 : i32, i32, i32
  }
}

module attributes {stable_mosaic.version = 11 : i64} {
  func.func @_conv3x3_s2_kernel(%arg0: i32, %arg1: i32, %arg2: i32, %arg3: i32, %arg4: memref<1x4x8x9x4xbf16, #tpu.memory_space<vmem>>, %arg5: memref<1x4x1x9x4xbf16, #tpu.memory_space<vmem>>, %arg6: memref<3x3x4x4xbf16, #tpu.memory_space<vmem>>, %arg7: memref<1x4xf32, #tpu.memory_space<vmem>>, %arg8: memref<1x64x4xf32, #tpu.memory_space<vmem>>, %arg9: memref<64x4xf32, #tpu.memory_space<vmem>>) attributes {dimension_semantics = [#tpu.dimension_semantics<parallel>, #tpu.dimension_semantics<parallel>, #tpu.dimension_semantics<parallel>, #tpu.dimension_semantics<arbitrary>], iteration_bounds = array<i64: 2, 1, 1, 1>, scalar_prefetch = 0 : i64, scratch_operands = 1 : i64, tpu.core_type = #tpu.core_type<tc>, window_params = [{transform_indices = @transform_0, window_bounds = array<i64: 1, 4, 8, 9, 4>}, {transform_indices = @transform_1, window_bounds = array<i64: 1, 4, 1, 9, 4>}, {transform_indices = @transform_2, window_bounds = array<i64: 3, 3, 4, 4>}, {transform_indices = @transform_3, window_bounds = array<i64: 1, 4>}, {transform_indices = @transform_4, window_bounds = array<i64: 1, 64, 4>}]} {
    %c0_i32 = arith.constant 0 : i32
    %0 = arith.cmpi eq, %arg3, %c0_i32 : i32
    %1 = arith.extui %0 : i1 to i32
    %c0_i32_0 = arith.constant 0 : i32
    %2 = arith.cmpi ne, %1, %c0_i32_0 : i32
    scf.if %2 {
      %cst_78 = arith.constant 0.000000e+00 : f32
      %78 = vector.broadcast %cst_78 : f32 to vector<64x4xf32>
      %c0_79 = arith.constant 0 : index
      %c0_80 = arith.constant 0 : index
      %79 = vector.load %arg9[%c0_79, %c0_80] : memref<64x4xf32, #tpu.memory_space<vmem>>, vector<64x4xf32>
      tpu.vector_store %arg9[%c0_79, %c0_80], %78 {strides = array<i32>} : memref<64x4xf32, #tpu.memory_space<vmem>>, vector<64x4xf32>,
    } else {
    }
    %cst = arith.constant 0.000000e+00 : f32
    %3 = vector.broadcast %cst : f32 to vector<64x4xf32>
    %c0 = arith.constant 0 : index
    %c0_1 = arith.constant 0 : index
    %c0_2 = arith.constant 0 : index
    %c0_3 = arith.constant 0 : index
    %c0_4 = arith.constant 0 : index
    %4 = vector.load %arg4[%c0, %c0_1, %c0_2, %c0_3, %c0_4] : memref<1x4x8x9x4xbf16, #tpu.memory_space<vmem>>, vector<1x1x8x9x4xbf16>
    %5 = vector.shape_cast %4 : vector<1x1x8x9x4xbf16> to vector<8x9x4xbf16>
    %c0_5 = arith.constant 0 : index
    %c0_6 = arith.constant 0 : index
    %c0_7 = arith.constant 0 : index
    %c0_8 = arith.constant 0 : index
    %c0_9 = arith.constant 0 : index
    %6 = vector.load %arg5[%c0_5, %c0_6, %c0_7, %c0_8, %c0_9] : memref<1x4x1x9x4xbf16, #tpu.memory_space<vmem>>, vector<1x1x1x9x4xbf16>
    %7 = vector.shape_cast %6 : vector<1x1x1x9x4xbf16> to vector<1x9x4xbf16>
    %8 = tpu.concatenate %5, %7 in 0 : vector<8x9x4xbf16>, vector<1x9x4xbf16> -> vector<9x9x4xbf16>
    %9 = vector.extract_strided_slice %8 {offsets = [0, 0, 0], sizes = [8, 8, 4], strides = [1, 1, 1]} : vector<9x9x4xbf16> to vector<8x8x4xbf16>
    %10 = vector.shape_cast %9 : vector<8x8x4xbf16> to vector<64x4xbf16>
    %c0_10 = arith.constant 0 : index
    %c0_11 = arith.constant 0 : index
    %c0_12 = arith.constant 0 : index
    %c0_13 = arith.constant 0 : index
    %11 = vector.load %arg6[%c0_10, %c0_11, %c0_12, %c0_13] : memref<3x3x4x4xbf16, #tpu.memory_space<vmem>>, vector<1x1x4x4xbf16>
    %12 = vector.shape_cast %11 : vector<1x1x4x4xbf16> to vector<4x4xbf16>
    %cst_14 = arith.constant dense<0.000000e+00> : vector<64x4xf32>
    %13 = tpu.matmul %10, %12, %cst_14 {dimension_numbers = #tpu.dot_dimension_numbers<[1], [0], [0], [1], [0, 0, 1, 1], [], []>} : vector<64x4xbf16>, vector<4x4xbf16>, vector<64x4xf32> -> vector<64x4xf32>
    %14 = arith.addf %3, %13 : vector<64x4xf32>
    %15 = vector.extract_strided_slice %8 {offsets = [0, 1, 0], sizes = [8, 8, 4], strides = [1, 1, 1]} : vector<9x9x4xbf16> to vector<8x8x4xbf16>
    %16 = vector.shape_cast %15 : vector<8x8x4xbf16> to vector<64x4xbf16>
    %c0_15 = arith.constant 0 : index
    %c2 = arith.constant 2 : index
    %c0_16 = arith.constant 0 : index
    %c0_17 = arith.constant 0 : index
    %17 = vector.load %arg6[%c0_15, %c2, %c0_16, %c0_17] : memref<3x3x4x4xbf16, #tpu.memory_space<vmem>>, vector<1x1x4x4xbf16>
    %18 = vector.shape_cast %17 : vector<1x1x4x4xbf16> to vector<4x4xbf16>
    %cst_18 = arith.constant dense<0.000000e+00> : vector<64x4xf32>
    %19 = tpu.matmul %16, %18, %cst_18 {dimension_numbers = #tpu.dot_dimension_numbers<[1], [0], [0], [1], [0, 0, 1, 1], [], []>} : vector<64x4xbf16>, vector<4x4xbf16>, vector<64x4xf32> -> vector<64x4xf32>
    %20 = arith.addf %14, %19 : vector<64x4xf32>
    %21 = vector.extract_strided_slice %8 {offsets = [1, 0, 0], sizes = [8, 8, 4], strides = [1, 1, 1]} : vector<9x9x4xbf16> to vector<8x8x4xbf16>
    %22 = vector.shape_cast %21 : vector<8x8x4xbf16> to vector<64x4xbf16>
    %c2_19 = arith.constant 2 : index
    %c0_20 = arith.constant 0 : index
    %c0_21 = arith.constant 0 : index
    %c0_22 = arith.constant 0 : index
    %23 = vector.load %arg6[%c2_19, %c0_20, %c0_21, %c0_22] : memref<3x3x4x4xbf16, #tpu.memory_space<vmem>>, vector<1x1x4x4xbf16>
    %24 = vector.shape_cast %23 : vector<1x1x4x4xbf16> to vector<4x4xbf16>
    %cst_23 = arith.constant dense<0.000000e+00> : vector<64x4xf32>
    %25 = tpu.matmul %22, %24, %cst_23 {dimension_numbers = #tpu.dot_dimension_numbers<[1], [0], [0], [1], [0, 0, 1, 1], [], []>} : vector<64x4xbf16>, vector<4x4xbf16>, vector<64x4xf32> -> vector<64x4xf32>
    %26 = arith.addf %20, %25 : vector<64x4xf32>
    %27 = vector.extract_strided_slice %8 {offsets = [1, 1, 0], sizes = [8, 8, 4], strides = [1, 1, 1]} : vector<9x9x4xbf16> to vector<8x8x4xbf16>
    %28 = vector.shape_cast %27 : vector<8x8x4xbf16> to vector<64x4xbf16>
    %c2_24 = arith.constant 2 : index
    %c2_25 = arith.constant 2 : index
    %c0_26 = arith.constant 0 : index
    %c0_27 = arith.constant 0 : index
    %29 = vector.load %arg6[%c2_24, %c2_25, %c0_26, %c0_27] : memref<3x3x4x4xbf16, #tpu.memory_space<vmem>>, vector<1x1x4x4xbf16>
    %30 = vector.shape_cast %29 : vector<1x1x4x4xbf16> to vector<4x4xbf16>
    %cst_28 = arith.constant dense<0.000000e+00> : vector<64x4xf32>
    %31 = tpu.matmul %28, %30, %cst_28 {dimension_numbers = #tpu.dot_dimension_numbers<[1], [0], [0], [1], [0, 0, 1, 1], [], []>} : vector<64x4xbf16>, vector<4x4xbf16>, vector<64x4xf32> -> vector<64x4xf32>
    %32 = arith.addf %26, %31 : vector<64x4xf32>
    %c0_29 = arith.constant 0 : index
    %c1 = arith.constant 1 : index
    %c0_30 = arith.constant 0 : index
    %c0_31 = arith.constant 0 : index
    %c0_32 = arith.constant 0 : index
    %33 = vector.load %arg4[%c0_29, %c1, %c0_30, %c0_31, %c0_32] : memref<1x4x8x9x4xbf16, #tpu.memory_space<vmem>>, vector<1x1x8x9x4xbf16>
    %34 = vector.shape_cast %33 : vector<1x1x8x9x4xbf16> to vector<8x9x4xbf16>
    %c0_33 = arith.constant 0 : index
    %c1_34 = arith.constant 1 : index
    %c0_35 = arith.constant 0 : index
    %c0_36 = arith.constant 0 : index
    %c0_37 = arith.constant 0 : index
    %35 = vector.load %arg5[%c0_33, %c1_34, %c0_35, %c0_36, %c0_37] : memref<1x4x1x9x4xbf16, #tpu.memory_space<vmem>>, vector<1x1x1x9x4xbf16>
    %36 = vector.shape_cast %35 : vector<1x1x1x9x4xbf16> to vector<1x9x4xbf16>
    %37 = tpu.concatenate %34, %36 in 0 : vector<8x9x4xbf16>, vector<1x9x4xbf16> -> vector<9x9x4xbf16>
    %38 = vector.extract_strided_slice %37 {offsets = [0, 0, 0], sizes = [8, 8, 4], strides = [1, 1, 1]} : vector<9x9x4xbf16> to vector<8x8x4xbf16>
    %39 = vector.shape_cast %38 : vector<8x8x4xbf16> to vector<64x4xbf16>
    %c0_38 = arith.constant 0 : index
    %c1_39 = arith.constant 1 : index
    %c0_40 = arith.constant 0 : index
    %c0_41 = arith.constant 0 : index
    %40 = vector.load %arg6[%c0_38, %c1_39, %c0_40, %c0_41] : memref<3x3x4x4xbf16, #tpu.memory_space<vmem>>, vector<1x1x4x4xbf16>
    %41 = vector.shape_cast %40 : vector<1x1x4x4xbf16> to vector<4x4xbf16>
    %cst_42 = arith.constant dense<0.000000e+00> : vector<64x4xf32>
    %42 = tpu.matmul %39, %41, %cst_42 {dimension_numbers = #tpu.dot_dimension_numbers<[1], [0], [0], [1], [0, 0, 1, 1], [], []>} : vector<64x4xbf16>, vector<4x4xbf16>, vector<64x4xf32> -> vector<64x4xf32>
    %43 = arith.addf %32, %42 : vector<64x4xf32>
    %44 = vector.extract_strided_slice %37 {offsets = [1, 0, 0], sizes = [8, 8, 4], strides = [1, 1, 1]} : vector<9x9x4xbf16> to vector<8x8x4xbf16>
    %45 = vector.shape_cast %44 : vector<8x8x4xbf16> to vector<64x4xbf16>
    %c2_43 = arith.constant 2 : index
    %c1_44 = arith.constant 1 : index
    %c0_45 = arith.constant 0 : index
    %c0_46 = arith.constant 0 : index
    %46 = vector.load %arg6[%c2_43, %c1_44, %c0_45, %c0_46] : memref<3x3x4x4xbf16, #tpu.memory_space<vmem>>, vector<1x1x4x4xbf16>
    %47 = vector.shape_cast %46 : vector<1x1x4x4xbf16> to vector<4x4xbf16>
    %cst_47 = arith.constant dense<0.000000e+00> : vector<64x4xf32>
    %48 = tpu.matmul %45, %47, %cst_47 {dimension_numbers = #tpu.dot_dimension_numbers<[1], [0], [0], [1], [0, 0, 1, 1], [], []>} : vector<64x4xbf16>, vector<4x4xbf16>, vector<64x4xf32> -> vector<64x4xf32>
    %49 = arith.addf %43, %48 : vector<64x4xf32>
    %c0_48 = arith.constant 0 : index
    %c2_49 = arith.constant 2 : index
    %c0_50 = arith.constant 0 : index
    %c0_51 = arith.constant 0 : index
    %c0_52 = arith.constant 0 : index
    %50 = vector.load %arg4[%c0_48, %c2_49, %c0_50, %c0_51, %c0_52] : memref<1x4x8x9x4xbf16, #tpu.memory_space<vmem>>, vector<1x1x8x9x4xbf16>
    %51 = vector.shape_cast %50 : vector<1x1x8x9x4xbf16> to vector<8x9x4xbf16>
    %52 = vector.extract_strided_slice %51 {offsets = [0, 0, 0], sizes = [8, 8, 4], strides = [1, 1, 1]} : vector<8x9x4xbf16> to vector<8x8x4xbf16>
    %53 = vector.shape_cast %52 : vector<8x8x4xbf16> to vector<64x4xbf16>
    %c1_53 = arith.constant 1 : index
    %c0_54 = arith.constant 0 : index
    %c0_55 = arith.constant 0 : index
    %c0_56 = arith.constant 0 : index
    %54 = vector.load %arg6[%c1_53, %c0_54, %c0_55, %c0_56] : memref<3x3x4x4xbf16, #tpu.memory_space<vmem>>, vector<1x1x4x4xbf16>
    %55 = vector.shape_cast %54 : vector<1x1x4x4xbf16> to vector<4x4xbf16>
    %cst_57 = arith.constant dense<0.000000e+00> : vector<64x4xf32>
    %56 = tpu.matmul %53, %55, %cst_57 {dimension_numbers = #tpu.dot_dimension_numbers<[1], [0], [0], [1], [0, 0, 1, 1], [], []>} : vector<64x4xbf16>, vector<4x4xbf16>, vector<64x4xf32> -> vector<64x4xf32>
    %57 = arith.addf %49, %56 : vector<64x4xf32>
    %58 = vector.extract_strided_slice %51 {offsets = [0, 1, 0], sizes = [8, 8, 4], strides = [1, 1, 1]} : vector<8x9x4xbf16> to vector<8x8x4xbf16>
    %59 = vector.shape_cast %58 : vector<8x8x4xbf16> to vector<64x4xbf16>
    %c1_58 = arith.constant 1 : index
    %c2_59 = arith.constant 2 : index
    %c0_60 = arith.constant 0 : index
    %c0_61 = arith.constant 0 : index
    %60 = vector.load %arg6[%c1_58, %c2_59, %c0_60, %c0_61] : memref<3x3x4x4xbf16, #tpu.memory_space<vmem>>, vector<1x1x4x4xbf16>
    %61 = vector.shape_cast %60 : vector<1x1x4x4xbf16> to vector<4x4xbf16>
    %cst_62 = arith.constant dense<0.000000e+00> : vector<64x4xf32>
    %62 = tpu.matmul %59, %61, %cst_62 {dimension_numbers = #tpu.dot_dimension_numbers<[1], [0], [0], [1], [0, 0, 1, 1], [], []>} : vector<64x4xbf16>, vector<4x4xbf16>, vector<64x4xf32> -> vector<64x4xf32>
    %63 = arith.addf %57, %62 : vector<64x4xf32>
    %c0_63 = arith.constant 0 : index
    %c3 = arith.constant 3 : index
    %c0_64 = arith.constant 0 : index
    %c0_65 = arith.constant 0 : index
    %c0_66 = arith.constant 0 : index
    %64 = vector.load %arg4[%c0_63, %c3, %c0_64, %c0_65, %c0_66] : memref<1x4x8x9x4xbf16, #tpu.memory_space<vmem>>, vector<1x1x8x9x4xbf16>
    %65 = vector.shape_cast %64 : vector<1x1x8x9x4xbf16> to vector<8x9x4xbf16>
    %66 = vector.extract_strided_slice %65 {offsets = [0, 0, 0], sizes = [8, 8, 4], strides = [1, 1, 1]} : vector<8x9x4xbf16> to vector<8x8x4xbf16>
    %67 = vector.shape_cast %66 : vector<8x8x4xbf16> to vector<64x4xbf16>
    %c1_67 = arith.constant 1 : index
    %c1_68 = arith.constant 1 : index
    %c0_69 = arith.constant 0 : index
    %c0_70 = arith.constant 0 : index
    %68 = vector.load %arg6[%c1_67, %c1_68, %c0_69, %c0_70] : memref<3x3x4x4xbf16, #tpu.memory_space<vmem>>, vector<1x1x4x4xbf16>
    %69 = vector.shape_cast %68 : vector<1x1x4x4xbf16> to vector<4x4xbf16>
    %cst_71 = arith.constant dense<0.000000e+00> : vector<64x4xf32>
    %70 = tpu.matmul %67, %69, %cst_71 {dimension_numbers = #tpu.dot_dimension_numbers<[1], [0], [0], [1], [0, 0, 1, 1], [], []>} : vector<64x4xbf16>, vector<4x4xbf16>, vector<64x4xf32> -> vector<64x4xf32>
    %71 = arith.addf %63, %70 : vector<64x4xf32>
    %c0_72 = arith.constant 0 : index
    %c0_73 = arith.constant 0 : index
    %72 = vector.load %arg9[%c0_72, %c0_73] : memref<64x4xf32, #tpu.memory_space<vmem>>, vector<64x4xf32>
    %73 = arith.addf %72, %71 : vector<64x4xf32>
    %c0_74 = arith.constant 0 : index
    %c0_75 = arith.constant 0 : index
    %74 = vector.load %arg9[%c0_74, %c0_75] : memref<64x4xf32, #tpu.memory_space<vmem>>, vector<64x4xf32>
    tpu.vector_store %arg9[%c0_74, %c0_75], %73 {strides = array<i32>} : memref<64x4xf32, #tpu.memory_space<vmem>>, vector<64x4xf32>,
    %c0_i32_76 = arith.constant 0 : i32
    %75 = arith.cmpi eq, %arg3, %c0_i32_76 : i32
    %76 = arith.extui %75 : i1 to i32
    %c0_i32_77 = arith.constant 0 : i32
    %77 = arith.cmpi ne, %76, %c0_i32_77 : i32
    scf.if %77 {
      %c0_78 = arith.constant 0 : index
      %c0_79 = arith.constant 0 : index
      %78 = vector.load %arg9[%c0_78, %c0_79] : memref<64x4xf32, #tpu.memory_space<vmem>>, vector<64x4xf32>
      %c0_80 = arith.constant 0 : index
      %c0_81 = arith.constant 0 : index
      %79 = vector.load %arg7[%c0_80, %c0_81] : memref<1x4xf32, #tpu.memory_space<vmem>>, vector<1x4xf32>
      %80 = vector.broadcast %79 : vector<1x4xf32> to vector<64x4xf32>
      %81 = arith.addf %78, %80 : vector<64x4xf32>
      %c0_82 = arith.constant 0 : index
      %c0_83 = arith.constant 0 : index
      %c0_84 = arith.constant 0 : index
      %82 = vector.load %arg8[%c0_82, %c0_83, %c0_84] : memref<1x64x4xf32, #tpu.memory_space<vmem>>, vector<1x64x4xf32>
      %83 = vector.shape_cast %82 : vector<1x64x4xf32> to vector<64x4xf32>
      %84 = vector.shape_cast %81 : vector<64x4xf32> to vector<1x64x4xf32>
      tpu.vector_store %arg8[%c0_82, %c0_83, %c0_84], %84 {strides = array<i32>} : memref<1x64x4xf32, #tpu.memory_space<vmem>>, vector<1x64x4xf32>,
    } else {
    }
    return
  }
  func.func @transform_0(%arg0: i32, %arg1: i32, %arg2: i32, %arg3: i32) -> (i32, i32, i32, i32, i32) {
    %c0_i32 = arith.constant 0 : i32
    %c0_i32_0 = arith.constant 0 : i32
    %c0_i32_1 = arith.constant 0 : i32
    return %arg0, %c0_i32, %arg1, %c0_i32_0, %arg3 : i32, i32, i32, i32, i32
  }
  func.func @transform_1(%arg0: i32, %arg1: i32, %arg2: i32, %arg3: i32) -> (i32, i32, i32, i32, i32) {
    %c8_i32 = arith.constant 8 : i32
    %0 = arith.muli %arg1, %c8_i32 : i32
    %c8_i32_0 = arith.constant 8 : i32
    %1 = arith.addi %0, %c8_i32_0 : i32
    %c0_i32 = arith.constant 0 : i32
    %c0_i32_1 = arith.constant 0 : i32
    %c0_i32_2 = arith.constant 0 : i32
    return %arg0, %c0_i32, %1, %c0_i32_1, %arg3 : i32, i32, i32, i32, i32
  }
  func.func @transform_2(%arg0: i32, %arg1: i32, %arg2: i32, %arg3: i32) -> (i32, i32, i32, i32) {
    %c0_i32 = arith.constant 0 : i32
    %c0_i32_0 = arith.constant 0 : i32
    %c0_i32_1 = arith.constant 0 : i32
    return %c0_i32, %c0_i32_0, %arg3, %arg2 : i32, i32, i32, i32
  }
  func.func @transform_3(%arg0: i32, %arg1: i32, %arg2: i32, %arg3: i32) -> (i32, i32) {
    %c0_i32 = arith.constant 0 : i32
    %c0_i32_0 = arith.constant 0 : i32
    return %c0_i32, %arg2 : i32, i32
  }
  func.func @transform_4(%arg0: i32, %arg1: i32, %arg2: i32, %arg3: i32) -> (i32, i32, i32) {
    %c0_i32 = arith.constant 0 : i32
    return %arg0, %arg1, %arg2 : i32, i32, i32
  }
}

</mosaic_0001>

<llo_original>
// kernel: tpu_custom_call.1
$region0: #{tpu_custom_call.1}
  #allocation0 [shape = 'u32[]', space=smem, size = 0x4, offset = 0x4, fixed_abs, tag = 'smem constant byte address 0x4 - core index']
  #allocation1 [shape = 'u32[144,128]{1,0:T(1,128)}', space=vmem, size = 0x12000, scoped, tag = 'internal scratch']
  #allocation2 [shape = 'f32[64,4]{1,0:T(8,128)}', space=vmem, size = 0x8000, scoped, tag = 'scratch operand']
  %s0 = inlined_call_operand.vmem [shape: bf16[2,4,9,9,4], index: 0, kind: input, shape index: {}]
  %s1 = inlined_call_operand.vmem [shape: bf16[2,4,9,9,4], index: 1, kind: input, shape index: {}]
  %s2 = inlined_call_operand.vmem [shape: bf16[3,3,4,4], index: 2, kind: input, shape index: {}]
  %s3 = inlined_call_operand.vmem [shape: f32[1,4], index: 3, kind: input, shape index: {}]
  %s4 = inlined_call_operand.vmem [shape: f32[2,64,4], index: 4, kind: output, shape index: {}]
  %s5 = sld [smem:[#allocation0]]
  $region160: #{tpu_custom_call.1} parent=0
    _
  %s7 = ssub.s32 1, %s5
  %s8 = scalar_select 0, %s7, %s5
  $region1: #{tpu_custom_call.1} parent=0
    #allocation3 [shape = 'u8[262144]{0}', space=vmem, size = 0x40000, scoped, tag = 'input window, operand 0']
    #allocation4 [shape = 'u8[32768]{0}', space=vmem, size = 0x8000, scoped, tag = 'input window, operand 1']
    loop: start=0, step=1, limit=4
    $region2: #{tpu_custom_call.1} parent=1 // loop_pre_header
      _
    $region3: #{tpu_custom_call.1} parent=1 // loop_header
      %s10 = sphi 0, %s14
      %p11 = scmp.ge.s32.totalorder %s10, 4
      %s17 = sphi 0, %s43
      %s18 = sphi 0, %s39
      %s19 = sphi 0, %s35
      %s20 = sphi 0, %s31
      %s21 = sphi 0, %s17
      %s22 = sphi 0, %s18
      %s23 = sphi 0, %s19
      %s24 = sphi 0, %s20
      %s25 = sphi 0, %s21
      %s26 = sphi 0, %s22
      %s27 = sphi 0, %s23
      %s28 = sphi 0, %s24
      %s50 = sphi 0, %s52
      %s53 = sphi 0, %s50
      %s54 = sphi 0, %s53
      %s70 = sphi 0, %s54
      %s84 = sphi 0, %s86
      %s87 = sphi 0, %s84
      %s88 = sphi 0, %s87
      %s104 = sphi 0, %s88
      %s112 = sphi 0, %s114
      %s115 = sphi 0, %s112
      %s116 = sphi 0, %s115
      %s132 = sphi 0, %s116
      %s138 = sphi 0, %s140
      %s141 = sphi 0, %s138
      %s142 = sphi 0, %s141
      %s158 = sphi 0, %s142
      %s168 = sphi 0, %s170
      %s171 = sphi 0, %s168
      %s172 = sphi 0, %s171
      %s188 = sphi 0, %s172
    $region4: #{tpu_custom_call.1} parent=1 // loop_header_branch
      %13 = sbr.rel (%p11) target = $region8
    $region5: #{tpu_custom_call.1} parent=1 // loop_body
      %s15 = ssub.s32 %s10, 1
      %s16 = ssub.s32 %s10, 2
      %s29 = sadd.s32 1, %s20
      %p30 = scmp.ge.s32.totalorder %s29, 1
      %s31 = scalar_select %p30, 0, %s29
      %s32 = sadd.s32 1, %s19
      %s33 = scalar_select %p30, %s32, %s19
      %p34 = scmp.ge.s32.totalorder %s33, 1
      %s35 = scalar_select %p34, 0, %s33
      %s36 = sadd.s32 1, %s18
      %s37 = scalar_select %p34, %s36, %s18
      %p38 = scmp.ge.s32.totalorder %s37, 1
      %s39 = scalar_select %p38, 0, %s37
      %s40 = sadd.s32 1, %s17
      %s41 = scalar_select %p38, %s40, %s17
      %p42 = scmp.ge.s32.totalorder %s41, 2
      %s43 = scalar_select %p42, 0, %s41
      %s44 = ssub.s32 %s17, %s43
      %s45 = ssub.s32 %s18, %s39
      %s46 = sor.u32 %s44, %s45
      %s47 = ssub.s32 %s20, %s31
      %s48 = sor.u32 %s46, %s47
      %p49 = scmp.eq.s32.totalorder %s48, 0
      %s51 = sadd.s32 %s50, 1
      %s52 = scalar_select %p49, %s50, %s51
      %p55 = pneg %p49
      %p56 = scmp.eq.s32.totalorder %s10, 1
      %p57 = por %p55, %p56
      %p58 = scmp.ne.s32.totalorder %s50, %s53
      %p59 = scmp.eq.s32.totalorder %s10, 0
      %p60 = por %p58, %p59
      %p61 = scmp.ne.s32.totalorder %s50, %s53
      %p62 = scmp.eq.s32.totalorder %s15, 1
      %p63 = por %p61, %p62
      %p64 = scmp.ne.s32.totalorder %s53, %s54
      %p65 = scmp.eq.s32.totalorder %s15, 0
      %p66 = por %p64, %p65
      %p67 = scmp.ne.s32.totalorder %s53, %s54
      %p68 = scmp.eq.s32.totalorder %s16, 1
      %p69 = por %p67, %p68
      %p71 = scmp.ne.s32.totalorder %s54, %s70
      %p72 = scmp.eq.s32.totalorder %s16, 0
      %p73 = por %p71, %p72
      %s74 = smul.u32 %s18, 8
      %s75 = sadd.s32 %s74, 8
      %s76 = smul.u32 %s39, 8
      %s77 = sadd.s32 %s76, 8
      %s78 = ssub.s32 %s17, %s43
      %s79 = ssub.s32 %s75, %s77
      %s80 = sor.u32 %s78, %s79
      %s81 = ssub.s32 %s20, %s31
      %s82 = sor.u32 %s80, %s81
      %p83 = scmp.eq.s32.totalorder %s82, 0
      %s85 = sadd.s32 %s84, 1
      %s86 = scalar_select %p83, %s84, %s85
      %p89 = pneg %p83
      %p90 = scmp.eq.s32.totalorder %s10, 1
      %p91 = por %p89, %p90
      %p92 = scmp.ne.s32.totalorder %s84, %s87
      %p93 = scmp.eq.s32.totalorder %s10, 0
      %p94 = por %p92, %p93
      %p95 = scmp.ne.s32.totalorder %s84, %s87
      %p96 = scmp.eq.s32.totalorder %s15, 1
      %p97 = por %p95, %p96
      %p98 = scmp.ne.s32.totalorder %s87, %s88
      %p99 = scmp.eq.s32.totalorder %s15, 0
      %p100 = por %p98, %p99
      %p101 = scmp.ne.s32.totalorder %s87, %s88
      %p102 = scmp.eq.s32.totalorder %s16, 1
      %p103 = por %p101, %p102
      %p105 = scmp.ne.s32.totalorder %s88, %s104
      %p106 = scmp.eq.s32.totalorder %s16, 0
      %p107 = por %p105, %p106
      %s108 = ssub.s32 %s20, %s31
      %s109 = ssub.s32 %s19, %s35
      %s110 = sor.u32 %s108, %s109
      %p111 = scmp.eq.s32.totalorder %s110, 0
      %s113 = sadd.s32 %s112, 1
      %s114 = scalar_select %p111, %s112, %s113
      %p117 = pneg %p111
      %p118 = scmp.eq.s32.totalorder %s10, 1
      %p119 = por %p117, %p118
      %p120 = scmp.ne.s32.totalorder %s112, %s115
      %p121 = scmp.eq.s32.totalorder %s10, 0
      %p122 = por %p120, %p121
      %p123 = scmp.ne.s32.totalorder %s112, %s115
      %p124 = scmp.eq.s32.totalorder %s15, 1
      %p125 = por %p123, %p124
      %p126 = scmp.ne.s32.totalorder %s115, %s116
      %p127 = scmp.eq.s32.totalorder %s15, 0
      %p128 = por %p126, %p127
      %p129 = scmp.ne.s32.totalorder %s115, %s116
      %p130 = scmp.eq.s32.totalorder %s16, 1
      %p131 = por %p129, %p130
      %p133 = scmp.ne.s32.totalorder %s116, %s132
      %p134 = scmp.eq.s32.totalorder %s16, 0
      %p135 = por %p133, %p134
      %s136 = ssub.s32 %s19, %s35
      %p137 = scmp.eq.s32.totalorder %s136, 0
      %s139 = sadd.s32 %s138, 1
      %s140 = scalar_select %p137, %s138, %s139
      %p143 = pneg %p137
      %p144 = scmp.eq.s32.totalorder %s10, 1
      %p145 = por %p143, %p144
      %p146 = scmp.ne.s32.totalorder %s138, %s141
      %p147 = scmp.eq.s32.totalorder %s10, 0
      %p148 = por %p146, %p147
      %p149 = scmp.ne.s32.totalorder %s138, %s141
      %p150 = scmp.eq.s32.totalorder %s15, 1
      %p151 = por %p149, %p150
      %p152 = scmp.ne.s32.totalorder %s141, %s142
      %p153 = scmp.eq.s32.totalorder %s15, 0
      %p154 = por %p152, %p153
      %p155 = scmp.ne.s32.totalorder %s141, %s142
      %p156 = scmp.eq.s32.totalorder %s16, 1
      %p157 = por %p155, %p156
      %p159 = scmp.ne.s32.totalorder %s142, %s158
      %p160 = scmp.eq.s32.totalorder %s16, 0
      %p161 = por %p159, %p160
      %s162 = ssub.s32 %s17, %s43
      %s163 = ssub.s32 %s18, %s39
      %s164 = sor.u32 %s162, %s163
      %s165 = ssub.s32 %s19, %s35
      %s166 = sor.u32 %s164, %s165
      %p167 = scmp.eq.s32.totalorder %s166, 0
      %s169 = sadd.s32 %s168, 1
      %s170 = scalar_select %p167, %s168, %s169
      %p173 = pneg %p167
      %p174 = scmp.eq.s32.totalorder %s10, 1
      %p175 = por %p173, %p174
      %p176 = scmp.ne.s32.totalorder %s168, %s171
      %p177 = scmp.eq.s32.totalorder %s10, 0
      %p178 = por %p176, %p177
      %p179 = scmp.ne.s32.totalorder %s168, %s171
      %p180 = scmp.eq.s32.totalorder %s15, 1
      %p181 = por %p179, %p180
      %p182 = scmp.ne.s32.totalorder %s171, %s172
      %p183 = scmp.eq.s32.totalorder %s15, 0
      %p184 = por %p182, %p183
      %p185 = scmp.ne.s32.totalorder %s171, %s172
      %p186 = scmp.eq.s32.totalorder %s16, 1
      %p187 = por %p185, %p186
      %p189 = scmp.ne.s32.totalorder %s172, %s188
      %p190 = scmp.eq.s32.totalorder %s16, 0
      %p191 = por %p189, %p190
      %p192 = scmp.le.s32.totalorder 1, %s10
      %p193 = scmp.lt.s32.totalorder %s10, 3
      %p194 = pnand %p192, %p193
      %p195 = pneg %p194
      // Predicated region
      $region9: #{tpu_custom_call.1} parent=5 // pred_check
        _
      $region10: #{tpu_custom_call.1} parent=5 // pred_check_branch
        %197 = sbr.rel (%p194) target = $region12
      $region11: #{tpu_custom_call.1} parent=5 // pred_region
        %s198 = ssub.s32 %s10, 1
        // Predicated region
        $region13: #{tpu_custom_call.1} parent=11 // pred_check
          %p199 = pneg %p128
        $region14: #{tpu_custom_call.1} parent=11 // pred_check_branch
          %201 = sbr.rel (%p199) target = $region16
        $region15: #{tpu_custom_call.1} parent=11 // pred_region
          %p202 = scmp.lt.s32.totalorder %s24, 0
          %s203 = scalar_select %p202, %s24, 0
          %p204 = scmp.lt.s32.totalorder %s23, 0
          %s205 = scalar_select %p204, %s23, 0
          %s206 = sadd.s32 %s205, %s203
          %s207 = smul.addr %s206, 2
          %s208 = scalar_lea.vmem %s2, %s207
        $region16: #{tpu_custom_call.1} parent=11 // pred_fallthru
          _
        // Predicated region
        $region17: #{tpu_custom_call.1} parent=11 // pred_check
          %p209 = pneg %p154
        $region18: #{tpu_custom_call.1} parent=11 // pred_check_branch
          %211 = sbr.rel (%p209) target = $region20
        $region19: #{tpu_custom_call.1} parent=11 // pred_region
          %p212 = scmp.lt.s32.totalorder %s23, 0
          %s213 = scalar_select %p212, %s23, 0
          %s214 = scalar_lea.vmem %s3, %s213
        $region20: #{tpu_custom_call.1} parent=11 // pred_fallthru
          _
      $region12: #{tpu_custom_call.1} parent=5 // pred_fallthru
        _
      %p215 = scmp.lt.s32.totalorder %s10, 2
      // Predicated region
      $region21: #{tpu_custom_call.1} parent=5 // pred_check
        %p216 = pneg %p215
      $region22: #{tpu_custom_call.1} parent=5 // pred_check_branch
        %218 = sbr.rel (%p216) target = $region24
      $region23: #{tpu_custom_call.1} parent=5 // pred_region
        // Predicated region
        $region25: #{tpu_custom_call.1} parent=23 // pred_check
          %p219 = pneg %p60
        $region26: #{tpu_custom_call.1} parent=23 // pred_check_branch
          %221 = sbr.rel (%p219) target = $region28
        $region27: #{tpu_custom_call.1} parent=23 // pred_region
          %s222 = sand.u32 %s50, 1
          %s223 = sand.u32 %s50, 1
          %s224 = smul.addr %s223, 256
          %s225 = scalar_lea.vmem [#allocation3], %s224
          %s226 = smul.u32 8, %s18
          %s227 = ssub.s32 9, %s226
          %p228 = scmp.lt.s32.totalorder %s227, 8
          %s229 = scalar_select %p228, %s227, 8
          %s230 = smul.u32 256, %s229
          %s231 = smul.u32 %s230, 2
          %p232 = scmp.ne.s32.totalorder 0, %s231
          %s233 = smul.addr %s226, 2
          %s234 = sadd.s32 %s20, %s233
          %s235 = smul.addr %s17, 72
          %s236 = sadd.s32 %s234, %s235
          %s237 = smul.addr %s236, 4
          %s238 = scalar_lea.vmem %s0, %s237
          %s239 = smul.u32 %s229, 2
          // Predicated region
          $region29: #{tpu_custom_call.1} parent=27 // pred_check
            %p240 = pneg %p232
          $region30: #{tpu_custom_call.1} parent=27 // pred_check_branch
            %242 = sbr.rel (%p240) target = $region32
          $region31: #{tpu_custom_call.1} parent=27 // pred_region
            // Predicated region
            $region33: #{tpu_custom_call.1} parent=31 // pred_check
              _
            $region34: #{tpu_custom_call.1} parent=31 // pred_check_branch
              %244 = sbr.rel target = $region36
            $region35: #{tpu_custom_call.1} parent=31 // pred_region
              // Predicated region
              $region55: #{tpu_custom_call.1} parent=35 // pred_check
                _
              $region56: #{tpu_custom_call.1} parent=35 // pred_check_branch
                %425 = sbr.rel (0) target = $region58
              $region57: #{tpu_custom_call.1} parent=35 // pred_region
                %s426 = sshrl.u32 %s239, 4
                // While loop
                $region59: #{tpu_custom_call.1} parent=57 // loop_pre_header
                  _
                $region60: #{tpu_custom_call.1} parent=57 // loop_header
                  %s428 = sphi 0, %s430
                  %p429 = scmp.ge.s32.totalorder %s428, %s426
                  %s433 = sphi 0, %s438
                  %s434 = sphi %s238, %s441
                  %s435 = sphi %s225, %s442
                $region61: #{tpu_custom_call.1} parent=57 // loop_header_branch
                  %432 = sbr.rel (%p429) target = $region65
                $region62: #{tpu_custom_call.1} parent=57 // loop_body
                  %s436 = sadd.s32 1, %s433
                  %p437 = scmp.ge.s32.totalorder %s436, %s426
                  %s438 = scalar_select %p437, 0, %s436
                  %s439 = smul.u32 %s438, 64
                  %s440 = smul.u32 %s438, 64
                  %s441 = scalar_lea.vmem %s238, %s439
                  %s442 = scalar_lea.vmem %s225, %s440 [#allocation3]
                $region63: #{tpu_custom_call.1} parent=57 // loop_footer
                  %s430 = sadd.s32 %s428, 1
                $region64: #{tpu_custom_call.1} parent=57 // loop_footer_branch
                  %427 = sbr.rel target = $region60
                $region65: #{tpu_custom_call.1} parent=57 // loop_exit
                  _
                %s443 = sshrl.u32 %s239, 4
                %s444 = sand.u32 %s239, 15
                %s445 = smul.u32 %s443, 16
                %s446 = smul.u32 4, %s445
                %s447 = scalar_lea.vmem %s238, %s446
                %s448 = smul.u32 4, %s445
                %s449 = scalar_lea.vmem %s225, %s448 [#allocation3]
                // While loop
                $region66: #{tpu_custom_call.1} parent=57 // loop_pre_header
                  _
                $region67: #{tpu_custom_call.1} parent=57 // loop_header
                  %s451 = sphi 0, %s453
                  %p452 = scmp.ge.s32.totalorder %s451, %s444
                  %s456 = sphi 0, %s461
                  %s457 = sphi %s447, %s464
                  %s458 = sphi %s449, %s465
                $region68: #{tpu_custom_call.1} parent=57 // loop_header_branch
                  %455 = sbr.rel (%p452) target = $region72
                $region69: #{tpu_custom_call.1} parent=57 // loop_body
                  %s459 = sadd.s32 1, %s456
                  %p460 = scmp.ge.s32.totalorder %s459, %s444
                  %s461 = scalar_select %p460, 0, %s459
                  %s462 = smul.u32 %s461, 4
                  %s463 = smul.u32 %s461, 4
                  %s464 = scalar_lea.vmem %s447, %s462
                  %s465 = scalar_lea.vmem %s449, %s463 [#allocation3]
                $region70: #{tpu_custom_call.1} parent=57 // loop_footer
                  %s453 = sadd.s32 %s451, 1
                $region71: #{tpu_custom_call.1} parent=57 // loop_footer_branch
                  %450 = sbr.rel target = $region67
                $region72: #{tpu_custom_call.1} parent=57 // loop_exit
                  _
                %s467 = sshrl.u32 %s239, 4
                // While loop
                $region73: #{tpu_custom_call.1} parent=57 // loop_pre_header
                  _
                $region74: #{tpu_custom_call.1} parent=57 // loop_header
                  %s469 = sphi 0, %s471
                  %p470 = scmp.ge.s32.totalorder %s469, %s467
                  %s474 = sphi 0, %s607
                  %s475 = sphi %s238, %s610
                  %s476 = sphi %s225, %s611
                $region75: #{tpu_custom_call.1} parent=57 // loop_header_branch
                  %473 = sbr.rel (%p470) target = $region79
                $region76: #{tpu_custom_call.1} parent=57 // loop_body
                  %v477 = vld [vmem:[%s475] sm:$0xf]
                  %478 = vst [vmem:[%s476] sm:$0xf] %v477
                  %v479 = vld [vmem:[%s475 + $0x4] sm:$0xf]
                  %480 = vst [vmem:[%s476 + $0x4] sm:$0xf] %v479
                  %v481 = vld [vmem:[%s475 + $0x8] sm:$0xf]
                  %482 = vst [vmem:[%s476 + $0x8] sm:$0xf] %v481
                  %v483 = vld [vmem:[%s475 + $0xc] sm:$0xf]
                  %484 = vst [vmem:[%s476 + $0xc] sm:$0xf] %v483
                  %v485 = vld [vmem:[%s475 + $0x10] sm:$0xf]
                  %486 = vst [vmem:[%s476 + $0x10] sm:$0xf] %v485
                  %v487 = vld [vmem:[%s475 + $0x14] sm:$0xf]
                  %488 = vst [vmem:[%s476 + $0x14] sm:$0xf] %v487
                  %v489 = vld [vmem:[%s475 + $0x18] sm:$0xf]
                  %490 = vst [vmem:[%s476 + $0x18] sm:$0xf] %v489
                  %v491 = vld [vmem:[%s475 + $0x1c] sm:$0xf]
                  %492 = vst [vmem:[%s476 + $0x1c] sm:$0xf] %v491
                  %v493 = vld [vmem:[%s475 + $0x20] sm:$0xf]
                  %494 = vst [vmem:[%s476 + $0x20] sm:$0xf] %v493
                  %v495 = vld [vmem:[%s475 + $0x24] sm:$0xf]
                  %496 = vst [vmem:[%s476 + $0x24] sm:$0xf] %v495
                  %v497 = vld [vmem:[%s475 + $0x28] sm:$0xf]
                  %498 = vst [vmem:[%s476 + $0x28] sm:$0xf] %v497
                  %v499 = vld [vmem:[%s475 + $0x2c] sm:$0xf]
                  %500 = vst [vmem:[%s476 + $0x2c] sm:$0xf] %v499
                  %v501 = vld [vmem:[%s475 + $0x30] sm:$0xf]
                  %502 = vst [vmem:[%s476 + $0x30] sm:$0xf] %v501
                  %v503 = vld [vmem:[%s475 + $0x34] sm:$0xf]
                  %504 = vst [vmem:[%s476 + $0x34] sm:$0xf] %v503
                  %v505 = vld [vmem:[%s475 + $0x38] sm:$0xf]
                  %506 = vst [vmem:[%s476 + $0x38] sm:$0xf] %v505
                  %v507 = vld [vmem:[%s475 + $0x3c] sm:$0xf]
                  %508 = vst [vmem:[%s476 + $0x3c] sm:$0xf] %v507
                  %v509 = vld [vmem:[%s475 + $0x48] sm:$0xf]
                  %510 = vst [vmem:[%s476 + $0x40] sm:$0xf] %v509
                  %v511 = vld [vmem:[%s475 + $0x4c] sm:$0xf]
                  %512 = vst [vmem:[%s476 + $0x44] sm:$0xf] %v511
                  %v513 = vld [vmem:[%s475 + $0x50] sm:$0xf]
                  %514 = vst [vmem:[%s476 + $0x48] sm:$0xf] %v513
                  %v515 = vld [vmem:[%s475 + $0x54] sm:$0xf]
                  %516 = vst [vmem:[%s476 + $0x4c] sm:$0xf] %v515
                  %v517 = vld [vmem:[%s475 + $0x58] sm:$0xf]
                  %518 = vst [vmem:[%s476 + $0x50] sm:$0xf] %v517
                  %v519 = vld [vmem:[%s475 + $0x5c] sm:$0xf]
                  %520 = vst [vmem:[%s476 + $0x54] sm:$0xf] %v519
                  %v521 = vld [vmem:[%s475 + $0x60] sm:$0xf]
                  %522 = vst [vmem:[%s476 + $0x58] sm:$0xf] %v521
                  %v523 = vld [vmem:[%s475 + $0x64] sm:$0xf]
                  %524 = vst [vmem:[%s476 + $0x5c] sm:$0xf] %v523
                  %v525 = vld [vmem:[%s475 + $0x68] sm:$0xf]
                  %526 = vst [vmem:[%s476 + $0x60] sm:$0xf] %v525
                  %v527 = vld [vmem:[%s475 + $0x6c] sm:$0xf]
                  %528 = vst [vmem:[%s476 + $0x64] sm:$0xf] %v527
                  %v529 = vld [vmem:[%s475 + $0x70] sm:$0xf]
                  %530 = vst [vmem:[%s476 + $0x68] sm:$0xf] %v529
                  %v531 = vld [vmem:[%s475 + $0x74] sm:$0xf]
                  %532 = vst [vmem:[%s476 + $0x6c] sm:$0xf] %v531
                  %v533 = vld [vmem:[%s475 + $0x78] sm:$0xf]
                  %534 = vst [vmem:[%s476 + $0x70] sm:$0xf] %v533
                  %v535 = vld [vmem:[%s475 + $0x7c] sm:$0xf]
                  %536 = vst [vmem:[%s476 + $0x74] sm:$0xf] %v535
                  %v537 = vld [vmem:[%s475 + $0x80] sm:$0xf]
                  %538 = vst [vmem:[%s476 + $0x78] sm:$0xf] %v537
                  %v539 = vld [vmem:[%s475 + $0x84] sm:$0xf]
                  %540 = vst [vmem:[%s476 + $0x7c] sm:$0xf] %v539
                  %v541 = vld [vmem:[%s475 + $0x90] sm:$0xf]
                  %542 = vst [vmem:[%s476 + $0x80] sm:$0xf] %v541
                  %v543 = vld [vmem:[%s475 + $0x94] sm:$0xf]
                  %544 = vst [vmem:[%s476 + $0x84] sm:$0xf] %v543
                  %v545 = vld [vmem:[%s475 + $0x98] sm:$0xf]
                  %546 = vst [vmem:[%s476 + $0x88] sm:$0xf] %v545
                  %v547 = vld [vmem:[%s475 + $0x9c] sm:$0xf]
                  %548 = vst [vmem:[%s476 + $0x8c] sm:$0xf] %v547
                  %v549 = vld [vmem:[%s475 + $0xa0] sm:$0xf]
                  %550 = vst [vmem:[%s476 + $0x90] sm:$0xf] %v549
                  %v551 = vld [vmem:[%s475 + $0xa4] sm:$0xf]
                  %552 = vst [vmem:[%s476 + $0x94] sm:$0xf] %v551
                  %v553 = vld [vmem:[%s475 + $0xa8] sm:$0xf]
                  %554 = vst [vmem:[%s476 + $0x98] sm:$0xf] %v553
                  %v555 = vld [vmem:[%s475 + $0xac] sm:$0xf]
                  %556 = vst [vmem:[%s476 + $0x9c] sm:$0xf] %v555
                  %v557 = vld [vmem:[%s475 + $0xb0] sm:$0xf]
                  %558 = vst [vmem:[%s476 + $0xa0] sm:$0xf] %v557
                  %v559 = vld [vmem:[%s475 + $0xb4] sm:$0xf]
                  %560 = vst [vmem:[%s476 + $0xa4] sm:$0xf] %v559
                  %v561 = vld [vmem:[%s475 + $0xb8] sm:$0xf]
                  %562 = vst [vmem:[%s476 + $0xa8] sm:$0xf] %v561
                  %v563 = vld [vmem:[%s475 + $0xbc] sm:$0xf]
                  %564 = vst [vmem:[%s476 + $0xac] sm:$0xf] %v563
                  %v565 = vld [vmem:[%s475 + $0xc0] sm:$0xf]
                  %566 = vst [vmem:[%s476 + $0xb0] sm:$0xf] %v565
                  %v567 = vld [vmem:[%s475 + $0xc4] sm:$0xf]
                  %568 = vst [vmem:[%s476 + $0xb4] sm:$0xf] %v567
                  %v569 = vld [vmem:[%s475 + $0xc8] sm:$0xf]
                  %570 = vst [vmem:[%s476 + $0xb8] sm:$0xf] %v569
                  %v571 = vld [vmem:[%s475 + $0xcc] sm:$0xf]
                  %572 = vst [vmem:[%s476 + $0xbc] sm:$0xf] %v571
                  %v573 = vld [vmem:[%s475 + $0xd8] sm:$0xf]
                  %574 = vst [vmem:[%s476 + $0xc0] sm:$0xf] %v573
                  %v575 = vld [vmem:[%s475 + $0xdc] sm:$0xf]
                  %576 = vst [vmem:[%s476 + $0xc4] sm:$0xf] %v575
                  %v577 = vld [vmem:[%s475 + $0xe0] sm:$0xf]
                  %578 = vst [vmem:[%s476 + $0xc8] sm:$0xf] %v577
                  %v579 = vld [vmem:[%s475 + $0xe4] sm:$0xf]
                  %580 = vst [vmem:[%s476 + $0xcc] sm:$0xf] %v579
                  %v581 = vld [vmem:[%s475 + $0xe8] sm:$0xf]
                  %582 = vst [vmem:[%s476 + $0xd0] sm:$0xf] %v581
                  %v583 = vld [vmem:[%s475 + $0xec] sm:$0xf]
                  %584 = vst [vmem:[%s476 + $0xd4] sm:$0xf] %v583
                  %v585 = vld [vmem:[%s475 + $0xf0] sm:$0xf]
                  %586 = vst [vmem:[%s476 + $0xd8] sm:$0xf] %v585
                  %v587 = vld [vmem:[%s475 + $0xf4] sm:$0xf]
                  %588 = vst [vmem:[%s476 + $0xdc] sm:$0xf] %v587
                  %v589 = vld [vmem:[%s475 + $0xf8] sm:$0xf]
                  %590 = vst [vmem:[%s476 + $0xe0] sm:$0xf] %v589
                  %v591 = vld [vmem:[%s475 + $0xfc] sm:$0xf]
                  %592 = vst [vmem:[%s476 + $0xe4] sm:$0xf] %v591
                  %v593 = vld [vmem:[%s475 + $0x100] sm:$0xf]
                  %594 = vst [vmem:[%s476 + $0xe8] sm:$0xf] %v593
                  %v595 = vld [vmem:[%s475 + $0x104] sm:$0xf]
                  %596 = vst [vmem:[%s476 + $0xec] sm:$0xf] %v595
                  %v597 = vld [vmem:[%s475 + $0x108] sm:$0xf]
                  %598 = vst [vmem:[%s476 + $0xf0] sm:$0xf] %v597
                  %v599 = vld [vmem:[%s475 + $0x10c] sm:$0xf]
                  %600 = vst [vmem:[%s476 + $0xf4] sm:$0xf] %v599
                  %v601 = vld [vmem:[%s475 + $0x110] sm:$0xf]
                  %602 = vst [vmem:[%s476 + $0xf8] sm:$0xf] %v601
                  %v603 = vld [vmem:[%s475 + $0x114] sm:$0xf]
                  %604 = vst [vmem:[%s476 + $0xfc] sm:$0xf] %v603
                  %s605 = sadd.s32 1, %s474
                  %p606 = scmp.ge.s32.totalorder %s605, %s467
                  %s607 = scalar_select %p606, 0, %s605
                  %s608 = smul.u32 %s607, 64
                  %s609 = smul.u32 %s607, 64
                  %s610 = scalar_lea.vmem %s238, %s608
                  %s611 = scalar_lea.vmem %s225, %s609 [#allocation3]
                $region77: #{tpu_custom_call.1} parent=57 // loop_footer
                  %s471 = sadd.s32 %s469, 1
                $region78: #{tpu_custom_call.1} parent=57 // loop_footer_branch
                  %468 = sbr.rel target = $region74
                $region79: #{tpu_custom_call.1} parent=57 // loop_exit
                  _
                %s612 = sshrl.u32 %s239, 4
                %s613 = sand.u32 %s239, 15
                %s614 = smul.u32 %s612, 16
                %s615 = smul.u32 4, %s614
                %s616 = scalar_lea.vmem %s238, %s615
                %s617 = smul.u32 4, %s614
                %s618 = scalar_lea.vmem %s225, %s617 [#allocation3]
                // While loop
                $region80: #{tpu_custom_call.1} parent=57 // loop_pre_header
                  _
                $region81: #{tpu_custom_call.1} parent=57 // loop_header
                  %s620 = sphi 0, %s622
                  %p621 = scmp.ge.s32.totalorder %s620, %s613
                  %s625 = sphi 0, %s638
                  %s626 = sphi %s616, %s641
                  %s627 = sphi %s618, %s642
                $region82: #{tpu_custom_call.1} parent=57 // loop_header_branch
                  %624 = sbr.rel (%p621) target = $region86
                $region83: #{tpu_custom_call.1} parent=57 // loop_body
                  %v628 = vld [vmem:[%s626] sm:$0xf]
                  %629 = vst [vmem:[%s627] sm:$0xf] %v628
                  %v630 = vld [vmem:[%s626 + $0x48] sm:$0xf]
                  %631 = vst [vmem:[%s627 + $0x40] sm:$0xf] %v630
                  %v632 = vld [vmem:[%s626 + $0x90] sm:$0xf]
                  %633 = vst [vmem:[%s627 + $0x80] sm:$0xf] %v632
                  %v634 = vld [vmem:[%s626 + $0xd8] sm:$0xf]
                  %635 = vst [vmem:[%s627 + $0xc0] sm:$0xf] %v634
                  %s636 = sadd.s32 1, %s625
                  %p637 = scmp.ge.s32.totalorder %s636, %s613
                  %s638 = scalar_select %p637, 0, %s636
                  %s639 = smul.u32 %s638, 4
                  %s640 = smul.u32 %s638, 4
                  %s641 = scalar_lea.vmem %s616, %s639
                  %s642 = scalar_lea.vmem %s618, %s640 [#allocation3]
                $region84: #{tpu_custom_call.1} parent=57 // loop_footer
                  %s622 = sadd.s32 %s620, 1
                $region85: #{tpu_custom_call.1} parent=57 // loop_footer_branch
                  %619 = sbr.rel target = $region81
                $region86: #{tpu_custom_call.1} parent=57 // loop_exit
                  _
              $region58: #{tpu_custom_call.1} parent=35 // pred_fallthru
                _
            $region36: #{tpu_custom_call.1} parent=31 // pred_fallthru
              _
            // Predicated region
            $region37: #{tpu_custom_call.1} parent=31 // pred_check
              _
            $region38: #{tpu_custom_call.1} parent=31 // pred_check_branch
              %246 = sbr.rel (0) target = $region40
            $region39: #{tpu_custom_call.1} parent=31 // pred_region
              %s248 = sshrl.u32 %s239, 4
              // While loop
              $region41: #{tpu_custom_call.1} parent=39 // loop_pre_header
                _
              $region42: #{tpu_custom_call.1} parent=39 // loop_header
                %s250 = sphi 0, %s252
                %p251 = scmp.ge.s32.totalorder %s250, %s248
                %s255 = sphi 0, %s388
                %s256 = sphi %s238, %s391
                %s257 = sphi %s225, %s392
              $region43: #{tpu_custom_call.1} parent=39 // loop_header_branch
                %254 = sbr.rel (%p251) target = $region47
              $region44: #{tpu_custom_call.1} parent=39 // loop_body
                %v258 = vld [vmem:[%s256] sm:$0xf]
                %259 = vst [vmem:[%s257] sm:$0xf] %v258
                %v260 = vld [vmem:[%s256 + $0x4] sm:$0xf]
                %261 = vst [vmem:[%s257 + $0x4] sm:$0xf] %v260
                %v262 = vld [vmem:[%s256 + $0x8] sm:$0xf]
                %263 = vst [vmem:[%s257 + $0x8] sm:$0xf] %v262
                %v264 = vld [vmem:[%s256 + $0xc] sm:$0xf]
                %265 = vst [vmem:[%s257 + $0xc] sm:$0xf] %v264
                %v266 = vld [vmem:[%s256 + $0x10] sm:$0xf]
                %267 = vst [vmem:[%s257 + $0x10] sm:$0xf] %v266
                %v268 = vld [vmem:[%s256 + $0x14] sm:$0xf]
                %269 = vst [vmem:[%s257 + $0x14] sm:$0xf] %v268
                %v270 = vld [vmem:[%s256 + $0x18] sm:$0xf]
                %271 = vst [vmem:[%s257 + $0x18] sm:$0xf] %v270
                %v272 = vld [vmem:[%s256 + $0x1c] sm:$0xf]
                %273 = vst [vmem:[%s257 + $0x1c] sm:$0xf] %v272
                %v274 = vld [vmem:[%s256 + $0x20] sm:$0xf]
                %275 = vst [vmem:[%s257 + $0x20] sm:$0xf] %v274
                %v276 = vld [vmem:[%s256 + $0x24] sm:$0xf]
                %277 = vst [vmem:[%s257 + $0x24] sm:$0xf] %v276
                %v278 = vld [vmem:[%s256 + $0x28] sm:$0xf]
                %279 = vst [vmem:[%s257 + $0x28] sm:$0xf] %v278
                %v280 = vld [vmem:[%s256 + $0x2c] sm:$0xf]
                %281 = vst [vmem:[%s257 + $0x2c] sm:$0xf] %v280
                %v282 = vld [vmem:[%s256 + $0x30] sm:$0xf]
                %283 = vst [vmem:[%s257 + $0x30] sm:$0xf] %v282
                %v284 = vld [vmem:[%s256 + $0x34] sm:$0xf]
                %285 = vst [vmem:[%s257 + $0x34] sm:$0xf] %v284
                %v286 = vld [vmem:[%s256 + $0x38] sm:$0xf]
                %287 = vst [vmem:[%s257 + $0x38] sm:$0xf] %v286
                %v288 = vld [vmem:[%s256 + $0x3c] sm:$0xf]
                %289 = vst [vmem:[%s257 + $0x3c] sm:$0xf] %v288
                %v290 = vld [vmem:[%s256 + $0x48] sm:$0xf]
                %291 = vst [vmem:[%s257 + $0x40] sm:$0xf] %v290
                %v292 = vld [vmem:[%s256 + $0x4c] sm:$0xf]
                %293 = vst [vmem:[%s257 + $0x44] sm:$0xf] %v292
                %v294 = vld [vmem:[%s256 + $0x50] sm:$0xf]
                %295 = vst [vmem:[%s257 + $0x48] sm:$0xf] %v294
                %v296 = vld [vmem:[%s256 + $0x54] sm:$0xf]
                %297 = vst [vmem:[%s257 + $0x4c] sm:$0xf] %v296
                %v298 = vld [vmem:[%s256 + $0x58] sm:$0xf]
                %299 = vst [vmem:[%s257 + $0x50] sm:$0xf] %v298
                %v300 = vld [vmem:[%s256 + $0x5c] sm:$0xf]
                %301 = vst [vmem:[%s257 + $0x54] sm:$0xf] %v300
                %v302 = vld [vmem:[%s256 + $0x60] sm:$0xf]
                %303 = vst [vmem:[%s257 + $0x58] sm:$0xf] %v302
                %v304 = vld [vmem:[%s256 + $0x64] sm:$0xf]
                %305 = vst [vmem:[%s257 + $0x5c] sm:$0xf] %v304
                %v306 = vld [vmem:[%s256 + $0x68] sm:$0xf]
                %307 = vst [vmem:[%s257 + $0x60] sm:$0xf] %v306
                %v308 = vld [vmem:[%s256 + $0x6c] sm:$0xf]
                %309 = vst [vmem:[%s257 + $0x64] sm:$0xf] %v308
                %v310 = vld [vmem:[%s256 + $0x70] sm:$0xf]
                %311 = vst [vmem:[%s257 + $0x68] sm:$0xf] %v310
                %v312 = vld [vmem:[%s256 + $0x74] sm:$0xf]
                %313 = vst [vmem:[%s257 + $0x6c] sm:$0xf] %v312
                %v314 = vld [vmem:[%s256 + $0x78] sm:$0xf]
                %315 = vst [vmem:[%s257 + $0x70] sm:$0xf] %v314
                %v316 = vld [vmem:[%s256 + $0x7c] sm:$0xf]
                %317 = vst [vmem:[%s257 + $0x74] sm:$0xf] %v316
                %v318 = vld [vmem:[%s256 + $0x80] sm:$0xf]
                %319 = vst [vmem:[%s257 + $0x78] sm:$0xf] %v318
                %v320 = vld [vmem:[%s256 + $0x84] sm:$0xf]
                %321 = vst [vmem:[%s257 + $0x7c] sm:$0xf] %v320
                %v322 = vld [vmem:[%s256 + $0x90] sm:$0xf]
                %323 = vst [vmem:[%s257 + $0x80] sm:$0xf] %v322
                %v324 = vld [vmem:[%s256 + $0x94] sm:$0xf]
                %325 = vst [vmem:[%s257 + $0x84] sm:$0xf] %v324
                %v326 = vld [vmem:[%s256 + $0x98] sm:$0xf]
                %327 = vst [vmem:[%s257 + $0x88] sm:$0xf] %v326
                %v328 = vld [vmem:[%s256 + $0x9c] sm:$0xf]
                %329 = vst [vmem:[%s257 + $0x8c] sm:$0xf] %v328
                %v330 = vld [vmem:[%s256 + $0xa0] sm:$0xf]
                %331 = vst [vmem:[%s257 + $0x90] sm:$0xf] %v330
                %v332 = vld [vmem:[%s256 + $0xa4] sm:$0xf]
                %333 = vst [vmem:[%s257 + $0x94] sm:$0xf] %v332
                %v334 = vld [vmem:[%s256 + $0xa8] sm:$0xf]
                %335 = vst [vmem:[%s257 + $0x98] sm:$0xf] %v334
                %v336 = vld [vmem:[%s256 + $0xac] sm:$0xf]
                %337 = vst [vmem:[%s257 + $0x9c] sm:$0xf] %v336
                %v338 = vld [vmem:[%s256 + $0xb0] sm:$0xf]
                %339 = vst [vmem:[%s257 + $0xa0] sm:$0xf] %v338
                %v340 = vld [vmem:[%s256 + $0xb4] sm:$0xf]
                %341 = vst [vmem:[%s257 + $0xa4] sm:$0xf] %v340
                %v342 = vld [vmem:[%s256 + $0xb8] sm:$0xf]
                %343 = vst [vmem:[%s257 + $0xa8] sm:$0xf] %v342
                %v344 = vld [vmem:[%s256 + $0xbc] sm:$0xf]
                %345 = vst [vmem:[%s257 + $0xac] sm:$0xf] %v344
                %v346 = vld [vmem:[%s256 + $0xc0] sm:$0xf]
                %347 = vst [vmem:[%s257 + $0xb0] sm:$0xf] %v346
                %v348 = vld [vmem:[%s256 + $0xc4] sm:$0xf]
                %349 = vst [vmem:[%s257 + $0xb4] sm:$0xf] %v348
                %v350 = vld [vmem:[%s256 + $0xc8] sm:$0xf]
                %351 = vst [vmem:[%s257 + $0xb8] sm:$0xf] %v350
                %v352 = vld [vmem:[%s256 + $0xcc] sm:$0xf]
                %353 = vst [vmem:[%s257 + $0xbc] sm:$0xf] %v352
                %v354 = vld [vmem:[%s256 + $0xd8] sm:$0xf]
                %355 = vst [vmem:[%s257 + $0xc0] sm:$0xf] %v354
                %v356 = vld [vmem:[%s256 + $0xdc] sm:$0xf]
                %357 = vst [vmem:[%s257 + $0xc4] sm:$0xf] %v356
                %v358 = vld [vmem:[%s256 + $0xe0] sm:$0xf]
                %359 = vst [vmem:[%s257 + $0xc8] sm:$0xf] %v358
                %v360 = vld [vmem:[%s256 + $0xe4] sm:$0xf]
                %361 = vst [vmem:[%s257 + $0xcc] sm:$0xf] %v360
                %v362 = vld [vmem:[%s256 + $0xe8] sm:$0xf]
                %363 = vst [vmem:[%s257 + $0xd0] sm:$0xf] %v362
                %v364 = vld [vmem:[%s256 + $0xec] sm:$0xf]
                %365 = vst [vmem:[%s257 + $0xd4] sm:$0xf] %v364
                %v366 = vld [vmem:[%s256 + $0xf0] sm:$0xf]
                %367 = vst [vmem:[%s257 + $0xd8] sm:$0xf] %v366
                %v368 = vld [vmem:[%s256 + $0xf4] sm:$0xf]
                %369 = vst [vmem:[%s257 + $0xdc] sm:$0xf] %v368
                %v370 = vld [vmem:[%s256 + $0xf8] sm:$0xf]
                %371 = vst [vmem:[%s257 + $0xe0] sm:$0xf] %v370
                %v372 = vld [vmem:[%s256 + $0xfc] sm:$0xf]
                %373 = vst [vmem:[%s257 + $0xe4] sm:$0xf] %v372
                %v374 = vld [vmem:[%s256 + $0x100] sm:$0xf]
                %375 = vst [vmem:[%s257 + $0xe8] sm:$0xf] %v374
                %v376 = vld [vmem:[%s256 + $0x104] sm:$0xf]
                %377 = vst [vmem:[%s257 + $0xec] sm:$0xf] %v376
                %v378 = vld [vmem:[%s256 + $0x108] sm:$0xf]
                %379 = vst [vmem:[%s257 + $0xf0] sm:$0xf] %v378
                %v380 = vld [vmem:[%s256 + $0x10c] sm:$0xf]
                %381 = vst [vmem:[%s257 + $0xf4] sm:$0xf] %v380
                %v382 = vld [vmem:[%s256 + $0x110] sm:$0xf]
                %383 = vst [vmem:[%s257 + $0xf8] sm:$0xf] %v382
                %v384 = vld [vmem:[%s256 + $0x114] sm:$0xf]
                %385 = vst [vmem:[%s257 + $0xfc] sm:$0xf] %v384
                %s386 = sadd.s32 1, %s255
                %p387 = scmp.ge.s32.totalorder %s386, %s248
                %s388 = scalar_select %p387, 0, %s386
                %s389 = smul.u32 %s388, 64
                %s390 = smul.u32 %s388, 64
                %s391 = scalar_lea.vmem %s238, %s389
                %s392 = scalar_lea.vmem %s225, %s390 [#allocation3]
              $region45: #{tpu_custom_call.1} parent=39 // loop_footer
                %s252 = sadd.s32 %s250, 1
              $region46: #{tpu_custom_call.1} parent=39 // loop_footer_branch
                %249 = sbr.rel target = $region42
              $region47: #{tpu_custom_call.1} parent=39 // loop_exit
                _
              %s393 = sshrl.u32 %s239, 4
              %s394 = sand.u32 %s239, 15
              %s395 = smul.u32 %s393, 16
              %s396 = smul.u32 4, %s395
              %s397 = scalar_lea.vmem %s238, %s396
              %s398 = smul.u32 4, %s395
              %s399 = scalar_lea.vmem %s225, %s398 [#allocation3]
              // While loop
              $region48: #{tpu_custom_call.1} parent=39 // loop_pre_header
                _
              $region49: #{tpu_custom_call.1} parent=39 // loop_header
                %s401 = sphi 0, %s403
                %p402 = scmp.ge.s32.totalorder %s401, %s394
                %s406 = sphi 0, %s419
                %s407 = sphi %s397, %s422
                %s408 = sphi %s399, %s423
              $region50: #{tpu_custom_call.1} parent=39 // loop_header_branch
                %405 = sbr.rel (%p402) target = $region54
              $region51: #{tpu_custom_call.1} parent=39 // loop_body
                %v409 = vld [vmem:[%s407] sm:$0xf]
                %410 = vst [vmem:[%s408] sm:$0xf] %v409
                %v411 = vld [vmem:[%s407 + $0x48] sm:$0xf]
                %412 = vst [vmem:[%s408 + $0x40] sm:$0xf] %v411
                %v413 = vld [vmem:[%s407 + $0x90] sm:$0xf]
                %414 = vst [vmem:[%s408 + $0x80] sm:$0xf] %v413
                %v415 = vld [vmem:[%s407 + $0xd8] sm:$0xf]
                %416 = vst [vmem:[%s408 + $0xc0] sm:$0xf] %v415
                %s417 = sadd.s32 1, %s406
                %p418 = scmp.ge.s32.totalorder %s417, %s394
                %s419 = scalar_select %p418, 0, %s417
                %s420 = smul.u32 %s419, 4
                %s421 = smul.u32 %s419, 4
                %s422 = scalar_lea.vmem %s397, %s420
                %s423 = scalar_lea.vmem %s399, %s421 [#allocation3]
              $region52: #{tpu_custom_call.1} parent=39 // loop_footer
                %s403 = sadd.s32 %s401, 1
              $region53: #{tpu_custom_call.1} parent=39 // loop_footer_branch
                %400 = sbr.rel target = $region49
              $region54: #{tpu_custom_call.1} parent=39 // loop_exit
                _
            $region40: #{tpu_custom_call.1} parent=31 // pred_fallthru
              _
          $region32: #{tpu_custom_call.1} parent=27 // pred_fallthru
            _
          %643 = vnop
        $region28: #{tpu_custom_call.1} parent=23 // pred_fallthru
          _
        // Predicated region
        $region87: #{tpu_custom_call.1} parent=23 // pred_check
          %p644 = pneg %p94
        $region88: #{tpu_custom_call.1} parent=23 // pred_check_branch
          %646 = sbr.rel (%p644) target = $region90
        $region89: #{tpu_custom_call.1} parent=23 // pred_region
          %s647 = sand.u32 %s84, 1
          %s648 = sand.u32 %s84, 1
          %s649 = smul.addr %s648, 32
          %s650 = scalar_lea.vmem [#allocation4], %s649
          %s651 = smul.u32 %s18, 8
          %s652 = sadd.s32 %s651, 8
          %s653 = smul.addr %s652, 2
          %s654 = sadd.s32 %s20, %s653
          %s655 = smul.addr %s17, 72
          %s656 = sadd.s32 %s654, %s655
          %s657 = smul.addr %s656, 4
          %s658 = scalar_lea.vmem %s1, %s657
          // Predicated region
          $region91: #{tpu_custom_call.1} parent=89 // pred_check
            _
          $region92: #{tpu_custom_call.1} parent=89 // pred_check_branch
            %660 = sbr.rel (0) target = $region94
          $region93: #{tpu_custom_call.1} parent=89 // pred_region
            // Predicated region
            $region95: #{tpu_custom_call.1} parent=93 // pred_check
              _
            $region96: #{tpu_custom_call.1} parent=93 // pred_check_branch
              %662 = sbr.rel target = $region98
            $region97: #{tpu_custom_call.1} parent=93 // pred_region
              // Predicated region
              $region110: #{tpu_custom_call.1} parent=97 // pred_check
                _
              $region111: #{tpu_custom_call.1} parent=97 // pred_check_branch
                %691 = sbr.rel (0) target = $region113
              $region112: #{tpu_custom_call.1} parent=97 // pred_region
                loop: start=0, step=1, limit=1
                $region114: #{tpu_custom_call.1} parent=112 // loop_pre_header
                  _
                $region115: #{tpu_custom_call.1} parent=112 // loop_header
                  %s693 = sphi 0, %s697
                  %p694 = scmp.ge.s32.totalorder %s693, 1
                  %s698 = sphi %s658, %s658
                  %s699 = sphi %s650, %s650
                $region116: #{tpu_custom_call.1} parent=112 // loop_header_branch
                  %696 = sbr.rel (%p694) target = $region120
                $region117: #{tpu_custom_call.1} parent=112 // loop_body
                  _
                $region118: #{tpu_custom_call.1} parent=112 // loop_footer
                  %s697 = sadd.s32 1, %s693
                $region119: #{tpu_custom_call.1} parent=112 // loop_footer_branch
                  %692 = sbr.rel target = $region115
                $region120: #{tpu_custom_call.1} parent=112 // loop_exit
                  _
                loop: start=0, step=1, limit=1
                $region121: #{tpu_custom_call.1} parent=112 // loop_pre_header
                  _
                $region122: #{tpu_custom_call.1} parent=112 // loop_header
                  %s702 = sphi 0, %s706
                  %p703 = scmp.ge.s32.totalorder %s702, 1
                  %s707 = sphi %s658, %s658
                  %s708 = sphi %s650, %s650
                $region123: #{tpu_custom_call.1} parent=112 // loop_header_branch
                  %705 = sbr.rel (%p703) target = $region127
                $region124: #{tpu_custom_call.1} parent=112 // loop_body
                  %v709 = vld [vmem:[%s707] sm:$0xf]
                  %710 = vst [vmem:[%s708] sm:$0xf] %v709
                  %v711 = vld [vmem:[%s707 + $0x4] sm:$0xf]
                  %712 = vst [vmem:[%s708 + $0x4] sm:$0xf] %v711
                  %v713 = vld [vmem:[%s707 + $0x48] sm:$0xf]
                  %714 = vst [vmem:[%s708 + $0x8] sm:$0xf] %v713
                  %v715 = vld [vmem:[%s707 + $0x4c] sm:$0xf]
                  %716 = vst [vmem:[%s708 + $0xc] sm:$0xf] %v715
                  %v717 = vld [vmem:[%s707 + $0x90] sm:$0xf]
                  %718 = vst [vmem:[%s708 + $0x10] sm:$0xf] %v717
                  %v719 = vld [vmem:[%s707 + $0x94] sm:$0xf]
                  %720 = vst [vmem:[%s708 + $0x14] sm:$0xf] %v719
                  %v721 = vld [vmem:[%s707 + $0xd8] sm:$0xf]
                  %722 = vst [vmem:[%s708 + $0x18] sm:$0xf] %v721
                  %v723 = vld [vmem:[%s707 + $0xdc] sm:$0xf]
                  %724 = vst [vmem:[%s708 + $0x1c] sm:$0xf] %v723
                $region125: #{tpu_custom_call.1} parent=112 // loop_footer
                  %s706 = sadd.s32 1, %s702
                $region126: #{tpu_custom_call.1} parent=112 // loop_footer_branch
                  %701 = sbr.rel target = $region122
                $region127: #{tpu_custom_call.1} parent=112 // loop_exit
                  _
              $region113: #{tpu_custom_call.1} parent=97 // pred_fallthru
                _
            $region98: #{tpu_custom_call.1} parent=93 // pred_fallthru
              _
            // Predicated region
            $region99: #{tpu_custom_call.1} parent=93 // pred_check
              _
            $region100: #{tpu_custom_call.1} parent=93 // pred_check_branch
              %664 = sbr.rel (0) target = $region102
            $region101: #{tpu_custom_call.1} parent=93 // pred_region
              loop: start=0, step=1, limit=1
              $region103: #{tpu_custom_call.1} parent=101 // loop_pre_header
                _
              $region104: #{tpu_custom_call.1} parent=101 // loop_header
                %s667 = sphi 0, %s671
                %p668 = scmp.ge.s32.totalorder %s667, 1
                %s672 = sphi %s658, %s658
                %s673 = sphi %s650, %s650
              $region105: #{tpu_custom_call.1} parent=101 // loop_header_branch
                %670 = sbr.rel (%p668) target = $region109
              $region106: #{tpu_custom_call.1} parent=101 // loop_body
                %v674 = vld [vmem:[%s672] sm:$0xf]
                %675 = vst [vmem:[%s673] sm:$0xf] %v674
                %v676 = vld [vmem:[%s672 + $0x4] sm:$0xf]
                %677 = vst [vmem:[%s673 + $0x4] sm:$0xf] %v676
                %v678 = vld [vmem:[%s672 + $0x48] sm:$0xf]
                %679 = vst [vmem:[%s673 + $0x8] sm:$0xf] %v678
                %v680 = vld [vmem:[%s672 + $0x4c] sm:$0xf]
                %681 = vst [vmem:[%s673 + $0xc] sm:$0xf] %v680
                %v682 = vld [vmem:[%s672 + $0x90] sm:$0xf]
                %683 = vst [vmem:[%s673 + $0x10] sm:$0xf] %v682
                %v684 = vld [vmem:[%s672 + $0x94] sm:$0xf]
                %685 = vst [vmem:[%s673 + $0x14] sm:$0xf] %v684
                %v686 = vld [vmem:[%s672 + $0xd8] sm:$0xf]
                %687 = vst [vmem:[%s673 + $0x18] sm:$0xf] %v686
                %v688 = vld [vmem:[%s672 + $0xdc] sm:$0xf]
                %689 = vst [vmem:[%s673 + $0x1c] sm:$0xf] %v688
              $region107: #{tpu_custom_call.1} parent=101 // loop_footer
                %s671 = sadd.s32 1, %s667
              $region108: #{tpu_custom_call.1} parent=101 // loop_footer_branch
                %666 = sbr.rel target = $region104
              $region109: #{tpu_custom_call.1} parent=101 // loop_exit
                _
            $region102: #{tpu_custom_call.1} parent=93 // pred_fallthru
              _
          $region94: #{tpu_custom_call.1} parent=89 // pred_fallthru
            _
          %725 = vnop
        $region90: #{tpu_custom_call.1} parent=23 // pred_fallthru
          _
      $region24: #{tpu_custom_call.1} parent=5 // pred_fallthru
        _
      %p726 = scmp.le.s32.totalorder 1, %s10
      %p727 = scmp.lt.s32.totalorder %s10, 3
      %p728 = pnand %p726, %p727
      %p729 = pneg %p728
      // Predicated region
      $region128: #{tpu_custom_call.1} parent=5 // pred_check
        _
      $region129: #{tpu_custom_call.1} parent=5 // pred_check_branch
        %731 = sbr.rel (%p728) target = $region131
      $region130: #{tpu_custom_call.1} parent=5 // pred_region
        %s732 = ssub.s32 %s10, 1
        %s733 = sand.u32 %s53, 1
        %s734 = sand.u32 %s53, 1
        %s735 = smul.addr %s734, 256
        %s736 = scalar_lea.vmem [#allocation3], %s735
        // Predicated region
        $region132: #{tpu_custom_call.1} parent=130 // pred_check
          %p737 = pneg %p66
        $region133: #{tpu_custom_call.1} parent=130 // pred_check_branch
          %739 = sbr.rel (%p737) target = $region135
        $region134: #{tpu_custom_call.1} parent=130 // pred_region
          _
        $region135: #{tpu_custom_call.1} parent=130 // pred_fallthru
          _
        %s740 = sand.u32 %s87, 1
        %s741 = sand.u32 %s87, 1
        %s742 = smul.addr %s741, 32
        %s743 = scalar_lea.vmem [#allocation4], %s742
        // Predicated region
        $region136: #{tpu_custom_call.1} parent=130 // pred_check
          %p744 = pneg %p100
        $region137: #{tpu_custom_call.1} parent=130 // pred_check_branch
          %746 = sbr.rel (%p744) target = $region139
        $region138: #{tpu_custom_call.1} parent=130 // pred_region
          _
        $region139: #{tpu_custom_call.1} parent=130 // pred_fallthru
          _
        %s747 = sand.u32 %s53, 1
        %s748 = sand.u32 %s53, 1
        %s749 = smul.addr %s748, 256
        %s750 = scalar_lea.vmem [#allocation3], %s749
        %p751 = pneg %p66
        %p752 = pneg %p63
        %s753 = sand.u32 %s87, 1
        %s754 = sand.u32 %s87, 1
        %s755 = smul.addr %s754, 32
        %s756 = scalar_lea.vmem [#allocation4], %s755
        %p757 = pneg %p100
        %p758 = pneg %p97
        %p759 = scmp.lt.s32.totalorder %s24, 0
        %s760 = scalar_select %p759, %s24, 0
        %p761 = scmp.lt.s32.totalorder %s23, 0
        %s762 = scalar_select %p761, %s23, 0
        %s763 = sadd.s32 %s762, %s760
        %s764 = smul.addr %s763, 2
        %s765 = scalar_lea.vmem %s2, %s764
        %p766 = pneg %p128
        %p767 = pneg %p125
        %p768 = scmp.lt.s32.totalorder %s23, 0
        %s769 = scalar_select %p768, %s23, 0
        %s770 = scalar_lea.vmem %s3, %s769
        %p771 = pneg %p154
        %p772 = pneg %p151
        %p773 = pneg %p184
        %p774 = pneg %p181
        %s775 = smul.u32 8, %s22
        %p776 = scmp.lt.s32.totalorder %s21, 1
        %s777 = scalar_select %p776, %s21, 1
        %p778 = scmp.lt.s32.totalorder %s775, 7
        %s779 = scalar_select %p778, %s775, 7
        %p780 = scmp.lt.s32.totalorder %s23, 0
        %s781 = scalar_select %p780, %s23, 0
        %s782 = sadd.s32 %s781, %s779
        %s783 = smul.addr %s777, 8
        %s784 = sadd.s32 %s782, %s783
        %s785 = smul.addr %s784, 8
        %s786 = scalar_lea.vmem %s4, %s785
        %s787 = smul.u32 8, %s22
        %s788 = ssub.s32 9, %s787
        %p789 = scmp.lt.s32.totalorder %s788, 8
        %s790 = scalar_select %p789, %s788, 8
        %s791 = smul.u32 256, %s790
        %s792 = smul.u32 %s791, 2
        %s793 = smul.u32 %s22, 8
        %s794 = sadd.s32 %s793, 8
        %p795 = scmp.lt.s32.totalorder %s24, 0
        %s796 = scalar_select %p795, %s24, 0
        %p797 = scmp.lt.s32.totalorder %s23, 0
        %s798 = scalar_select %p797, %s23, 0
        %s799 = sadd.s32 %s798, %s796
        %s800 = smul.addr %s799, 2
        %s801 = scalar_lea.vmem %s2, %s800
        %p802 = scmp.lt.s32.totalorder %s23, 0
        %s803 = scalar_select %p802, %s23, 0
        %s804 = scalar_lea.vmem %s3, %s803
        %s805 = smul.u32 8, %s22
        %p806 = scmp.lt.s32.totalorder %s21, 1
        %s807 = scalar_select %p806, %s21, 1
        %p808 = scmp.lt.s32.totalorder %s805, 7
        %s809 = scalar_select %p808, %s805, 7
        %p810 = scmp.lt.s32.totalorder %s23, 0
        %s811 = scalar_select %p810, %s23, 0
        %s812 = sadd.s32 %s811, %s809
        %s813 = smul.addr %s807, 8
        %s814 = sadd.s32 %s812, %s813
        %s815 = smul.addr %s814, 8
        %s816 = scalar_lea.vmem %s4, %s815
        %s817 = smul.u32 8, %s22
        %p819 = scmp.eq.s32.totalorder %s24, 0
        // Predicated region
        $region140: #{tpu_custom_call.1} parent=130 // pred_check
          %p820 = pneg %p819
        $region141: #{tpu_custom_call.1} parent=130 // pred_check_branch
          %822 = sbr.rel (%p820) target = $region143
        $region142: #{tpu_custom_call.1} parent=130 // pred_region
          %vm823 = vcmask 31744
          %824 = vst.msk [vmem:[#allocation2] sm:$0xff] %vm823, 0.0
          %825 = vst.msk [vmem:[#allocation2 + $0x8] sm:$0xff] %vm823, 0.0
          %826 = vst.msk [vmem:[#allocation2 + $0x10] sm:$0xff] %vm823, 0.0
          %827 = vst.msk [vmem:[#allocation2 + $0x18] sm:$0xff] %vm823, 0.0
          %828 = vst.msk [vmem:[#allocation2 + $0x20] sm:$0xff] %vm823, 0.0
          %829 = vst.msk [vmem:[#allocation2 + $0x28] sm:$0xff] %vm823, 0.0
          %830 = vst.msk [vmem:[#allocation2 + $0x30] sm:$0xff] %vm823, 0.0
          %831 = vst.msk [vmem:[#allocation2 + $0x38] sm:$0xff] %vm823, 0.0
        $region143: #{tpu_custom_call.1} parent=130 // pred_fallthru
          _
        %v832 = vld [vmem:[%s736] sm:$0xf]
        %v833 = vld [vmem:[%s736 + $0x4] sm:$0x1]
        %v834 = vld [vmem:[%s736 + $0x8] sm:$0xf]
        %v835 = vld [vmem:[%s736 + $0xc] sm:$0x1]
        %v836 = vld [vmem:[%s736 + $0x10] sm:$0xf]
        %v837 = vld [vmem:[%s736 + $0x14] sm:$0x1]
        %v838 = vld [vmem:[%s736 + $0x18] sm:$0xf]
        %v839 = vld [vmem:[%s736 + $0x1c] sm:$0x1]
        %v840 = vld [vmem:[%s736 + $0x20] sm:$0xf]
        %v841 = vld [vmem:[%s736 + $0x24] sm:$0x1]
        %v842 = vld [vmem:[%s736 + $0x28] sm:$0xf]
        %v843 = vld [vmem:[%s736 + $0x2c] sm:$0x1]
        %v844 = vld [vmem:[%s736 + $0x30] sm:$0xf]
        %v845 = vld [vmem:[%s736 + $0x34] sm:$0x1]
        %v846 = vld [vmem:[%s736 + $0x38] sm:$0xf]
        %v847 = vld [vmem:[%s736 + $0x3c] sm:$0x1]
        %v848 = vld [vmem:[%s743] sm:$0xf]
        %v849 = vld [vmem:[%s743 + $0x4] sm:$0x1]
        %v850 = vld [vmem:[%s801] sm:$0x3]
        %vm851 = vsmask.f32 3328
        %vm852 = vsmask.f32 7440
        %vm853 = vmor %vm851, %vm852
        %v855 = vshrl.u32 %v832, 16
        %v857 = vrot.slane %v855, 4
        %v858 = vshll.u32 %v832, 16
        %v860 = vrot.slane %v858, 5
        %v861 = vor.u32 %v857, %v860
        %v862 = vrot.slane %v861, 4
        %v864 = vshll.u32 %v833, 16
        %v866 = vrot.slane %v864, 5
        %v867 = vsel %vm853, %v862, %v866
        %v869 = vshrl.u32 %v834, 16
        %v871 = vrot.slane %v869, 4
        %v872 = vshll.u32 %v834, 16
        %v874 = vrot.slane %v872, 5
        %v875 = vor.u32 %v871, %v874
        %v876 = vrot.slane %v875, 4
        %v878 = vshll.u32 %v835, 16
        %v880 = vrot.slane %v878, 5
        %v881 = vsel %vm853, %v876, %v880
        %v883 = vshrl.u32 %v836, 16
        %v885 = vrot.slane %v883, 4
        %v886 = vshll.u32 %v836, 16
        %v888 = vrot.slane %v886, 5
        %v889 = vor.u32 %v885, %v888
        %v890 = vrot.slane %v889, 4
        %v892 = vshll.u32 %v837, 16
        %v894 = vrot.slane %v892, 5
        %v895 = vsel %vm853, %v890, %v894
        %v897 = vshrl.u32 %v838, 16
        %v899 = vrot.slane %v897, 4
        %v900 = vshll.u32 %v838, 16
        %v902 = vrot.slane %v900, 5
        %v903 = vor.u32 %v899, %v902
        %v904 = vrot.slane %v903, 4
        %v906 = vshll.u32 %v839, 16
        %v908 = vrot.slane %v906, 5
        %v909 = vsel %vm853, %v904, %v908
        %v911 = vshrl.u32 %v840, 16
        %v913 = vrot.slane %v911, 4
        %v914 = vshll.u32 %v840, 16
        %v916 = vrot.slane %v914, 5
        %v917 = vor.u32 %v913, %v916
        %v918 = vrot.slane %v917, 4
        %v920 = vshll.u32 %v841, 16
        %v922 = vrot.slane %v920, 5
        %v923 = vsel %vm853, %v918, %v922
        %v925 = vshrl.u32 %v842, 16
        %v927 = vrot.slane %v925, 4
        %v928 = vshll.u32 %v842, 16
        %v930 = vrot.slane %v928, 5
        %v931 = vor.u32 %v927, %v930
        %v932 = vrot.slane %v931, 4
        %v934 = vshll.u32 %v843, 16
        %v936 = vrot.slane %v934, 5
        %v937 = vsel %vm853, %v932, %v936
        %v939 = vshrl.u32 %v844, 16
        %v941 = vrot.slane %v939, 4
        %v942 = vshll.u32 %v844, 16
        %v944 = vrot.slane %v942, 5
        %v945 = vor.u32 %v941, %v944
        %v946 = vrot.slane %v945, 4
        %v948 = vshll.u32 %v845, 16
        %v950 = vrot.slane %v948, 5
        %v951 = vsel %vm853, %v946, %v950
        %v953 = vshrl.u32 %v846, 16
        %v955 = vrot.slane %v953, 4
        %v956 = vshll.u32 %v846, 16
        %v958 = vrot.slane %v956, 5
        %v959 = vor.u32 %v955, %v958
        %v960 = vrot.slane %v959, 4
        %v962 = vshll.u32 %v847, 16
        %v964 = vrot.slane %v962, 5
        %v965 = vsel %vm853, %v960, %v964
        %s966 = scalar_lea.vmem %s801, 4
        %v967 = vld [vmem:[%s966] sm:$0x3]
        %v968 = vunpack.c.l.b16 %v867
        %v969 = vunpack.c.l.b16 %v881
        %v970 = vunpack.c.l.b16 %v895
        %v971 = vunpack.c.l.b16 %v909
        %v972 = vunpack.c.l.b16 %v923
        %v973 = vunpack.c.l.b16 %v937
        %v974 = vunpack.c.l.b16 %v951
        %v975 = vunpack.c.l.b16 %v965
        %v976 = vpack.c.b16 %v969, %v968
        %v977 = vpack.c.b16 %v971, %v970
        %v978 = vpack.c.b16 %v973, %v972
        %v979 = vpack.c.b16 %v975, %v974
        %vm980 = vcmask 31744
        %v982 = vsel %vm980, %v976, 0
        %v985 = vsel %vm980, %v977, 0
        %v988 = vsel %vm980, %v978, 0
        %v991 = vsel %vm980, %v979, 0
        %vm993 = vcmask 1041408
        %v995 = vsel %vm993, %v967, 0
        %997 = vmatprep.subr.bf16.mxu0 0
        %998 = vmatpush1.bf16.msra.mxu0 %v995
        %999 = vmatprep.subr.bf16.mxu0 0
        %1000 = vmatpush1.bf16.msra.mxu0 0
        %1001 = vmatprep.subr.bf16.mxu0 0
        %1002 = vmatpush1.bf16.msra.mxu0 0
        %1003 = vmatprep.subr.bf16.mxu0 0
        %1004 = vmatpush1.bf16.msra.mxu0 0
        %1005 = vmatprep.subr.bf16.mxu0 0
        %1006 = vmatpush1.bf16.msra.mxu0 0
        %1007 = vmatprep.subr.bf16.mxu0 0
        %1008 = vmatpush1.bf16.msra.mxu0 0
        %1009 = vmatprep.subr.bf16.mxu0 0
        %1010 = vmatpush1.bf16.msra.mxu0 0
        %1011 = vmatprep.subr.bf16.mxu0 0
        %1012 = vmatpush1.bf16.msra.mxu0 0
        %1013 = vmatprep.subr.bf16.mxu0 0
        %1014 = vmatpush1.bf16.msra.mxu0 0
        %1015 = vmatprep.subr.bf16.mxu0 0
        %1016 = vmatpush1.bf16.msra.mxu0 0
        %1017 = vmatprep.subr.bf16.mxu0 0
        %1018 = vmatpush1.bf16.msra.mxu0 0
        %1019 = vmatprep.subr.bf16.mxu0 0
        %1020 = vmatpush1.bf16.msra.mxu0 0
        %1021 = vmatprep.subr.bf16.mxu0 0
        %1022 = vmatpush1.bf16.msra.mxu0 0
        %1023 = vmatprep.subr.bf16.mxu0 0
        %1024 = vmatpush1.bf16.msra.mxu0 0
        %1025 = vmatprep.subr.bf16.mxu0 0
        %1026 = vmatpush1.bf16.msra.mxu0 0
        %1027 = vmatprep.subr.bf16.mxu0 0
        %1028 = vmatpush1.bf16.msra.mxu0 0
        %1029 = vmatprep.mubr.bf16.mxu0 0
        %1030 = vmatmul.mubr.bf16.gmra.mrb[0].mxu0 %v982
        %v1031 = vpop.f32.mrb[0].mxu0
        %v1032 = vadd.f32 0.0, %v1031
        %v1033 = vpop.f32.mrb[0].mxu0
        %v1034 = vpop.f32.mrb[0].mxu0
        %v1035 = vadd.f32 0.0, %v1034
        %v1036 = vpop.f32.mrb[0].mxu0
        %1037 = vmatprep.mubr.bf16.mxu0 0
        %1038 = vmatmul.mubr.bf16.gmra.mrb[0].mxu0 %v985
        %v1039 = vpop.f32.mrb[0].mxu0
        %v1040 = vadd.f32 0.0, %v1039
        %v1041 = vpop.f32.mrb[0].mxu0
        %v1042 = vpop.f32.mrb[0].mxu0
        %v1043 = vadd.f32 0.0, %v1042
        %v1044 = vpop.f32.mrb[0].mxu0
        %1045 = vmatprep.mubr.bf16.mxu0 0
        %1046 = vmatmul.mubr.bf16.gmra.mrb[0].mxu0 %v988
        %v1047 = vpop.f32.mrb[0].mxu0
        %v1048 = vadd.f32 0.0, %v1047
        %v1049 = vpop.f32.mrb[0].mxu0
        %v1050 = vpop.f32.mrb[0].mxu0
        %v1051 = vadd.f32 0.0, %v1050
        %v1052 = vpop.f32.mrb[0].mxu0
        %1053 = vmatprep.mubr.bf16.mxu0 0
        %1054 = vmatmul.mubr.bf16.gmra.mrb[0].mxu0 %v991
        %v1055 = vpop.f32.mrb[0].mxu0
        %v1056 = vadd.f32 0.0, %v1055
        %v1057 = vpop.f32.mrb[0].mxu0
        %v1058 = vpop.f32.mrb[0].mxu0
        %v1059 = vadd.f32 0.0, %v1058
        %v1060 = vpop.f32.mrb[0].mxu0
        %1061 = vdwg.mxu0
        %v1070 = vunpack.c.l.b16 %v832
        %v1071 = vunpack.c.l.b16 %v834
        %v1072 = vunpack.c.l.b16 %v836
        %v1073 = vunpack.c.l.b16 %v838
        %v1074 = vunpack.c.l.b16 %v840
        %v1075 = vunpack.c.l.b16 %v842
        %v1076 = vunpack.c.l.b16 %v844
        %v1077 = vunpack.c.l.b16 %v846
        %v1078 = vpack.c.b16 %v1071, %v1070
        %v1079 = vpack.c.b16 %v1073, %v1072
        %v1080 = vpack.c.b16 %v1075, %v1074
        %v1081 = vpack.c.b16 %v1077, %v1076
        %v1083 = vsel %vm980, %v1078, 0
        %v1086 = vsel %vm980, %v1079, 0
        %v1089 = vsel %vm980, %v1080, 0
        %v1092 = vsel %vm980, %v1081, 0
        %v1095 = vsel %vm993, %v850, 0
        %1097 = vmatprep.subr.bf16.mxu0 0
        %1098 = vmatpush1.bf16.msra.mxu0 %v1095
        %1099 = vmatprep.subr.bf16.mxu0 0
        %1100 = vmatpush1.bf16.msra.mxu0 0
        %1101 = vmatprep.subr.bf16.mxu0 0
        %1102 = vmatpush1.bf16.msra.mxu0 0
        %1103 = vmatprep.subr.bf16.mxu0 0
        %1104 = vmatpush1.bf16.msra.mxu0 0
        %1105 = vmatprep.subr.bf16.mxu0 0
        %1106 = vmatpush1.bf16.msra.mxu0 0
        %1107 = vmatprep.subr.bf16.mxu0 0
        %1108 = vmatpush1.bf16.msra.mxu0 0
        %1109 = vmatprep.subr.bf16.mxu0 0
        %1110 = vmatpush1.bf16.msra.mxu0 0
        %1111 = vmatprep.subr.bf16.mxu0 0
        %1112 = vmatpush1.bf16.msra.mxu0 0
        %1113 = vmatprep.subr.bf16.mxu0 0
        %1114 = vmatpush1.bf16.msra.mxu0 0
        %1115 = vmatprep.subr.bf16.mxu0 0
        %1116 = vmatpush1.bf16.msra.mxu0 0
        %1117 = vmatprep.subr.bf16.mxu0 0
        %1118 = vmatpush1.bf16.msra.mxu0 0
        %1119 = vmatprep.subr.bf16.mxu0 0
        %1120 = vmatpush1.bf16.msra.mxu0 0
        %1121 = vmatprep.subr.bf16.mxu0 0
        %1122 = vmatpush1.bf16.msra.mxu0 0
        %1123 = vmatprep.subr.bf16.mxu0 0
        %1124 = vmatpush1.bf16.msra.mxu0 0
        %1125 = vmatprep.subr.bf16.mxu0 0
        %1126 = vmatpush1.bf16.msra.mxu0 0
        %1127 = vmatprep.subr.bf16.mxu0 0
        %1128 = vmatpush1.bf16.msra.mxu0 0
        %1129 = vmatprep.mubr.bf16.mxu0 0
        %1130 = vmatmul.mubr.bf16.gmra.mrb[0].mxu0 %v1083
        %v1131 = vpop.f32.mrb[0].mxu0
        %v1132 = vadd.f32 %v1032, %v1131
        %v1133 = vpop.f32.mrb[0].mxu0
        %v1134 = vpop.f32.mrb[0].mxu0
        %v1135 = vadd.f32 %v1035, %v1134
        %v1136 = vpop.f32.mrb[0].mxu0
        %1137 = vmatprep.mubr.bf16.mxu0 0
        %1138 = vmatmul.mubr.bf16.gmra.mrb[0].mxu0 %v1086
        %v1139 = vpop.f32.mrb[0].mxu0
        %v1140 = vadd.f32 %v1040, %v1139
        %v1141 = vpop.f32.mrb[0].mxu0
        %v1142 = vpop.f32.mrb[0].mxu0
        %v1143 = vadd.f32 %v1043, %v1142
        %v1144 = vpop.f32.mrb[0].mxu0
        %1145 = vmatprep.mubr.bf16.mxu0 0
        %1146 = vmatmul.mubr.bf16.gmra.mrb[0].mxu0 %v1089
        %v1147 = vpop.f32.mrb[0].mxu0
        %v1148 = vadd.f32 %v1048, %v1147
        %v1149 = vpop.f32.mrb[0].mxu0
        %v1150 = vpop.f32.mrb[0].mxu0
        %v1151 = vadd.f32 %v1051, %v1150
        %v1152 = vpop.f32.mrb[0].mxu0
        %1153 = vmatprep.mubr.bf16.mxu0 0
        %1154 = vmatmul.mubr.bf16.gmra.mrb[0].mxu0 %v1092
        %v1155 = vpop.f32.mrb[0].mxu0
        %v1156 = vadd.f32 %v1056, %v1155
        %v1157 = vpop.f32.mrb[0].mxu0
        %v1158 = vpop.f32.mrb[0].mxu0
        %v1159 = vadd.f32 %v1059, %v1158
        %v1160 = vpop.f32.mrb[0].mxu0
        %1161 = vdwg.mxu0
        %s1162 = scalar_lea.vmem %s801, 12
        %v1163 = vld [vmem:[%s1162] sm:$0x3]
        %v1165 = vunpack.c.l.b16 %v848
        %v1166 = vpack.c.b16 %v1072, %v1071
        %v1167 = vpack.c.b16 %v1074, %v1073
        %v1168 = vpack.c.b16 %v1076, %v1075
        %v1169 = vpack.c.b16 %v1165, %v1077
        %v1171 = vsel %vm980, %v1166, 0
        %v1174 = vsel %vm980, %v1167, 0
        %v1177 = vsel %vm980, %v1168, 0
        %v1180 = vsel %vm980, %v1169, 0
        %v1183 = vsel %vm993, %v1163, 0
        %1185 = vmatprep.subr.bf16.mxu0 0
        %1186 = vmatpush1.bf16.msra.mxu0 %v1183
        %1187 = vmatprep.subr.bf16.mxu0 0
        %1188 = vmatpush1.bf16.msra.mxu0 0
        %1189 = vmatprep.subr.bf16.mxu0 0
        %1190 = vmatpush1.bf16.msra.mxu0 0
        %1191 = vmatprep.subr.bf16.mxu0 0
        %1192 = vmatpush1.bf16.msra.mxu0 0
        %1193 = vmatprep.subr.bf16.mxu0 0
        %1194 = vmatpush1.bf16.msra.mxu0 0
        %1195 = vmatprep.subr.bf16.mxu0 0
        %1196 = vmatpush1.bf16.msra.mxu0 0
        %1197 = vmatprep.subr.bf16.mxu0 0
        %1198 = vmatpush1.bf16.msra.mxu0 0
        %1199 = vmatprep.subr.bf16.mxu0 0
        %1200 = vmatpush1.bf16.msra.mxu0 0
        %1201 = vmatprep.subr.bf16.mxu0 0
        %1202 = vmatpush1.bf16.msra.mxu0 0
        %1203 = vmatprep.subr.bf16.mxu0 0
        %1204 = vmatpush1.bf16.msra.mxu0 0
        %1205 = vmatprep.subr.bf16.mxu0 0
        %1206 = vmatpush1.bf16.msra.mxu0 0
        %1207 = vmatprep.subr.bf16.mxu0 0
        %1208 = vmatpush1.bf16.msra.mxu0 0
        %1209 = vmatprep.subr.bf16.mxu0 0
        %1210 = vmatpush1.bf16.msra.mxu0 0
        %1211 = vmatprep.subr.bf16.mxu0 0
        %1212 = vmatpush1.bf16.msra.mxu0 0
        %1213 = vmatprep.subr.bf16.mxu0 0
        %1214 = vmatpush1.bf16.msra.mxu0 0
        %1215 = vmatprep.subr.bf16.mxu0 0
        %1216 = vmatpush1.bf16.msra.mxu0 0
        %1217 = vmatprep.mubr.bf16.mxu0 0
        %1218 = vmatmul.mubr.bf16.gmra.mrb[0].mxu0 %v1171
        %v1219 = vpop.f32.mrb[0].mxu0
        %v1220 = vadd.f32 0.0, %v1219
        %v1221 = vpop.f32.mrb[0].mxu0
        %v1222 = vpop.f32.mrb[0].mxu0
        %v1223 = vadd.f32 0.0, %v1222
        %v1224 = vpop.f32.mrb[0].mxu0
        %1225 = vmatprep.mubr.bf16.mxu0 0
        %1226 = vmatmul.mubr.bf16.gmra.mrb[0].mxu0 %v1174
        %v1227 = vpop.f32.mrb[0].mxu0
        %v1228 = vadd.f32 0.0, %v1227
        %v1229 = vpop.f32.mrb[0].mxu0
        %v1230 = vpop.f32.mrb[0].mxu0
        %v1231 = vadd.f32 0.0, %v1230
        %v1232 = vpop.f32.mrb[0].mxu0
        %1233 = vmatprep.mubr.bf16.mxu0 0
        %1234 = vmatmul.mubr.bf16.gmra.mrb[0].mxu0 %v1177
        %v1235 = vpop.f32.mrb[0].mxu0
        %v1236 = vadd.f32 0.0, %v1235
        %v1237 = vpop.f32.mrb[0].mxu0
        %v1238 = vpop.f32.mrb[0].mxu0
        %v1239 = vadd.f32 0.0, %v1238
        %v1240 = vpop.f32.mrb[0].mxu0
        %1241 = vmatprep.mubr.bf16.mxu0 0
        %1242 = vmatmul.mubr.bf16.gmra.mrb[0].mxu0 %v1180
        %v1243 = vpop.f32.mrb[0].mxu0
        %v1244 = vadd.f32 0.0, %v1243
        %v1245 = vpop.f32.mrb[0].mxu0
        %v1246 = vpop.f32.mrb[0].mxu0
        %v1247 = vadd.f32 0.0, %v1246
        %v1248 = vpop.f32.mrb[0].mxu0
        %1249 = vdwg.mxu0
        %v1250 = vadd.f32 %v1132, %v1220
        %v1251 = vadd.f32 %v1135, %v1223
        %v1252 = vadd.f32 %v1140, %v1228
        %v1253 = vadd.f32 %v1143, %v1231
        %v1254 = vadd.f32 %v1148, %v1236
        %v1255 = vadd.f32 %v1151, %v1239
        %v1256 = vadd.f32 %v1156, %v1244
        %v1257 = vadd.f32 %v1159, %v1247
        %v1259 = vshrl.u32 %v848, 16
        %v1261 = vrot.slane %v1259, 4
        %v1262 = vshll.u32 %v848, 16
        %v1264 = vrot.slane %v1262, 5
        %v1265 = vor.u32 %v1261, %v1264
        %v1266 = vrot.slane %v1265, 4
        %v1268 = vshll.u32 %v849, 16
        %v1270 = vrot.slane %v1268, 5
        %v1271 = vsel %vm853, %v1266, %v1270
        %s1272 = scalar_lea.vmem %s801, 16
        %v1273 = vld [vmem:[%s1272] sm:$0x3]
        %v1274 = vunpack.c.l.b16 %v1271
        %v1275 = vpack.c.b16 %v970, %v969
        %v1276 = vpack.c.b16 %v972, %v971
        %v1277 = vpack.c.b16 %v974, %v973
        %v1278 = vpack.c.b16 %v1274, %v975
        %v1280 = vsel %vm980, %v1275, 0
        %v1283 = vsel %vm980, %v1276, 0
        %v1286 = vsel %vm980, %v1277, 0
        %v1289 = vsel %vm980, %v1278, 0
        %v1292 = vsel %vm993, %v1273, 0
        %1294 = vmatprep.subr.bf16.mxu0 0
        %1295 = vmatpush1.bf16.msra.mxu0 %v1292
        %1296 = vmatprep.subr.bf16.mxu0 0
        %1297 = vmatpush1.bf16.msra.mxu0 0
        %1298 = vmatprep.subr.bf16.mxu0 0
        %1299 = vmatpush1.bf16.msra.mxu0 0
        %1300 = vmatprep.subr.bf16.mxu0 0
        %1301 = vmatpush1.bf16.msra.mxu0 0
        %1302 = vmatprep.subr.bf16.mxu0 0
        %1303 = vmatpush1.bf16.msra.mxu0 0
        %1304 = vmatprep.subr.bf16.mxu0 0
        %1305 = vmatpush1.bf16.msra.mxu0 0
        %1306 = vmatprep.subr.bf16.mxu0 0
        %1307 = vmatpush1.bf16.msra.mxu0 0
        %1308 = vmatprep.subr.bf16.mxu0 0
        %1309 = vmatpush1.bf16.msra.mxu0 0
        %1310 = vmatprep.subr.bf16.mxu0 0
        %1311 = vmatpush1.bf16.msra.mxu0 0
        %1312 = vmatprep.subr.bf16.mxu0 0
        %1313 = vmatpush1.bf16.msra.mxu0 0
        %1314 = vmatprep.subr.bf16.mxu0 0
        %1315 = vmatpush1.bf16.msra.mxu0 0
        %1316 = vmatprep.subr.bf16.mxu0 0
        %1317 = vmatpush1.bf16.msra.mxu0 0
        %1318 = vmatprep.subr.bf16.mxu0 0
        %1319 = vmatpush1.bf16.msra.mxu0 0
        %1320 = vmatprep.subr.bf16.mxu0 0
        %1321 = vmatpush1.bf16.msra.mxu0 0
        %1322 = vmatprep.subr.bf16.mxu0 0
        %1323 = vmatpush1.bf16.msra.mxu0 0
        %1324 = vmatprep.subr.bf16.mxu0 0
        %1325 = vmatpush1.bf16.msra.mxu0 0
        %1326 = vmatprep.mubr.bf16.mxu0 0
        %1327 = vmatmul.mubr.bf16.gmra.mrb[0].mxu0 %v1280
        %v1328 = vpop.f32.mrb[0].mxu0
        %v1329 = vadd.f32 0.0, %v1328
        %v1330 = vpop.f32.mrb[0].mxu0
        %v1331 = vpop.f32.mrb[0].mxu0
        %v1332 = vadd.f32 0.0, %v1331
        %v1333 = vpop.f32.mrb[0].mxu0
        %1334 = vmatprep.mubr.bf16.mxu0 0
        %1335 = vmatmul.mubr.bf16.gmra.mrb[0].mxu0 %v1283
        %v1336 = vpop.f32.mrb[0].mxu0
        %v1337 = vadd.f32 0.0, %v1336
        %v1338 = vpop.f32.mrb[0].mxu0
        %v1339 = vpop.f32.mrb[0].mxu0
        %v1340 = vadd.f32 0.0, %v1339
        %v1341 = vpop.f32.mrb[0].mxu0
        %1342 = vmatprep.mubr.bf16.mxu0 0
        %1343 = vmatmul.mubr.bf16.gmra.mrb[0].mxu0 %v1286
        %v1344 = vpop.f32.mrb[0].mxu0
        %v1345 = vadd.f32 0.0, %v1344
        %v1346 = vpop.f32.mrb[0].mxu0
        %v1347 = vpop.f32.mrb[0].mxu0
        %v1348 = vadd.f32 0.0, %v1347
        %v1349 = vpop.f32.mrb[0].mxu0
        %1350 = vmatprep.mubr.bf16.mxu0 0
        %1351 = vmatmul.mubr.bf16.gmra.mrb[0].mxu0 %v1289
        %v1352 = vpop.f32.mrb[0].mxu0
        %v1353 = vadd.f32 0.0, %v1352
        %v1354 = vpop.f32.mrb[0].mxu0
        %v1355 = vpop.f32.mrb[0].mxu0
        %v1356 = vadd.f32 0.0, %v1355
        %v1357 = vpop.f32.mrb[0].mxu0
        %1358 = vdwg.mxu0
        %v1359 = vadd.f32 %v1250, %v1329
        %v1360 = vadd.f32 %v1251, %v1332
        %v1361 = vadd.f32 %v1252, %v1337
        %v1362 = vadd.f32 %v1253, %v1340
        %v1363 = vadd.f32 %v1254, %v1345
        %v1364 = vadd.f32 %v1255, %v1348
        %v1365 = vadd.f32 %v1256, %v1353
        %v1366 = vadd.f32 %v1257, %v1356
        %s1367 = scalar_lea.vmem %s736, 64 [#allocation3]
        %v1368 = vld [vmem:[%s1367] sm:$0xf]
        %v1369 = vld [vmem:[%s1367 + $0x8] sm:$0xf]
        %v1370 = vld [vmem:[%s1367 + $0x10] sm:$0xf]
        %v1371 = vld [vmem:[%s1367 + $0x18] sm:$0xf]
        %v1372 = vld [vmem:[%s1367 + $0x20] sm:$0xf]
        %v1373 = vld [vmem:[%s1367 + $0x28] sm:$0xf]
        %v1374 = vld [vmem:[%s1367 + $0x30] sm:$0xf]
        %v1375 = vld [vmem:[%s1367 + $0x38] sm:$0xf]
        %s1376 = scalar_lea.vmem %s743, 8 [#allocation4]
        %v1377 = vld [vmem:[%s1376] sm:$0xf]
        %s1378 = scalar_lea.vmem %s801, 2
        %v1379 = vld [vmem:[%s1378] sm:$0x3]
        %v1388 = vunpack.c.l.b16 %v1368
        %v1389 = vunpack.c.l.b16 %v1369
        %v1390 = vunpack.c.l.b16 %v1370
        %v1391 = vunpack.c.l.b16 %v1371
        %v1392 = vunpack.c.l.b16 %v1372
        %v1393 = vunpack.c.l.b16 %v1373
        %v1394 = vunpack.c.l.b16 %v1374
        %v1395 = vunpack.c.l.b16 %v1375
        %v1396 = vpack.c.b16 %v1389, %v1388
        %v1397 = vpack.c.b16 %v1391, %v1390
        %v1398 = vpack.c.b16 %v1393, %v1392
        %v1399 = vpack.c.b16 %v1395, %v1394
        %v1401 = vsel %vm980, %v1396, 0
        %v1404 = vsel %vm980, %v1397, 0
        %v1407 = vsel %vm980, %v1398, 0
        %v1410 = vsel %vm980, %v1399, 0
        %v1413 = vsel %vm993, %v1379, 0
        %1415 = vmatprep.subr.bf16.mxu0 0
        %1416 = vmatpush1.bf16.msra.mxu0 %v1413
        %1417 = vmatprep.subr.bf16.mxu0 0
        %1418 = vmatpush1.bf16.msra.mxu0 0
        %1419 = vmatprep.subr.bf16.mxu0 0
        %1420 = vmatpush1.bf16.msra.mxu0 0
        %1421 = vmatprep.subr.bf16.mxu0 0
        %1422 = vmatpush1.bf16.msra.mxu0 0
        %1423 = vmatprep.subr.bf16.mxu0 0
        %1424 = vmatpush1.bf16.msra.mxu0 0
        %1425 = vmatprep.subr.bf16.mxu0 0
        %1426 = vmatpush1.bf16.msra.mxu0 0
        %1427 = vmatprep.subr.bf16.mxu0 0
        %1428 = vmatpush1.bf16.msra.mxu0 0
        %1429 = vmatprep.subr.bf16.mxu0 0
        %1430 = vmatpush1.bf16.msra.mxu0 0
        %1431 = vmatprep.subr.bf16.mxu0 0
        %1432 = vmatpush1.bf16.msra.mxu0 0
        %1433 = vmatprep.subr.bf16.mxu0 0
        %1434 = vmatpush1.bf16.msra.mxu0 0
        %1435 = vmatprep.subr.bf16.mxu0 0
        %1436 = vmatpush1.bf16.msra.mxu0 0
        %1437 = vmatprep.subr.bf16.mxu0 0
        %1438 = vmatpush1.bf16.msra.mxu0 0
        %1439 = vmatprep.subr.bf16.mxu0 0
        %1440 = vmatpush1.bf16.msra.mxu0 0
        %1441 = vmatprep.subr.bf16.mxu0 0
        %1442 = vmatpush1.bf16.msra.mxu0 0
        %1443 = vmatprep.subr.bf16.mxu0 0
        %1444 = vmatpush1.bf16.msra.mxu0 0
        %1445 = vmatprep.subr.bf16.mxu0 0
        %1446 = vmatpush1.bf16.msra.mxu0 0
        %1447 = vmatprep.mubr.bf16.mxu0 0
        %1448 = vmatmul.mubr.bf16.gmra.mrb[0].mxu0 %v1401
        %v1449 = vpop.f32.mrb[0].mxu0
        %v1450 = vadd.f32 0.0, %v1449
        %v1451 = vpop.f32.mrb[0].mxu0
        %v1452 = vpop.f32.mrb[0].mxu0
        %v1453 = vadd.f32 0.0, %v1452
        %v1454 = vpop.f32.mrb[0].mxu0
        %1455 = vmatprep.mubr.bf16.mxu0 0
        %1456 = vmatmul.mubr.bf16.gmra.mrb[0].mxu0 %v1404
        %v1457 = vpop.f32.mrb[0].mxu0
        %v1458 = vadd.f32 0.0, %v1457
        %v1459 = vpop.f32.mrb[0].mxu0
        %v1460 = vpop.f32.mrb[0].mxu0
        %v1461 = vadd.f32 0.0, %v1460
        %v1462 = vpop.f32.mrb[0].mxu0
        %1463 = vmatprep.mubr.bf16.mxu0 0
        %1464 = vmatmul.mubr.bf16.gmra.mrb[0].mxu0 %v1407
        %v1465 = vpop.f32.mrb[0].mxu0
        %v1466 = vadd.f32 0.0, %v1465
        %v1467 = vpop.f32.mrb[0].mxu0
        %v1468 = vpop.f32.mrb[0].mxu0
        %v1469 = vadd.f32 0.0, %v1468
        %v1470 = vpop.f32.mrb[0].mxu0
        %1471 = vmatprep.mubr.bf16.mxu0 0
        %1472 = vmatmul.mubr.bf16.gmra.mrb[0].mxu0 %v1410
        %v1473 = vpop.f32.mrb[0].mxu0
        %v1474 = vadd.f32 0.0, %v1473
        %v1475 = vpop.f32.mrb[0].mxu0
        %v1476 = vpop.f32.mrb[0].mxu0
        %v1477 = vadd.f32 0.0, %v1476
        %v1478 = vpop.f32.mrb[0].mxu0
        %1479 = vdwg.mxu0
        %v1480 = vadd.f32 %v1359, %v1450
        %v1481 = vadd.f32 %v1360, %v1453
        %v1482 = vadd.f32 %v1361, %v1458
        %v1483 = vadd.f32 %v1362, %v1461
        %v1484 = vadd.f32 %v1363, %v1466
        %v1485 = vadd.f32 %v1364, %v1469
        %v1486 = vadd.f32 %v1365, %v1474
        %v1487 = vadd.f32 %v1366, %v1477
        %s1488 = scalar_lea.vmem %s801, 14
        %v1489 = vld [vmem:[%s1488] sm:$0x3]
        %v1491 = vunpack.c.l.b16 %v1377
        %v1492 = vpack.c.b16 %v1390, %v1389
        %v1493 = vpack.c.b16 %v1392, %v1391
        %v1494 = vpack.c.b16 %v1394, %v1393
        %v1495 = vpack.c.b16 %v1491, %v1395
        %v1497 = vsel %vm980, %v1492, 0
        %v1500 = vsel %vm980, %v1493, 0
        %v1503 = vsel %vm980, %v1494, 0
        %v1506 = vsel %vm980, %v1495, 0
        %v1509 = vsel %vm993, %v1489, 0
        %1511 = vmatprep.subr.bf16.mxu0 0
        %1512 = vmatpush1.bf16.msra.mxu0 %v1509
        %1513 = vmatprep.subr.bf16.mxu0 0
        %1514 = vmatpush1.bf16.msra.mxu0 0
        %1515 = vmatprep.subr.bf16.mxu0 0
        %1516 = vmatpush1.bf16.msra.mxu0 0
        %1517 = vmatprep.subr.bf16.mxu0 0
        %1518 = vmatpush1.bf16.msra.mxu0 0
        %1519 = vmatprep.subr.bf16.mxu0 0
        %1520 = vmatpush1.bf16.msra.mxu0 0
        %1521 = vmatprep.subr.bf16.mxu0 0
        %1522 = vmatpush1.bf16.msra.mxu0 0
        %1523 = vmatprep.subr.bf16.mxu0 0
        %1524 = vmatpush1.bf16.msra.mxu0 0
        %1525 = vmatprep.subr.bf16.mxu0 0
        %1526 = vmatpush1.bf16.msra.mxu0 0
        %1527 = vmatprep.subr.bf16.mxu0 0
        %1528 = vmatpush1.bf16.msra.mxu0 0
        %1529 = vmatprep.subr.bf16.mxu0 0
        %1530 = vmatpush1.bf16.msra.mxu0 0
        %1531 = vmatprep.subr.bf16.mxu0 0
        %1532 = vmatpush1.bf16.msra.mxu0 0
        %1533 = vmatprep.subr.bf16.mxu0 0
        %1534 = vmatpush1.bf16.msra.mxu0 0
        %1535 = vmatprep.subr.bf16.mxu0 0
        %1536 = vmatpush1.bf16.msra.mxu0 0
        %1537 = vmatprep.subr.bf16.mxu0 0
        %1538 = vmatpush1.bf16.msra.mxu0 0
        %1539 = vmatprep.subr.bf16.mxu0 0
        %1540 = vmatpush1.bf16.msra.mxu0 0
        %1541 = vmatprep.subr.bf16.mxu0 0
        %1542 = vmatpush1.bf16.msra.mxu0 0
        %1543 = vmatprep.mubr.bf16.mxu0 0
        %1544 = vmatmul.mubr.bf16.gmra.mrb[0].mxu0 %v1497
        %v1545 = vpop.f32.mrb[0].mxu0
        %v1546 = vadd.f32 0.0, %v1545
        %v1547 = vpop.f32.mrb[0].mxu0
        %v1548 = vpop.f32.mrb[0].mxu0
        %v1549 = vadd.f32 0.0, %v1548
        %v1550 = vpop.f32.mrb[0].mxu0
        %1551 = vmatprep.mubr.bf16.mxu0 0
        %1552 = vmatmul.mubr.bf16.gmra.mrb[0].mxu0 %v1500
        %v1553 = vpop.f32.mrb[0].mxu0
        %v1554 = vadd.f32 0.0, %v1553
        %v1555 = vpop.f32.mrb[0].mxu0
        %v1556 = vpop.f32.mrb[0].mxu0
        %v1557 = vadd.f32 0.0, %v1556
        %v1558 = vpop.f32.mrb[0].mxu0
        %1559 = vmatprep.mubr.bf16.mxu0 0
        %1560 = vmatmul.mubr.bf16.gmra.mrb[0].mxu0 %v1503
        %v1561 = vpop.f32.mrb[0].mxu0
        %v1562 = vadd.f32 0.0, %v1561
        %v1563 = vpop.f32.mrb[0].mxu0
        %v1564 = vpop.f32.mrb[0].mxu0
        %v1565 = vadd.f32 0.0, %v1564
        %v1566 = vpop.f32.mrb[0].mxu0
        %1567 = vmatprep.mubr.bf16.mxu0 0
        %1568 = vmatmul.mubr.bf16.gmra.mrb[0].mxu0 %v1506
        %v1569 = vpop.f32.mrb[0].mxu0
        %v1570 = vadd.f32 0.0, %v1569
        %v1571 = vpop.f32.mrb[0].mxu0
        %v1572 = vpop.f32.mrb[0].mxu0
        %v1573 = vadd.f32 0.0, %v1572
        %v1574 = vpop.f32.mrb[0].mxu0
        %1575 = vdwg.mxu0
        %v1576 = vadd.f32 %v1480, %v1546
        %v1577 = vadd.f32 %v1481, %v1549
        %v1578 = vadd.f32 %v1482, %v1554
        %v1579 = vadd.f32 %v1483, %v1557
        %v1580 = vadd.f32 %v1484, %v1562
        %v1581 = vadd.f32 %v1485, %v1565
        %v1582 = vadd.f32 %v1486, %v1570
        %v1583 = vadd.f32 %v1487, %v1573
        %s1584 = scalar_lea.vmem %s736, 128 [#allocation3]
        %v1585 = vld [vmem:[%s1584] sm:$0xf]
        %v1586 = vld [vmem:[%s1584 + $0x4] sm:$0x1]
        %v1587 = vld [vmem:[%s1584 + $0x8] sm:$0xf]
        %v1588 = vld [vmem:[%s1584 + $0xc] sm:$0x1]
        %v1589 = vld [vmem:[%s1584 + $0x10] sm:$0xf]
        %v1590 = vld [vmem:[%s1584 + $0x14] sm:$0x1]
        %v1591 = vld [vmem:[%s1584 + $0x18] sm:$0xf]
        %v1592 = vld [vmem:[%s1584 + $0x1c] sm:$0x1]
        %v1593 = vld [vmem:[%s1584 + $0x20] sm:$0xf]
        %v1594 = vld [vmem:[%s1584 + $0x24] sm:$0x1]
        %v1595 = vld [vmem:[%s1584 + $0x28] sm:$0xf]
        %v1596 = vld [vmem:[%s1584 + $0x2c] sm:$0x1]
        %v1597 = vld [vmem:[%s1584 + $0x30] sm:$0xf]
        %v1598 = vld [vmem:[%s1584 + $0x34] sm:$0x1]
        %v1599 = vld [vmem:[%s1584 + $0x38] sm:$0xf]
        %v1600 = vld [vmem:[%s1584 + $0x3c] sm:$0x1]
        %s1601 = scalar_lea.vmem %s801, 6
        %v1602 = vld [vmem:[%s1601] sm:$0x3]
        %v1611 = vunpack.c.l.b16 %v1585
        %v1612 = vunpack.c.l.b16 %v1587
        %v1613 = vunpack.c.l.b16 %v1589
        %v1614 = vunpack.c.l.b16 %v1591
        %v1615 = vunpack.c.l.b16 %v1593
        %v1616 = vunpack.c.l.b16 %v1595
        %v1617 = vunpack.c.l.b16 %v1597
        %v1618 = vunpack.c.l.b16 %v1599
        %v1619 = vpack.c.b16 %v1612, %v1611
        %v1620 = vpack.c.b16 %v1614, %v1613
        %v1621 = vpack.c.b16 %v1616, %v1615
        %v1622 = vpack.c.b16 %v1618, %v1617
        %v1624 = vsel %vm980, %v1619, 0
        %v1627 = vsel %vm980, %v1620, 0
        %v1630 = vsel %vm980, %v1621, 0
        %v1633 = vsel %vm980, %v1622, 0
        %v1636 = vsel %vm993, %v1602, 0
        %1638 = vmatprep.subr.bf16.mxu0 0
        %1639 = vmatpush1.bf16.msra.mxu0 %v1636
        %1640 = vmatprep.subr.bf16.mxu0 0
        %1641 = vmatpush1.bf16.msra.mxu0 0
        %1642 = vmatprep.subr.bf16.mxu0 0
        %1643 = vmatpush1.bf16.msra.mxu0 0
        %1644 = vmatprep.subr.bf16.mxu0 0
        %1645 = vmatpush1.bf16.msra.mxu0 0
        %1646 = vmatprep.subr.bf16.mxu0 0
        %1647 = vmatpush1.bf16.msra.mxu0 0
        %1648 = vmatprep.subr.bf16.mxu0 0
        %1649 = vmatpush1.bf16.msra.mxu0 0
        %1650 = vmatprep.subr.bf16.mxu0 0
        %1651 = vmatpush1.bf16.msra.mxu0 0
        %1652 = vmatprep.subr.bf16.mxu0 0
        %1653 = vmatpush1.bf16.msra.mxu0 0
        %1654 = vmatprep.subr.bf16.mxu0 0
        %1655 = vmatpush1.bf16.msra.mxu0 0
        %1656 = vmatprep.subr.bf16.mxu0 0
        %1657 = vmatpush1.bf16.msra.mxu0 0
        %1658 = vmatprep.subr.bf16.mxu0 0
        %1659 = vmatpush1.bf16.msra.mxu0 0
        %1660 = vmatprep.subr.bf16.mxu0 0
        %1661 = vmatpush1.bf16.msra.mxu0 0
        %1662 = vmatprep.subr.bf16.mxu0 0
        %1663 = vmatpush1.bf16.msra.mxu0 0
        %1664 = vmatprep.subr.bf16.mxu0 0
        %1665 = vmatpush1.bf16.msra.mxu0 0
        %1666 = vmatprep.subr.bf16.mxu0 0
        %1667 = vmatpush1.bf16.msra.mxu0 0
        %1668 = vmatprep.subr.bf16.mxu0 0
        %1669 = vmatpush1.bf16.msra.mxu0 0
        %1670 = vmatprep.mubr.bf16.mxu0 0
        %1671 = vmatmul.mubr.bf16.gmra.mrb[0].mxu0 %v1624
        %v1672 = vpop.f32.mrb[0].mxu0
        %v1673 = vadd.f32 0.0, %v1672
        %v1674 = vpop.f32.mrb[0].mxu0
        %v1675 = vpop.f32.mrb[0].mxu0
        %v1676 = vadd.f32 0.0, %v1675
        %v1677 = vpop.f32.mrb[0].mxu0
        %1678 = vmatprep.mubr.bf16.mxu0 0
        %1679 = vmatmul.mubr.bf16.gmra.mrb[0].mxu0 %v1627
        %v1680 = vpop.f32.mrb[0].mxu0
        %v1681 = vadd.f32 0.0, %v1680
        %v1682 = vpop.f32.mrb[0].mxu0
        %v1683 = vpop.f32.mrb[0].mxu0
        %v1684 = vadd.f32 0.0, %v1683
        %v1685 = vpop.f32.mrb[0].mxu0
        %1686 = vmatprep.mubr.bf16.mxu0 0
        %1687 = vmatmul.mubr.bf16.gmra.mrb[0].mxu0 %v1630
        %v1688 = vpop.f32.mrb[0].mxu0
        %v1689 = vadd.f32 0.0, %v1688
        %v1690 = vpop.f32.mrb[0].mxu0
        %v1691 = vpop.f32.mrb[0].mxu0
        %v1692 = vadd.f32 0.0, %v1691
        %v1693 = vpop.f32.mrb[0].mxu0
        %1694 = vmatprep.mubr.bf16.mxu0 0
        %1695 = vmatmul.mubr.bf16.gmra.mrb[0].mxu0 %v1633
        %v1696 = vpop.f32.mrb[0].mxu0
        %v1697 = vadd.f32 0.0, %v1696
        %v1698 = vpop.f32.mrb[0].mxu0
        %v1699 = vpop.f32.mrb[0].mxu0
        %v1700 = vadd.f32 0.0, %v1699
        %v1701 = vpop.f32.mrb[0].mxu0
        %1702 = vdwg.mxu0
        %v1703 = vadd.f32 %v1576, %v1673
        %v1704 = vadd.f32 %v1577, %v1676
        %v1705 = vadd.f32 %v1578, %v1681
        %v1706 = vadd.f32 %v1579, %v1684
        %v1707 = vadd.f32 %v1580, %v1689
        %v1708 = vadd.f32 %v1581, %v1692
        %v1709 = vadd.f32 %v1582, %v1697
        %v1710 = vadd.f32 %v1583, %v1700
        %v1712 = vshrl.u32 %v1585, 16
        %v1714 = vrot.slane %v1712, 4
        %v1715 = vshll.u32 %v1585, 16
        %v1717 = vrot.slane %v1715, 5
        %v1718 = vor.u32 %v1714, %v1717
        %v1719 = vrot.slane %v1718, 4
        %v1721 = vshll.u32 %v1586, 16
        %v1723 = vrot.slane %v1721, 5
        %v1724 = vsel %vm853, %v1719, %v1723
        %v1726 = vshrl.u32 %v1587, 16
        %v1728 = vrot.slane %v1726, 4
        %v1729 = vshll.u32 %v1587, 16
        %v1731 = vrot.slane %v1729, 5
        %v1732 = vor.u32 %v1728, %v1731
        %v1733 = vrot.slane %v1732, 4
        %v1735 = vshll.u32 %v1588, 16
        %v1737 = vrot.slane %v1735, 5
        %v1738 = vsel %vm853, %v1733, %v1737
        %v1740 = vshrl.u32 %v1589, 16
        %v1742 = vrot.slane %v1740, 4
        %v1743 = vshll.u32 %v1589, 16
        %v1745 = vrot.slane %v1743, 5
        %v1746 = vor.u32 %v1742, %v1745
        %v1747 = vrot.slane %v1746, 4
        %v1749 = vshll.u32 %v1590, 16
        %v1751 = vrot.slane %v1749, 5
        %v1752 = vsel %vm853, %v1747, %v1751
        %v1754 = vshrl.u32 %v1591, 16
        %v1756 = vrot.slane %v1754, 4
        %v1757 = vshll.u32 %v1591, 16
        %v1759 = vrot.slane %v1757, 5
        %v1760 = vor.u32 %v1756, %v1759
        %v1761 = vrot.slane %v1760, 4
        %v1763 = vshll.u32 %v1592, 16
        %v1765 = vrot.slane %v1763, 5
        %v1766 = vsel %vm853, %v1761, %v1765
        %v1768 = vshrl.u32 %v1593, 16
        %v1770 = vrot.slane %v1768, 4
        %v1771 = vshll.u32 %v1593, 16
        %v1773 = vrot.slane %v1771, 5
        %v1774 = vor.u32 %v1770, %v1773
        %v1775 = vrot.slane %v1774, 4
        %v1777 = vshll.u32 %v1594, 16
        %v1779 = vrot.slane %v1777, 5
        %v1780 = vsel %vm853, %v1775, %v1779
        %v1782 = vshrl.u32 %v1595, 16
        %v1784 = vrot.slane %v1782, 4
        %v1785 = vshll.u32 %v1595, 16
        %v1787 = vrot.slane %v1785, 5
        %v1788 = vor.u32 %v1784, %v1787
        %v1789 = vrot.slane %v1788, 4
        %v1791 = vshll.u32 %v1596, 16
        %v1793 = vrot.slane %v1791, 5
        %v1794 = vsel %vm853, %v1789, %v1793
        %v1796 = vshrl.u32 %v1597, 16
        %v1798 = vrot.slane %v1796, 4
        %v1799 = vshll.u32 %v1597, 16
        %v1801 = vrot.slane %v1799, 5
        %v1802 = vor.u32 %v1798, %v1801
        %v1803 = vrot.slane %v1802, 4
        %v1805 = vshll.u32 %v1598, 16
        %v1807 = vrot.slane %v1805, 5
        %v1808 = vsel %vm853, %v1803, %v1807
        %v1810 = vshrl.u32 %v1599, 16
        %v1812 = vrot.slane %v1810, 4
        %v1813 = vshll.u32 %v1599, 16
        %v1815 = vrot.slane %v1813, 5
        %v1816 = vor.u32 %v1812, %v1815
        %v1817 = vrot.slane %v1816, 4
        %v1819 = vshll.u32 %v1600, 16
        %v1821 = vrot.slane %v1819, 5
        %v1822 = vsel %vm853, %v1817, %v1821
        %s1823 = scalar_lea.vmem %s801, 10
        %v1824 = vld [vmem:[%s1823] sm:$0x3]
        %v1825 = vunpack.c.l.b16 %v1724
        %v1826 = vunpack.c.l.b16 %v1738
        %v1827 = vunpack.c.l.b16 %v1752
        %v1828 = vunpack.c.l.b16 %v1766
        %v1829 = vunpack.c.l.b16 %v1780
        %v1830 = vunpack.c.l.b16 %v1794
        %v1831 = vunpack.c.l.b16 %v1808
        %v1832 = vunpack.c.l.b16 %v1822
        %v1833 = vpack.c.b16 %v1826, %v1825
        %v1834 = vpack.c.b16 %v1828, %v1827
        %v1835 = vpack.c.b16 %v1830, %v1829
        %v1836 = vpack.c.b16 %v1832, %v1831
        %v1838 = vsel %vm980, %v1833, 0
        %v1841 = vsel %vm980, %v1834, 0
        %v1844 = vsel %vm980, %v1835, 0
        %v1847 = vsel %vm980, %v1836, 0
        %v1850 = vsel %vm993, %v1824, 0
        %1852 = vmatprep.subr.bf16.mxu0 0
        %1853 = vmatpush1.bf16.msra.mxu0 %v1850
        %1854 = vmatprep.subr.bf16.mxu0 0
        %1855 = vmatpush1.bf16.msra.mxu0 0
        %1856 = vmatprep.subr.bf16.mxu0 0
        %1857 = vmatpush1.bf16.msra.mxu0 0
        %1858 = vmatprep.subr.bf16.mxu0 0
        %1859 = vmatpush1.bf16.msra.mxu0 0
        %1860 = vmatprep.subr.bf16.mxu0 0
        %1861 = vmatpush1.bf16.msra.mxu0 0
        %1862 = vmatprep.subr.bf16.mxu0 0
        %1863 = vmatpush1.bf16.msra.mxu0 0
        %1864 = vmatprep.subr.bf16.mxu0 0
        %1865 = vmatpush1.bf16.msra.mxu0 0
        %1866 = vmatprep.subr.bf16.mxu0 0
        %1867 = vmatpush1.bf16.msra.mxu0 0
        %1868 = vmatprep.subr.bf16.mxu0 0
        %1869 = vmatpush1.bf16.msra.mxu0 0
        %1870 = vmatprep.subr.bf16.mxu0 0
        %1871 = vmatpush1.bf16.msra.mxu0 0
        %1872 = vmatprep.subr.bf16.mxu0 0
        %1873 = vmatpush1.bf16.msra.mxu0 0
        %1874 = vmatprep.subr.bf16.mxu0 0
        %1875 = vmatpush1.bf16.msra.mxu0 0
        %1876 = vmatprep.subr.bf16.mxu0 0
        %1877 = vmatpush1.bf16.msra.mxu0 0
        %1878 = vmatprep.subr.bf16.mxu0 0
        %1879 = vmatpush1.bf16.msra.mxu0 0
        %1880 = vmatprep.subr.bf16.mxu0 0
        %1881 = vmatpush1.bf16.msra.mxu0 0
        %1882 = vmatprep.subr.bf16.mxu0 0
        %1883 = vmatpush1.bf16.msra.mxu0 0
        %1884 = vmatprep.mubr.bf16.mxu0 0
        %1885 = vmatmul.mubr.bf16.gmra.mrb[0].mxu0 %v1838
        %v1886 = vpop.f32.mrb[0].mxu0
        %v1887 = vadd.f32 0.0, %v1886
        %v1888 = vpop.f32.mrb[0].mxu0
        %v1889 = vpop.f32.mrb[0].mxu0
        %v1890 = vadd.f32 0.0, %v1889
        %v1891 = vpop.f32.mrb[0].mxu0
        %1892 = vmatprep.mubr.bf16.mxu0 0
        %1893 = vmatmul.mubr.bf16.gmra.mrb[0].mxu0 %v1841
        %v1894 = vpop.f32.mrb[0].mxu0
        %v1895 = vadd.f32 0.0, %v1894
        %v1896 = vpop.f32.mrb[0].mxu0
        %v1897 = vpop.f32.mrb[0].mxu0
        %v1898 = vadd.f32 0.0, %v1897
        %v1899 = vpop.f32.mrb[0].mxu0
        %1900 = vmatprep.mubr.bf16.mxu0 0
        %1901 = vmatmul.mubr.bf16.gmra.mrb[0].mxu0 %v1844
        %v1902 = vpop.f32.mrb[0].mxu0
        %v1903 = vadd.f32 0.0, %v1902
        %v1904 = vpop.f32.mrb[0].mxu0
        %v1905 = vpop.f32.mrb[0].mxu0
        %v1906 = vadd.f32 0.0, %v1905
        %v1907 = vpop.f32.mrb[0].mxu0
        %1908 = vmatprep.mubr.bf16.mxu0 0
        %1909 = vmatmul.mubr.bf16.gmra.mrb[0].mxu0 %v1847
        %v1910 = vpop.f32.mrb[0].mxu0
        %v1911 = vadd.f32 0.0, %v1910
        %v1912 = vpop.f32.mrb[0].mxu0
        %v1913 = vpop.f32.mrb[0].mxu0
        %v1914 = vadd.f32 0.0, %v1913
        %v1915 = vpop.f32.mrb[0].mxu0
        %1916 = vdwg.mxu0
        %v1917 = vadd.f32 %v1703, %v1887
        %v1918 = vadd.f32 %v1704, %v1890
        %v1919 = vadd.f32 %v1705, %v1895
        %v1920 = vadd.f32 %v1706, %v1898
        %v1921 = vadd.f32 %v1707, %v1903
        %v1922 = vadd.f32 %v1708, %v1906
        %v1923 = vadd.f32 %v1709, %v1911
        %v1924 = vadd.f32 %v1710, %v1914
        %s1925 = scalar_lea.vmem %s736, 192 [#allocation3]
        %v1926 = vld [vmem:[%s1925] sm:$0xf]
        %v1927 = vld [vmem:[%s1925 + $0x8] sm:$0xf]
        %v1928 = vld [vmem:[%s1925 + $0x10] sm:$0xf]
        %v1929 = vld [vmem:[%s1925 + $0x18] sm:$0xf]
        %v1930 = vld [vmem:[%s1925 + $0x20] sm:$0xf]
        %v1931 = vld [vmem:[%s1925 + $0x28] sm:$0xf]
        %v1932 = vld [vmem:[%s1925 + $0x30] sm:$0xf]
        %v1933 = vld [vmem:[%s1925 + $0x38] sm:$0xf]
        %s1934 = scalar_lea.vmem %s801, 8
        %v1935 = vld [vmem:[%s1934] sm:$0x3]
        %v1944 = vunpack.c.l.b16 %v1926
        %v1945 = vunpack.c.l.b16 %v1927
        %v1946 = vunpack.c.l.b16 %v1928
        %v1947 = vunpack.c.l.b16 %v1929
        %v1948 = vunpack.c.l.b16 %v1930
        %v1949 = vunpack.c.l.b16 %v1931
        %v1950 = vunpack.c.l.b16 %v1932
        %v1951 = vunpack.c.l.b16 %v1933
        %v1952 = vpack.c.b16 %v1945, %v1944
        %v1953 = vpack.c.b16 %v1947, %v1946
        %v1954 = vpack.c.b16 %v1949, %v1948
        %v1955 = vpack.c.b16 %v1951, %v1950
        %v1957 = vsel %vm980, %v1952, 0
        %v1960 = vsel %vm980, %v1953, 0
        %v1963 = vsel %vm980, %v1954, 0
        %v1966 = vsel %vm980, %v1955, 0
        %v1969 = vsel %vm993, %v1935, 0
        %1971 = vmatprep.subr.bf16.mxu0 0
        %1972 = vmatpush1.bf16.msra.mxu0 %v1969
        %1973 = vmatprep.subr.bf16.mxu0 0
        %1974 = vmatpush1.bf16.msra.mxu0 0
        %1975 = vmatprep.subr.bf16.mxu0 0
        %1976 = vmatpush1.bf16.msra.mxu0 0
        %1977 = vmatprep.subr.bf16.mxu0 0
        %1978 = vmatpush1.bf16.msra.mxu0 0
        %1979 = vmatprep.subr.bf16.mxu0 0
        %1980 = vmatpush1.bf16.msra.mxu0 0
        %1981 = vmatprep.subr.bf16.mxu0 0
        %1982 = vmatpush1.bf16.msra.mxu0 0
        %1983 = vmatprep.subr.bf16.mxu0 0
        %1984 = vmatpush1.bf16.msra.mxu0 0
        %1985 = vmatprep.subr.bf16.mxu0 0
        %1986 = vmatpush1.bf16.msra.mxu0 0
        %1987 = vmatprep.subr.bf16.mxu0 0
        %1988 = vmatpush1.bf16.msra.mxu0 0
        %1989 = vmatprep.subr.bf16.mxu0 0
        %1990 = vmatpush1.bf16.msra.mxu0 0
        %1991 = vmatprep.subr.bf16.mxu0 0
        %1992 = vmatpush1.bf16.msra.mxu0 0
        %1993 = vmatprep.subr.bf16.mxu0 0
        %1994 = vmatpush1.bf16.msra.mxu0 0
        %1995 = vmatprep.subr.bf16.mxu0 0
        %1996 = vmatpush1.bf16.msra.mxu0 0
        %1997 = vmatprep.subr.bf16.mxu0 0
        %1998 = vmatpush1.bf16.msra.mxu0 0
        %1999 = vmatprep.subr.bf16.mxu0 0
        %2000 = vmatpush1.bf16.msra.mxu0 0
        %2001 = vmatprep.subr.bf16.mxu0 0
        %2002 = vmatpush1.bf16.msra.mxu0 0
        %2003 = vmatprep.mubr.bf16.mxu0 0
        %2004 = vmatmul.mubr.bf16.gmra.mrb[0].mxu0 %v1957
        %v2005 = vpop.f32.mrb[0].mxu0
        %v2006 = vadd.f32 0.0, %v2005
        %v2007 = vpop.f32.mrb[0].mxu0
        %v2008 = vpop.f32.mrb[0].mxu0
        %v2009 = vadd.f32 0.0, %v2008
        %v2010 = vpop.f32.mrb[0].mxu0
        %2011 = vmatprep.mubr.bf16.mxu0 0
        %2012 = vmatmul.mubr.bf16.gmra.mrb[0].mxu0 %v1960
        %v2013 = vpop.f32.mrb[0].mxu0
        %v2014 = vadd.f32 0.0, %v2013
        %v2015 = vpop.f32.mrb[0].mxu0
        %v2016 = vpop.f32.mrb[0].mxu0
        %v2017 = vadd.f32 0.0, %v2016
        %v2018 = vpop.f32.mrb[0].mxu0
        %2019 = vmatprep.mubr.bf16.mxu0 0
        %2020 = vmatmul.mubr.bf16.gmra.mrb[0].mxu0 %v1963
        %v2021 = vpop.f32.mrb[0].mxu0
        %v2022 = vadd.f32 0.0, %v2021
        %v2023 = vpop.f32.mrb[0].mxu0
        %v2024 = vpop.f32.mrb[0].mxu0
        %v2025 = vadd.f32 0.0, %v2024
        %v2026 = vpop.f32.mrb[0].mxu0
        %2027 = vmatprep.mubr.bf16.mxu0 0
        %2028 = vmatmul.mubr.bf16.gmra.mrb[0].mxu0 %v1966
        %v2029 = vpop.f32.mrb[0].mxu0
        %v2030 = vadd.f32 0.0, %v2029
        %v2031 = vpop.f32.mrb[0].mxu0
        %v2032 = vpop.f32.mrb[0].mxu0
        %v2033 = vadd.f32 0.0, %v2032
        %v2034 = vpop.f32.mrb[0].mxu0
        %2035 = vdwg.mxu0
        %v2036 = vadd.f32 %v1917, %v2006
        %v2037 = vadd.f32 %v1918, %v2009
        %v2038 = vadd.f32 %v1919, %v2014
        %v2039 = vadd.f32 %v1920, %v2017
        %v2040 = vadd.f32 %v1921, %v2022
        %v2041 = vadd.f32 %v1922, %v2025
        %v2042 = vadd.f32 %v1923, %v2030
        %v2043 = vadd.f32 %v1924, %v2033
        %v2044 = vld [vmem:[#allocation2] sm:$0xff]
        %v2045 = vld [vmem:[#allocation2 + $0x8] sm:$0xff]
        %v2046 = vld [vmem:[#allocation2 + $0x10] sm:$0xff]
        %v2047 = vld [vmem:[#allocation2 + $0x18] sm:$0xff]
        %v2048 = vld [vmem:[#allocation2 + $0x20] sm:$0xff]
        %v2049 = vld [vmem:[#allocation2 + $0x28] sm:$0xff]
        %v2050 = vld [vmem:[#allocation2 + $0x30] sm:$0xff]
        %v2051 = vld [vmem:[#allocation2 + $0x38] sm:$0xff]
        %v2052 = vadd.f32 %v2044, %v2036
        %v2053 = vadd.f32 %v2045, %v2037
        %v2054 = vadd.f32 %v2046, %v2038
        %v2055 = vadd.f32 %v2047, %v2039
        %v2056 = vadd.f32 %v2048, %v2040
        %v2057 = vadd.f32 %v2049, %v2041
        %v2058 = vadd.f32 %v2050, %v2042
        %v2059 = vadd.f32 %v2051, %v2043
        %2060 = vst.msk [vmem:[#allocation2] sm:$0xff] %vm980, %v2052
        %2061 = vst.msk [vmem:[#allocation2 + $0x8] sm:$0xff] %vm980, %v2053
        %2062 = vst.msk [vmem:[#allocation2 + $0x10] sm:$0xff] %vm980, %v2054
        %2063 = vst.msk [vmem:[#allocation2 + $0x18] sm:$0xff] %vm980, %v2055
        %2064 = vst.msk [vmem:[#allocation2 + $0x20] sm:$0xff] %vm980, %v2056
        %2065 = vst.msk [vmem:[#allocation2 + $0x28] sm:$0xff] %vm980, %v2057
        %2066 = vst.msk [vmem:[#allocation2 + $0x30] sm:$0xff] %vm980, %v2058
        %2067 = vst.msk [vmem:[#allocation2 + $0x38] sm:$0xff] %vm980, %v2059
        // Predicated region
        $region144: #{tpu_custom_call.1} parent=130 // pred_check
          %p2068 = pneg %p819
        $region145: #{tpu_custom_call.1} parent=130 // pred_check_branch
          %2070 = sbr.rel (%p2068) target = $region147
        $region146: #{tpu_custom_call.1} parent=130 // pred_region
          %v2071 = vld [vmem:[#allocation2] sm:$0xff]
          %v2072 = vld [vmem:[#allocation2 + $0x8] sm:$0xff]
          %v2073 = vld [vmem:[#allocation2 + $0x10] sm:$0xff]
          %v2074 = vld [vmem:[#allocation2 + $0x18] sm:$0xff]
          %v2075 = vld [vmem:[#allocation2 + $0x20] sm:$0xff]
          %v2076 = vld [vmem:[#allocation2 + $0x28] sm:$0xff]
          %v2077 = vld [vmem:[#allocation2 + $0x30] sm:$0xff]
          %v2078 = vld [vmem:[#allocation2 + $0x38] sm:$0xff]
          %v2079 = vld [vmem:[%s804] sm:$0x1]
          %v2081 = vlaneseq
          %v2082 = vshrl.u32 %v2081, 7
          %v2083 = vsub.s32 0, %v2082
          %v2084 = vrot.slane %v2079, %v2083
          %v2086 = vadd.f32 %v2071, %v2084
          %v2087 = vadd.f32 %v2072, %v2084
          %v2088 = vadd.f32 %v2073, %v2084
          %v2089 = vadd.f32 %v2074, %v2084
          %v2090 = vadd.f32 %v2075, %v2084
          %v2091 = vadd.f32 %v2076, %v2084
          %v2092 = vadd.f32 %v2077, %v2084
          %v2093 = vadd.f32 %v2078, %v2084
          %2094 = vst.msk [vmem:[%s816] sm:$0xff] %vm980, %v2086
          %2095 = vst.msk [vmem:[%s816 + $0x8] sm:$0xff] %vm980, %v2087
          %2096 = vst.msk [vmem:[%s816 + $0x10] sm:$0xff] %vm980, %v2088
          %2097 = vst.msk [vmem:[%s816 + $0x18] sm:$0xff] %vm980, %v2089
          %2098 = vst.msk [vmem:[%s816 + $0x20] sm:$0xff] %vm980, %v2090
          %2099 = vst.msk [vmem:[%s816 + $0x28] sm:$0xff] %vm980, %v2091
          %2100 = vst.msk [vmem:[%s816 + $0x30] sm:$0xff] %vm980, %v2092
          %2101 = vst.msk [vmem:[%s816 + $0x38] sm:$0xff] %vm980, %v2093
        $region147: #{tpu_custom_call.1} parent=130 // pred_fallthru
          _
        %s2102 = smul.u32 8, %s22
        %p2103 = scmp.lt.s32.totalorder %s21, 1
        %s2104 = scalar_select %p2103, %s21, 1
        %p2105 = scmp.lt.s32.totalorder %s2102, 7
        %s2106 = scalar_select %p2105, %s2102, 7
        %p2107 = scmp.lt.s32.totalorder %s23, 0
        %s2108 = scalar_select %p2107, %s23, 0
        %s2109 = sadd.s32 %s2108, %s2106
        %s2110 = smul.addr %s2104, 8
        %s2111 = sadd.s32 %s2109, %s2110
        %s2112 = smul.addr %s2111, 8
        %s2113 = scalar_lea.vmem %s4, %s2112
        // Predicated region
        $region148: #{tpu_custom_call.1} parent=130 // pred_check
          %p2114 = pneg %p181
        $region149: #{tpu_custom_call.1} parent=130 // pred_check_branch
          %2116 = sbr.rel (%p2114) target = $region151
        $region150: #{tpu_custom_call.1} parent=130 // pred_region
          %s2117 = smul.u32 8, %s22
        $region151: #{tpu_custom_call.1} parent=130 // pred_fallthru
          _
      $region131: #{tpu_custom_call.1} parent=5 // pred_fallthru
        _
      %p2118 = scmp.le.s32.totalorder 2, %s10
      // Predicated region
      $region152: #{tpu_custom_call.1} parent=5 // pred_check
        %p2119 = pneg %p2118
      $region153: #{tpu_custom_call.1} parent=5 // pred_check_branch
        %2121 = sbr.rel (%p2119) target = $region155
      $region154: #{tpu_custom_call.1} parent=5 // pred_region
        %s2122 = ssub.s32 %s10, 2
        // Predicated region
        $region156: #{tpu_custom_call.1} parent=154 // pred_check
          %p2123 = pneg %p187
        $region157: #{tpu_custom_call.1} parent=154 // pred_check_branch
          %2125 = sbr.rel (%p2123) target = $region159
        $region158: #{tpu_custom_call.1} parent=154 // pred_region
          %s2126 = smul.u32 8, %s26
          %p2127 = scmp.lt.s32.totalorder %s25, 1
          %s2128 = scalar_select %p2127, %s25, 1
          %p2129 = scmp.lt.s32.totalorder %s2126, 7
          %s2130 = scalar_select %p2129, %s2126, 7
          %p2131 = scmp.lt.s32.totalorder %s27, 0
          %s2132 = scalar_select %p2131, %s27, 0
          %s2133 = sadd.s32 %s2132, %s2130
          %s2134 = smul.addr %s2128, 8
          %s2135 = sadd.s32 %s2133, %s2134
          %s2136 = smul.addr %s2135, 8
          %s2137 = scalar_lea.vmem %s4, %s2136
        $region159: #{tpu_custom_call.1} parent=154 // pred_fallthru
          _
      $region155: #{tpu_custom_call.1} parent=5 // pred_fallthru
        _
    $region6: #{tpu_custom_call.1} parent=1 // loop_footer
      %s14 = sadd.s32 1, %s10
    $region7: #{tpu_custom_call.1} parent=1 // loop_footer_branch
      %9 = sbr.rel target = $region3
    $region8: #{tpu_custom_call.1} parent=1 // loop_exit
      _

// kernel: tpu_custom_call.1
$region0: #{tpu_custom_call.1}
  #allocation0 [shape = 'u32[]', space=smem, size = 0x4, offset = 0x4, fixed_abs, tag = 'smem constant byte address 0x4 - core index']
  #allocation1 [shape = 'u32[144,128]{1,0:T(1,128)}', space=vmem, size = 0x12000, scoped, tag = 'internal scratch']
  #allocation2 [shape = 'f32[64,4]{1,0:T(8,128)}', space=vmem, size = 0x8000, scoped, tag = 'scratch operand']
  %s0 = inlined_call_operand.vmem [shape: bf16[2,4,9,9,4], index: 0, kind: input, shape index: {}]
  %s1 = inlined_call_operand.vmem [shape: bf16[2,4,9,9,4], index: 1, kind: input, shape index: {}]
  %s2 = inlined_call_operand.vmem [shape: bf16[3,3,4,4], index: 2, kind: input, shape index: {}]
  %s3 = inlined_call_operand.vmem [shape: f32[1,4], index: 3, kind: input, shape index: {}]
  %s4 = inlined_call_operand.vmem [shape: f32[2,64,4], index: 4, kind: output, shape index: {}]
  %s5 = sld [smem:[#allocation0]]
  $region160: #{tpu_custom_call.1} parent=0
    _
  %s7 = ssub.s32 1, %s5
  %s8 = scalar_select 0, %s7, %s5
  $region1: #{tpu_custom_call.1} parent=0
    #allocation3 [shape = 'u8[262144]{0}', space=vmem, size = 0x40000, scoped, tag = 'input window, operand 0']
    #allocation4 [shape = 'u8[32768]{0}', space=vmem, size = 0x8000, scoped, tag = 'input window, operand 1']
    loop: start=0, step=1, limit=4
    $region2: #{tpu_custom_call.1} parent=1 // loop_pre_header
      _
    $region3: #{tpu_custom_call.1} parent=1 // loop_header
      %s10 = sphi 0, %s14
      %p11 = scmp.ge.s32.totalorder %s10, 4
      %s17 = sphi 0, %s43
      %s18 = sphi 0, %s39
      %s19 = sphi 0, %s35
      %s20 = sphi 0, %s31
      %s21 = sphi 0, %s17
      %s22 = sphi 0, %s18
      %s23 = sphi 0, %s19
      %s24 = sphi 0, %s20
      %s25 = sphi 0, %s21
      %s26 = sphi 0, %s22
      %s27 = sphi 0, %s23
      %s28 = sphi 0, %s24
      %s50 = sphi 0, %s52
      %s53 = sphi 0, %s50
      %s54 = sphi 0, %s53
      %s70 = sphi 0, %s54
      %s84 = sphi 0, %s86
      %s87 = sphi 0, %s84
      %s88 = sphi 0, %s87
      %s104 = sphi 0, %s88
      %s112 = sphi 0, %s114
      %s115 = sphi 0, %s112
      %s116 = sphi 0, %s115
      %s132 = sphi 0, %s116
      %s138 = sphi 0, %s140
      %s141 = sphi 0, %s138
      %s142 = sphi 0, %s141
      %s158 = sphi 0, %s142
      %s168 = sphi 0, %s170
      %s171 = sphi 0, %s168
      %s172 = sphi 0, %s171
      %s188 = sphi 0, %s172
    $region4: #{tpu_custom_call.1} parent=1 // loop_header_branch
      %13 = sbr.rel (%p11) target = $region8
    $region5: #{tpu_custom_call.1} parent=1 // loop_body
      %s15 = ssub.s32 %s10, 1
      %s16 = ssub.s32 %s10, 2
      %s29 = sadd.s32 1, %s20
      %p30 = scmp.ge.s32.totalorder %s29, 1
      %s31 = scalar_select %p30, 0, %s29
      %s32 = sadd.s32 1, %s19
      %s33 = scalar_select %p30, %s32, %s19
      %p34 = scmp.ge.s32.totalorder %s33, 1
      %s35 = scalar_select %p34, 0, %s33
      %s36 = sadd.s32 1, %s18
      %s37 = scalar_select %p34, %s36, %s18
      %p38 = scmp.ge.s32.totalorder %s37, 1
      %s39 = scalar_select %p38, 0, %s37
      %s40 = sadd.s32 1, %s17
      %s41 = scalar_select %p38, %s40, %s17
      %p42 = scmp.ge.s32.totalorder %s41, 2
      %s43 = scalar_select %p42, 0, %s41
      %s44 = ssub.s32 %s17, %s43
      %s45 = ssub.s32 %s18, %s39
      %s46 = sor.u32 %s44, %s45
      %s47 = ssub.s32 %s20, %s31
      %s48 = sor.u32 %s46, %s47
      %p49 = scmp.eq.s32.totalorder %s48, 0
      %s51 = sadd.s32 %s50, 1
      %s52 = scalar_select %p49, %s50, %s51
      %p55 = pneg %p49
      %p56 = scmp.eq.s32.totalorder %s10, 1
      %p57 = por %p55, %p56
      %p58 = scmp.ne.s32.totalorder %s50, %s53
      %p59 = scmp.eq.s32.totalorder %s10, 0
      %p60 = por %p58, %p59
      %p61 = scmp.ne.s32.totalorder %s50, %s53
      %p62 = scmp.eq.s32.totalorder %s15, 1
      %p63 = por %p61, %p62
      %p64 = scmp.ne.s32.totalorder %s53, %s54
      %p65 = scmp.eq.s32.totalorder %s15, 0
      %p66 = por %p64, %p65
      %p67 = scmp.ne.s32.totalorder %s53, %s54
      %p68 = scmp.eq.s32.totalorder %s16, 1
      %p69 = por %p67, %p68
      %p71 = scmp.ne.s32.totalorder %s54, %s70
      %p72 = scmp.eq.s32.totalorder %s16, 0
      %p73 = por %p71, %p72
      %s74 = smul.u32 %s18, 8
      %s75 = sadd.s32 %s74, 8
      %s76 = smul.u32 %s39, 8
      %s77 = sadd.s32 %s76, 8
      %s78 = ssub.s32 %s17, %s43
      %s79 = ssub.s32 %s75, %s77
      %s80 = sor.u32 %s78, %s79
      %s81 = ssub.s32 %s20, %s31
      %s82 = sor.u32 %s80, %s81
      %p83 = scmp.eq.s32.totalorder %s82, 0
      %s85 = sadd.s32 %s84, 1
      %s86 = scalar_select %p83, %s84, %s85
      %p89 = pneg %p83
      %p90 = scmp.eq.s32.totalorder %s10, 1
      %p91 = por %p89, %p90
      %p92 = scmp.ne.s32.totalorder %s84, %s87
      %p93 = scmp.eq.s32.totalorder %s10, 0
      %p94 = por %p92, %p93
      %p95 = scmp.ne.s32.totalorder %s84, %s87
      %p96 = scmp.eq.s32.totalorder %s15, 1
      %p97 = por %p95, %p96
      %p98 = scmp.ne.s32.totalorder %s87, %s88
      %p99 = scmp.eq.s32.totalorder %s15, 0
      %p100 = por %p98, %p99
      %p101 = scmp.ne.s32.totalorder %s87, %s88
      %p102 = scmp.eq.s32.totalorder %s16, 1
      %p103 = por %p101, %p102
      %p105 = scmp.ne.s32.totalorder %s88, %s104
      %p106 = scmp.eq.s32.totalorder %s16, 0
      %p107 = por %p105, %p106
      %s108 = ssub.s32 %s20, %s31
      %s109 = ssub.s32 %s19, %s35
      %s110 = sor.u32 %s108, %s109
      %p111 = scmp.eq.s32.totalorder %s110, 0
      %s113 = sadd.s32 %s112, 1
      %s114 = scalar_select %p111, %s112, %s113
      %p117 = pneg %p111
      %p118 = scmp.eq.s32.totalorder %s10, 1
      %p119 = por %p117, %p118
      %p120 = scmp.ne.s32.totalorder %s112, %s115
      %p121 = scmp.eq.s32.totalorder %s10, 0
      %p122 = por %p120, %p121
      %p123 = scmp.ne.s32.totalorder %s112, %s115
      %p124 = scmp.eq.s32.totalorder %s15, 1
      %p125 = por %p123, %p124
      %p126 = scmp.ne.s32.totalorder %s115, %s116
      %p127 = scmp.eq.s32.totalorder %s15, 0
      %p128 = por %p126, %p127
      %p129 = scmp.ne.s32.totalorder %s115, %s116
      %p130 = scmp.eq.s32.totalorder %s16, 1
      %p131 = por %p129, %p130
      %p133 = scmp.ne.s32.totalorder %s116, %s132
      %p134 = scmp.eq.s32.totalorder %s16, 0
      %p135 = por %p133, %p134
      %s136 = ssub.s32 %s19, %s35
      %p137 = scmp.eq.s32.totalorder %s136, 0
      %s139 = sadd.s32 %s138, 1
      %s140 = scalar_select %p137, %s138, %s139
      %p143 = pneg %p137
      %p144 = scmp.eq.s32.totalorder %s10, 1
      %p145 = por %p143, %p144
      %p146 = scmp.ne.s32.totalorder %s138, %s141
      %p147 = scmp.eq.s32.totalorder %s10, 0
      %p148 = por %p146, %p147
      %p149 = scmp.ne.s32.totalorder %s138, %s141
      %p150 = scmp.eq.s32.totalorder %s15, 1
      %p151 = por %p149, %p150
      %p152 = scmp.ne.s32.totalorder %s141, %s142
      %p153 = scmp.eq.s32.totalorder %s15, 0
      %p154 = por %p152, %p153
      %p155 = scmp.ne.s32.totalorder %s141, %s142
      %p156 = scmp.eq.s32.totalorder %s16, 1
      %p157 = por %p155, %p156
      %p159 = scmp.ne.s32.totalorder %s142, %s158
      %p160 = scmp.eq.s32.totalorder %s16, 0
      %p161 = por %p159, %p160
      %s162 = ssub.s32 %s17, %s43
      %s163 = ssub.s32 %s18, %s39
      %s164 = sor.u32 %s162, %s163
      %s165 = ssub.s32 %s19, %s35
      %s166 = sor.u32 %s164, %s165
      %p167 = scmp.eq.s32.totalorder %s166, 0
      %s169 = sadd.s32 %s168, 1
      %s170 = scalar_select %p167, %s168, %s169
      %p173 = pneg %p167
      %p174 = scmp.eq.s32.totalorder %s10, 1
      %p175 = por %p173, %p174
      %p176 = scmp.ne.s32.totalorder %s168, %s171
      %p177 = scmp.eq.s32.totalorder %s10, 0
      %p178 = por %p176, %p177
      %p179 = scmp.ne.s32.totalorder %s168, %s171
      %p180 = scmp.eq.s32.totalorder %s15, 1
      %p181 = por %p179, %p180
      %p182 = scmp.ne.s32.totalorder %s171, %s172
      %p183 = scmp.eq.s32.totalorder %s15, 0
      %p184 = por %p182, %p183
      %p185 = scmp.ne.s32.totalorder %s171, %s172
      %p186 = scmp.eq.s32.totalorder %s16, 1
      %p187 = por %p185, %p186
      %p189 = scmp.ne.s32.totalorder %s172, %s188
      %p190 = scmp.eq.s32.totalorder %s16, 0
      %p191 = por %p189, %p190
      %p192 = scmp.le.s32.totalorder 1, %s10
      %p193 = scmp.lt.s32.totalorder %s10, 3
      %p194 = pnand %p192, %p193
      %p195 = pneg %p194
      // Predicated region
      $region9: #{tpu_custom_call.1} parent=5 // pred_check
        _
      $region10: #{tpu_custom_call.1} parent=5 // pred_check_branch
        %197 = sbr.rel (%p194) target = $region12
      $region11: #{tpu_custom_call.1} parent=5 // pred_region
        %s198 = ssub.s32 %s10, 1
        // Predicated region
        $region13: #{tpu_custom_call.1} parent=11 // pred_check
          %p199 = pneg %p128
        $region14: #{tpu_custom_call.1} parent=11 // pred_check_branch
          %201 = sbr.rel (%p199) target = $region16
        $region15: #{tpu_custom_call.1} parent=11 // pred_region
          %p202 = scmp.lt.s32.totalorder %s24, 0
          %s203 = scalar_select %p202, %s24, 0
          %p204 = scmp.lt.s32.totalorder %s23, 0
          %s205 = scalar_select %p204, %s23, 0
          %s206 = sadd.s32 %s205, %s203
          %s207 = smul.addr %s206, 2
          %s208 = scalar_lea.vmem %s2, %s207
        $region16: #{tpu_custom_call.1} parent=11 // pred_fallthru
          _
        // Predicated region
        $region17: #{tpu_custom_call.1} parent=11 // pred_check
          %p209 = pneg %p154
        $region18: #{tpu_custom_call.1} parent=11 // pred_check_branch
          %211 = sbr.rel (%p209) target = $region20
        $region19: #{tpu_custom_call.1} parent=11 // pred_region
          %p212 = scmp.lt.s32.totalorder %s23, 0
          %s213 = scalar_select %p212, %s23, 0
          %s214 = scalar_lea.vmem %s3, %s213
        $region20: #{tpu_custom_call.1} parent=11 // pred_fallthru
          _
      $region12: #{tpu_custom_call.1} parent=5 // pred_fallthru
        _
      %p215 = scmp.lt.s32.totalorder %s10, 2
      // Predicated region
      $region21: #{tpu_custom_call.1} parent=5 // pred_check
        %p216 = pneg %p215
      $region22: #{tpu_custom_call.1} parent=5 // pred_check_branch
        %218 = sbr.rel (%p216) target = $region24
      $region23: #{tpu_custom_call.1} parent=5 // pred_region
        // Predicated region
        $region25: #{tpu_custom_call.1} parent=23 // pred_check
          %p219 = pneg %p60
        $region26: #{tpu_custom_call.1} parent=23 // pred_check_branch
          %221 = sbr.rel (%p219) target = $region28
        $region27: #{tpu_custom_call.1} parent=23 // pred_region
          %s222 = sand.u32 %s50, 1
          %s223 = sand.u32 %s50, 1
          %s224 = smul.addr %s223, 256
          %s225 = scalar_lea.vmem [#allocation3], %s224
          %s226 = smul.u32 8, %s18
          %s227 = ssub.s32 9, %s226
          %p228 = scmp.lt.s32.totalorder %s227, 8
          %s229 = scalar_select %p228, %s227, 8
          %s230 = smul.u32 256, %s229
          %s231 = smul.u32 %s230, 2
          %p232 = scmp.ne.s32.totalorder 0, %s231
          %s233 = smul.addr %s226, 2
          %s234 = sadd.s32 %s20, %s233
          %s235 = smul.addr %s17, 72
          %s236 = sadd.s32 %s234, %s235
          %s237 = smul.addr %s236, 4
          %s238 = scalar_lea.vmem %s0, %s237
          %s239 = smul.u32 %s229, 2
          // Predicated region
          $region29: #{tpu_custom_call.1} parent=27 // pred_check
            %p240 = pneg %p232
          $region30: #{tpu_custom_call.1} parent=27 // pred_check_branch
            %242 = sbr.rel (%p240) target = $region32
          $region31: #{tpu_custom_call.1} parent=27 // pred_region
            // Predicated region
            $region33: #{tpu_custom_call.1} parent=31 // pred_check
              _
            $region34: #{tpu_custom_call.1} parent=31 // pred_check_branch
              %244 = sbr.rel target = $region36
            $region35: #{tpu_custom_call.1} parent=31 // pred_region
              // Predicated region
              $region55: #{tpu_custom_call.1} parent=35 // pred_check
                _
              $region56: #{tpu_custom_call.1} parent=35 // pred_check_branch
                %425 = sbr.rel (0) target = $region58
              $region57: #{tpu_custom_call.1} parent=35 // pred_region
                %s426 = sshrl.u32 %s239, 4
                // While loop
                $region59: #{tpu_custom_call.1} parent=57 // loop_pre_header
                  _
                $region60: #{tpu_custom_call.1} parent=57 // loop_header
                  %s428 = sphi 0, %s430
                  %p429 = scmp.ge.s32.totalorder %s428, %s426
                  %s433 = sphi 0, %s438
                  %s434 = sphi %s238, %s441
                  %s435 = sphi %s225, %s442
                $region61: #{tpu_custom_call.1} parent=57 // loop_header_branch
                  %432 = sbr.rel (%p429) target = $region65
                $region62: #{tpu_custom_call.1} parent=57 // loop_body
                  %s436 = sadd.s32 1, %s433
                  %p437 = scmp.ge.s32.totalorder %s436, %s426
                  %s438 = scalar_select %p437, 0, %s436
                  %s439 = smul.u32 %s438, 64
                  %s440 = smul.u32 %s438, 64
                  %s441 = scalar_lea.vmem %s238, %s439
                  %s442 = scalar_lea.vmem %s225, %s440 [#allocation3]
                $region63: #{tpu_custom_call.1} parent=57 // loop_footer
                  %s430 = sadd.s32 %s428, 1
                $region64: #{tpu_custom_call.1} parent=57 // loop_footer_branch
                  %427 = sbr.rel target = $region60
                $region65: #{tpu_custom_call.1} parent=57 // loop_exit
                  _
                %s443 = sshrl.u32 %s239, 4
                %s444 = sand.u32 %s239, 15
                %s445 = smul.u32 %s443, 16
                %s446 = smul.u32 4, %s445
                %s447 = scalar_lea.vmem %s238, %s446
                %s448 = smul.u32 4, %s445
                %s449 = scalar_lea.vmem %s225, %s448 [#allocation3]
                // While loop
                $region66: #{tpu_custom_call.1} parent=57 // loop_pre_header
                  _
                $region67: #{tpu_custom_call.1} parent=57 // loop_header
                  %s451 = sphi 0, %s453
                  %p452 = scmp.ge.s32.totalorder %s451, %s444
                  %s456 = sphi 0, %s461
                  %s457 = sphi %s447, %s464
                  %s458 = sphi %s449, %s465
                $region68: #{tpu_custom_call.1} parent=57 // loop_header_branch
                  %455 = sbr.rel (%p452) target = $region72
                $region69: #{tpu_custom_call.1} parent=57 // loop_body
                  %s459 = sadd.s32 1, %s456
                  %p460 = scmp.ge.s32.totalorder %s459, %s444
                  %s461 = scalar_select %p460, 0, %s459
                  %s462 = smul.u32 %s461, 4
                  %s463 = smul.u32 %s461, 4
                  %s464 = scalar_lea.vmem %s447, %s462
                  %s465 = scalar_lea.vmem %s449, %s463 [#allocation3]
                $region70: #{tpu_custom_call.1} parent=57 // loop_footer
                  %s453 = sadd.s32 %s451, 1
                $region71: #{tpu_custom_call.1} parent=57 // loop_footer_branch
                  %450 = sbr.rel target = $region67
                $region72: #{tpu_custom_call.1} parent=57 // loop_exit
                  _
                %s467 = sshrl.u32 %s239, 4
                // While loop
                $region73: #{tpu_custom_call.1} parent=57 // loop_pre_header
                  _
                $region74: #{tpu_custom_call.1} parent=57 // loop_header
                  %s469 = sphi 0, %s471
                  %p470 = scmp.ge.s32.totalorder %s469, %s467
                  %s474 = sphi 0, %s607
                  %s475 = sphi %s238, %s610
                  %s476 = sphi %s225, %s611
                $region75: #{tpu_custom_call.1} parent=57 // loop_header_branch
                  %473 = sbr.rel (%p470) target = $region79
                $region76: #{tpu_custom_call.1} parent=57 // loop_body
                  %v477 = vld [vmem:[%s475] sm:$0xf]
                  %478 = vst [vmem:[%s476] sm:$0xf] %v477
                  %v479 = vld [vmem:[%s475 + $0x4] sm:$0xf]
                  %480 = vst [vmem:[%s476 + $0x4] sm:$0xf] %v479
                  %v481 = vld [vmem:[%s475 + $0x8] sm:$0xf]
                  %482 = vst [vmem:[%s476 + $0x8] sm:$0xf] %v481
                  %v483 = vld [vmem:[%s475 + $0xc] sm:$0xf]
                  %484 = vst [vmem:[%s476 + $0xc] sm:$0xf] %v483
                  %v485 = vld [vmem:[%s475 + $0x10] sm:$0xf]
                  %486 = vst [vmem:[%s476 + $0x10] sm:$0xf] %v485
                  %v487 = vld [vmem:[%s475 + $0x14] sm:$0xf]
                  %488 = vst [vmem:[%s476 + $0x14] sm:$0xf] %v487
                  %v489 = vld [vmem:[%s475 + $0x18] sm:$0xf]
                  %490 = vst [vmem:[%s476 + $0x18] sm:$0xf] %v489
                  %v491 = vld [vmem:[%s475 + $0x1c] sm:$0xf]
                  %492 = vst [vmem:[%s476 + $0x1c] sm:$0xf] %v491
                  %v493 = vld [vmem:[%s475 + $0x20] sm:$0xf]
                  %494 = vst [vmem:[%s476 + $0x20] sm:$0xf] %v493
                  %v495 = vld [vmem:[%s475 + $0x24] sm:$0xf]
                  %496 = vst [vmem:[%s476 + $0x24] sm:$0xf] %v495
                  %v497 = vld [vmem:[%s475 + $0x28] sm:$0xf]
                  %498 = vst [vmem:[%s476 + $0x28] sm:$0xf] %v497
                  %v499 = vld [vmem:[%s475 + $0x2c] sm:$0xf]
                  %500 = vst [vmem:[%s476 + $0x2c] sm:$0xf] %v499
                  %v501 = vld [vmem:[%s475 + $0x30] sm:$0xf]
                  %502 = vst [vmem:[%s476 + $0x30] sm:$0xf] %v501
                  %v503 = vld [vmem:[%s475 + $0x34] sm:$0xf]
                  %504 = vst [vmem:[%s476 + $0x34] sm:$0xf] %v503
                  %v505 = vld [vmem:[%s475 + $0x38] sm:$0xf]
                  %506 = vst [vmem:[%s476 + $0x38] sm:$0xf] %v505
                  %v507 = vld [vmem:[%s475 + $0x3c] sm:$0xf]
                  %508 = vst [vmem:[%s476 + $0x3c] sm:$0xf] %v507
                  %v509 = vld [vmem:[%s475 + $0x48] sm:$0xf]
                  %510 = vst [vmem:[%s476 + $0x40] sm:$0xf] %v509
                  %v511 = vld [vmem:[%s475 + $0x4c] sm:$0xf]
                  %512 = vst [vmem:[%s476 + $0x44] sm:$0xf] %v511
                  %v513 = vld [vmem:[%s475 + $0x50] sm:$0xf]
                  %514 = vst [vmem:[%s476 + $0x48] sm:$0xf] %v513
                  %v515 = vld [vmem:[%s475 + $0x54] sm:$0xf]
                  %516 = vst [vmem:[%s476 + $0x4c] sm:$0xf] %v515
                  %v517 = vld [vmem:[%s475 + $0x58] sm:$0xf]
                  %518 = vst [vmem:[%s476 + $0x50] sm:$0xf] %v517
                  %v519 = vld [vmem:[%s475 + $0x5c] sm:$0xf]
                  %520 = vst [vmem:[%s476 + $0x54] sm:$0xf] %v519
                  %v521 = vld [vmem:[%s475 + $0x60] sm:$0xf]
                  %522 = vst [vmem:[%s476 + $0x58] sm:$0xf] %v521
                  %v523 = vld [vmem:[%s475 + $0x64] sm:$0xf]
                  %524 = vst [vmem:[%s476 + $0x5c] sm:$0xf] %v523
                  %v525 = vld [vmem:[%s475 + $0x68] sm:$0xf]
                  %526 = vst [vmem:[%s476 + $0x60] sm:$0xf] %v525
                  %v527 = vld [vmem:[%s475 + $0x6c] sm:$0xf]
                  %528 = vst [vmem:[%s476 + $0x64] sm:$0xf] %v527
                  %v529 = vld [vmem:[%s475 + $0x70] sm:$0xf]
                  %530 = vst [vmem:[%s476 + $0x68] sm:$0xf] %v529
                  %v531 = vld [vmem:[%s475 + $0x74] sm:$0xf]
                  %532 = vst [vmem:[%s476 + $0x6c] sm:$0xf] %v531
                  %v533 = vld [vmem:[%s475 + $0x78] sm:$0xf]
                  %534 = vst [vmem:[%s476 + $0x70] sm:$0xf] %v533
                  %v535 = vld [vmem:[%s475 + $0x7c] sm:$0xf]
                  %536 = vst [vmem:[%s476 + $0x74] sm:$0xf] %v535
                  %v537 = vld [vmem:[%s475 + $0x80] sm:$0xf]
                  %538 = vst [vmem:[%s476 + $0x78] sm:$0xf] %v537
                  %v539 = vld [vmem:[%s475 + $0x84] sm:$0xf]
                  %540 = vst [vmem:[%s476 + $0x7c] sm:$0xf] %v539
                  %v541 = vld [vmem:[%s475 + $0x90] sm:$0xf]
                  %542 = vst [vmem:[%s476 + $0x80] sm:$0xf] %v541
                  %v543 = vld [vmem:[%s475 + $0x94] sm:$0xf]
                  %544 = vst [vmem:[%s476 + $0x84] sm:$0xf] %v543
                  %v545 = vld [vmem:[%s475 + $0x98] sm:$0xf]
                  %546 = vst [vmem:[%s476 + $0x88] sm:$0xf] %v545
                  %v547 = vld [vmem:[%s475 + $0x9c] sm:$0xf]
                  %548 = vst [vmem:[%s476 + $0x8c] sm:$0xf] %v547
                  %v549 = vld [vmem:[%s475 + $0xa0] sm:$0xf]
                  %550 = vst [vmem:[%s476 + $0x90] sm:$0xf] %v549
                  %v551 = vld [vmem:[%s475 + $0xa4] sm:$0xf]
                  %552 = vst [vmem:[%s476 + $0x94] sm:$0xf] %v551
                  %v553 = vld [vmem:[%s475 + $0xa8] sm:$0xf]
                  %554 = vst [vmem:[%s476 + $0x98] sm:$0xf] %v553
                  %v555 = vld [vmem:[%s475 + $0xac] sm:$0xf]
                  %556 = vst [vmem:[%s476 + $0x9c] sm:$0xf] %v555
                  %v557 = vld [vmem:[%s475 + $0xb0] sm:$0xf]
                  %558 = vst [vmem:[%s476 + $0xa0] sm:$0xf] %v557
                  %v559 = vld [vmem:[%s475 + $0xb4] sm:$0xf]
                  %560 = vst [vmem:[%s476 + $0xa4] sm:$0xf] %v559
                  %v561 = vld [vmem:[%s475 + $0xb8] sm:$0xf]
                  %562 = vst [vmem:[%s476 + $0xa8] sm:$0xf] %v561
                  %v563 = vld [vmem:[%s475 + $0xbc] sm:$0xf]
                  %564 = vst [vmem:[%s476 + $0xac] sm:$0xf] %v563
                  %v565 = vld [vmem:[%s475 + $0xc0] sm:$0xf]
                  %566 = vst [vmem:[%s476 + $0xb0] sm:$0xf] %v565
                  %v567 = vld [vmem:[%s475 + $0xc4] sm:$0xf]
                  %568 = vst [vmem:[%s476 + $0xb4] sm:$0xf] %v567
                  %v569 = vld [vmem:[%s475 + $0xc8] sm:$0xf]
                  %570 = vst [vmem:[%s476 + $0xb8] sm:$0xf] %v569
                  %v571 = vld [vmem:[%s475 + $0xcc] sm:$0xf]
                  %572 = vst [vmem:[%s476 + $0xbc] sm:$0xf] %v571
                  %v573 = vld [vmem:[%s475 + $0xd8] sm:$0xf]
                  %574 = vst [vmem:[%s476 + $0xc0] sm:$0xf] %v573
                  %v575 = vld [vmem:[%s475 + $0xdc] sm:$0xf]
                  %576 = vst [vmem:[%s476 + $0xc4] sm:$0xf] %v575
                  %v577 = vld [vmem:[%s475 + $0xe0] sm:$0xf]
                  %578 = vst [vmem:[%s476 + $0xc8] sm:$0xf] %v577
                  %v579 = vld [vmem:[%s475 + $0xe4] sm:$0xf]
                  %580 = vst [vmem:[%s476 + $0xcc] sm:$0xf] %v579
                  %v581 = vld [vmem:[%s475 + $0xe8] sm:$0xf]
                  %582 = vst [vmem:[%s476 + $0xd0] sm:$0xf] %v581
                  %v583 = vld [vmem:[%s475 + $0xec] sm:$0xf]
                  %584 = vst [vmem:[%s476 + $0xd4] sm:$0xf] %v583
                  %v585 = vld [vmem:[%s475 + $0xf0] sm:$0xf]
                  %586 = vst [vmem:[%s476 + $0xd8] sm:$0xf] %v585
                  %v587 = vld [vmem:[%s475 + $0xf4] sm:$0xf]
                  %588 = vst [vmem:[%s476 + $0xdc] sm:$0xf] %v587
                  %v589 = vld [vmem:[%s475 + $0xf8] sm:$0xf]
                  %590 = vst [vmem:[%s476 + $0xe0] sm:$0xf] %v589
                  %v591 = vld [vmem:[%s475 + $0xfc] sm:$0xf]
                  %592 = vst [vmem:[%s476 + $0xe4] sm:$0xf] %v591
                  %v593 = vld [vmem:[%s475 + $0x100] sm:$0xf]
                  %594 = vst [vmem:[%s476 + $0xe8] sm:$0xf] %v593
                  %v595 = vld [vmem:[%s475 + $0x104] sm:$0xf]
                  %596 = vst [vmem:[%s476 + $0xec] sm:$0xf] %v595
                  %v597 = vld [vmem:[%s475 + $0x108] sm:$0xf]
                  %598 = vst [vmem:[%s476 + $0xf0] sm:$0xf] %v597
                  %v599 = vld [vmem:[%s475 + $0x10c] sm:$0xf]
                  %600 = vst [vmem:[%s476 + $0xf4] sm:$0xf] %v599
                  %v601 = vld [vmem:[%s475 + $0x110] sm:$0xf]
                  %602 = vst [vmem:[%s476 + $0xf8] sm:$0xf] %v601
                  %v603 = vld [vmem:[%s475 + $0x114] sm:$0xf]
                  %604 = vst [vmem:[%s476 + $0xfc] sm:$0xf] %v603
                  %s605 = sadd.s32 1, %s474
                  %p606 = scmp.ge.s32.totalorder %s605, %s467
                  %s607 = scalar_select %p606, 0, %s605
                  %s608 = smul.u32 %s607, 64
                  %s609 = smul.u32 %s607, 64
                  %s610 = scalar_lea.vmem %s238, %s608
                  %s611 = scalar_lea.vmem %s225, %s609 [#allocation3]
                $region77: #{tpu_custom_call.1} parent=57 // loop_footer
                  %s471 = sadd.s32 %s469, 1
                $region78: #{tpu_custom_call.1} parent=57 // loop_footer_branch
                  %468 = sbr.rel target = $region74
                $region79: #{tpu_custom_call.1} parent=57 // loop_exit
                  _
                %s612 = sshrl.u32 %s239, 4
                %s613 = sand.u32 %s239, 15
                %s614 = smul.u32 %s612, 16
                %s615 = smul.u32 4, %s614
                %s616 = scalar_lea.vmem %s238, %s615
                %s617 = smul.u32 4, %s614
                %s618 = scalar_lea.vmem %s225, %s617 [#allocation3]
                // While loop
                $region80: #{tpu_custom_call.1} parent=57 // loop_pre_header
                  _
                $region81: #{tpu_custom_call.1} parent=57 // loop_header
                  %s620 = sphi 0, %s622
                  %p621 = scmp.ge.s32.totalorder %s620, %s613
                  %s625 = sphi 0, %s638
                  %s626 = sphi %s616, %s641
                  %s627 = sphi %s618, %s642
                $region82: #{tpu_custom_call.1} parent=57 // loop_header_branch
                  %624 = sbr.rel (%p621) target = $region86
                $region83: #{tpu_custom_call.1} parent=57 // loop_body
                  %v628 = vld [vmem:[%s626] sm:$0xf]
                  %629 = vst [vmem:[%s627] sm:$0xf] %v628
                  %v630 = vld [vmem:[%s626 + $0x48] sm:$0xf]
                  %631 = vst [vmem:[%s627 + $0x40] sm:$0xf] %v630
                  %v632 = vld [vmem:[%s626 + $0x90] sm:$0xf]
                  %633 = vst [vmem:[%s627 + $0x80] sm:$0xf] %v632
                  %v634 = vld [vmem:[%s626 + $0xd8] sm:$0xf]
                  %635 = vst [vmem:[%s627 + $0xc0] sm:$0xf] %v634
                  %s636 = sadd.s32 1, %s625
                  %p637 = scmp.ge.s32.totalorder %s636, %s613
                  %s638 = scalar_select %p637, 0, %s636
                  %s639 = smul.u32 %s638, 4
                  %s640 = smul.u32 %s638, 4
                  %s641 = scalar_lea.vmem %s616, %s639
                  %s642 = scalar_lea.vmem %s618, %s640 [#allocation3]
                $region84: #{tpu_custom_call.1} parent=57 // loop_footer
                  %s622 = sadd.s32 %s620, 1
                $region85: #{tpu_custom_call.1} parent=57 // loop_footer_branch
                  %619 = sbr.rel target = $region81
                $region86: #{tpu_custom_call.1} parent=57 // loop_exit
                  _
              $region58: #{tpu_custom_call.1} parent=35 // pred_fallthru
                _
            $region36: #{tpu_custom_call.1} parent=31 // pred_fallthru
              _
            // Predicated region
            $region37: #{tpu_custom_call.1} parent=31 // pred_check
              _
            $region38: #{tpu_custom_call.1} parent=31 // pred_check_branch
              %246 = sbr.rel (0) target = $region40
            $region39: #{tpu_custom_call.1} parent=31 // pred_region
              %s248 = sshrl.u32 %s239, 4
              // While loop
              $region41: #{tpu_custom_call.1} parent=39 // loop_pre_header
                _
              $region42: #{tpu_custom_call.1} parent=39 // loop_header
                %s250 = sphi 0, %s252
                %p251 = scmp.ge.s32.totalorder %s250, %s248
                %s255 = sphi 0, %s388
                %s256 = sphi %s238, %s391
                %s257 = sphi %s225, %s392
              $region43: #{tpu_custom_call.1} parent=39 // loop_header_branch
                %254 = sbr.rel (%p251) target = $region47
              $region44: #{tpu_custom_call.1} parent=39 // loop_body
                %v258 = vld [vmem:[%s256] sm:$0xf]
                %259 = vst [vmem:[%s257] sm:$0xf] %v258
                %v260 = vld [vmem:[%s256 + $0x4] sm:$0xf]
                %261 = vst [vmem:[%s257 + $0x4] sm:$0xf] %v260
                %v262 = vld [vmem:[%s256 + $0x8] sm:$0xf]
                %263 = vst [vmem:[%s257 + $0x8] sm:$0xf] %v262
                %v264 = vld [vmem:[%s256 + $0xc] sm:$0xf]
                %265 = vst [vmem:[%s257 + $0xc] sm:$0xf] %v264
                %v266 = vld [vmem:[%s256 + $0x10] sm:$0xf]
                %267 = vst [vmem:[%s257 + $0x10] sm:$0xf] %v266
                %v268 = vld [vmem:[%s256 + $0x14] sm:$0xf]
                %269 = vst [vmem:[%s257 + $0x14] sm:$0xf] %v268
                %v270 = vld [vmem:[%s256 + $0x18] sm:$0xf]
                %271 = vst [vmem:[%s257 + $0x18] sm:$0xf] %v270
                %v272 = vld [vmem:[%s256 + $0x1c] sm:$0xf]
                %273 = vst [vmem:[%s257 + $0x1c] sm:$0xf] %v272
                %v274 = vld [vmem:[%s256 + $0x20] sm:$0xf]
                %275 = vst [vmem:[%s257 + $0x20] sm:$0xf] %v274
                %v276 = vld [vmem:[%s256 + $0x24] sm:$0xf]
                %277 = vst [vmem:[%s257 + $0x24] sm:$0xf] %v276
                %v278 = vld [vmem:[%s256 + $0x28] sm:$0xf]
                %279 = vst [vmem:[%s257 + $0x28] sm:$0xf] %v278
                %v280 = vld [vmem:[%s256 + $0x2c] sm:$0xf]
                %281 = vst [vmem:[%s257 + $0x2c] sm:$0xf] %v280
                %v282 = vld [vmem:[%s256 + $0x30] sm:$0xf]
                %283 = vst [vmem:[%s257 + $0x30] sm:$0xf] %v282
                %v284 = vld [vmem:[%s256 + $0x34] sm:$0xf]
                %285 = vst [vmem:[%s257 + $0x34] sm:$0xf] %v284
                %v286 = vld [vmem:[%s256 + $0x38] sm:$0xf]
                %287 = vst [vmem:[%s257 + $0x38] sm:$0xf] %v286
                %v288 = vld [vmem:[%s256 + $0x3c] sm:$0xf]
                %289 = vst [vmem:[%s257 + $0x3c] sm:$0xf] %v288
                %v290 = vld [vmem:[%s256 + $0x48] sm:$0xf]
                %291 = vst [vmem:[%s257 + $0x40] sm:$0xf] %v290
                %v292 = vld [vmem:[%s256 + $0x4c] sm:$0xf]
                %293 = vst [vmem:[%s257 + $0x44] sm:$0xf] %v292
                %v294 = vld [vmem:[%s256 + $0x50] sm:$0xf]
                %295 = vst [vmem:[%s257 + $0x48] sm:$0xf] %v294
                %v296 = vld [vmem:[%s256 + $0x54] sm:$0xf]
                %297 = vst [vmem:[%s257 + $0x4c] sm:$0xf] %v296
                %v298 = vld [vmem:[%s256 + $0x58] sm:$0xf]
                %299 = vst [vmem:[%s257 + $0x50] sm:$0xf] %v298
                %v300 = vld [vmem:[%s256 + $0x5c] sm:$0xf]
                %301 = vst [vmem:[%s257 + $0x54] sm:$0xf] %v300
                %v302 = vld [vmem:[%s256 + $0x60] sm:$0xf]
                %303 = vst [vmem:[%s257 + $0x58] sm:$0xf] %v302
                %v304 = vld [vmem:[%s256 + $0x64] sm:$0xf]
                %305 = vst [vmem:[%s257 + $0x5c] sm:$0xf] %v304
                %v306 = vld [vmem:[%s256 + $0x68] sm:$0xf]
                %307 = vst [vmem:[%s257 + $0x60] sm:$0xf] %v306
                %v308 = vld [vmem:[%s256 + $0x6c] sm:$0xf]
                %309 = vst [vmem:[%s257 + $0x64] sm:$0xf] %v308
                %v310 = vld [vmem:[%s256 + $0x70] sm:$0xf]
                %311 = vst [vmem:[%s257 + $0x68] sm:$0xf] %v310
                %v312 = vld [vmem:[%s256 + $0x74] sm:$0xf]
                %313 = vst [vmem:[%s257 + $0x6c] sm:$0xf] %v312
                %v314 = vld [vmem:[%s256 + $0x78] sm:$0xf]
                %315 = vst [vmem:[%s257 + $0x70] sm:$0xf] %v314
                %v316 = vld [vmem:[%s256 + $0x7c] sm:$0xf]
                %317 = vst [vmem:[%s257 + $0x74] sm:$0xf] %v316
                %v318 = vld [vmem:[%s256 + $0x80] sm:$0xf]
                %319 = vst [vmem:[%s257 + $0x78] sm:$0xf] %v318
                %v320 = vld [vmem:[%s256 + $0x84] sm:$0xf]
                %321 = vst [vmem:[%s257 + $0x7c] sm:$0xf] %v320
                %v322 = vld [vmem:[%s256 + $0x90] sm:$0xf]
                %323 = vst [vmem:[%s257 + $0x80] sm:$0xf] %v322
                %v324 = vld [vmem:[%s256 + $0x94] sm:$0xf]
                %325 = vst [vmem:[%s257 + $0x84] sm:$0xf] %v324
                %v326 = vld [vmem:[%s256 + $0x98] sm:$0xf]
                %327 = vst [vmem:[%s257 + $0x88] sm:$0xf] %v326
                %v328 = vld [vmem:[%s256 + $0x9c] sm:$0xf]
                %329 = vst [vmem:[%s257 + $0x8c] sm:$0xf] %v328
                %v330 = vld [vmem:[%s256 + $0xa0] sm:$0xf]
                %331 = vst [vmem:[%s257 + $0x90] sm:$0xf] %v330
                %v332 = vld [vmem:[%s256 + $0xa4] sm:$0xf]
                %333 = vst [vmem:[%s257 + $0x94] sm:$0xf] %v332
                %v334 = vld [vmem:[%s256 + $0xa8] sm:$0xf]
                %335 = vst [vmem:[%s257 + $0x98] sm:$0xf] %v334
                %v336 = vld [vmem:[%s256 + $0xac] sm:$0xf]
                %337 = vst [vmem:[%s257 + $0x9c] sm:$0xf] %v336
                %v338 = vld [vmem:[%s256 + $0xb0] sm:$0xf]
                %339 = vst [vmem:[%s257 + $0xa0] sm:$0xf] %v338
                %v340 = vld [vmem:[%s256 + $0xb4] sm:$0xf]
                %341 = vst [vmem:[%s257 + $0xa4] sm:$0xf] %v340
                %v342 = vld [vmem:[%s256 + $0xb8] sm:$0xf]
                %343 = vst [vmem:[%s257 + $0xa8] sm:$0xf] %v342
                %v344 = vld [vmem:[%s256 + $0xbc] sm:$0xf]
                %345 = vst [vmem:[%s257 + $0xac] sm:$0xf] %v344
                %v346 = vld [vmem:[%s256 + $0xc0] sm:$0xf]
                %347 = vst [vmem:[%s257 + $0xb0] sm:$0xf] %v346
                %v348 = vld [vmem:[%s256 + $0xc4] sm:$0xf]
                %349 = vst [vmem:[%s257 + $0xb4] sm:$0xf] %v348
                %v350 = vld [vmem:[%s256 + $0xc8] sm:$0xf]
                %351 = vst [vmem:[%s257 + $0xb8] sm:$0xf] %v350
                %v352 = vld [vmem:[%s256 + $0xcc] sm:$0xf]
                %353 = vst [vmem:[%s257 + $0xbc] sm:$0xf] %v352
                %v354 = vld [vmem:[%s256 + $0xd8] sm:$0xf]
                %355 = vst [vmem:[%s257 + $0xc0] sm:$0xf] %v354
                %v356 = vld [vmem:[%s256 + $0xdc] sm:$0xf]
                %357 = vst [vmem:[%s257 + $0xc4] sm:$0xf] %v356
                %v358 = vld [vmem:[%s256 + $0xe0] sm:$0xf]
                %359 = vst [vmem:[%s257 + $0xc8] sm:$0xf] %v358
                %v360 = vld [vmem:[%s256 + $0xe4] sm:$0xf]
                %361 = vst [vmem:[%s257 + $0xcc] sm:$0xf] %v360
                %v362 = vld [vmem:[%s256 + $0xe8] sm:$0xf]
                %363 = vst [vmem:[%s257 + $0xd0] sm:$0xf] %v362
                %v364 = vld [vmem:[%s256 + $0xec] sm:$0xf]
                %365 = vst [vmem:[%s257 + $0xd4] sm:$0xf] %v364
                %v366 = vld [vmem:[%s256 + $0xf0] sm:$0xf]
                %367 = vst [vmem:[%s257 + $0xd8] sm:$0xf] %v366
                %v368 = vld [vmem:[%s256 + $0xf4] sm:$0xf]
                %369 = vst [vmem:[%s257 + $0xdc] sm:$0xf] %v368
                %v370 = vld [vmem:[%s256 + $0xf8] sm:$0xf]
                %371 = vst [vmem:[%s257 + $0xe0] sm:$0xf] %v370
                %v372 = vld [vmem:[%s256 + $0xfc] sm:$0xf]
                %373 = vst [vmem:[%s257 + $0xe4] sm:$0xf] %v372
                %v374 = vld [vmem:[%s256 + $0x100] sm:$0xf]
                %375 = vst [vmem:[%s257 + $0xe8] sm:$0xf] %v374
                %v376 = vld [vmem:[%s256 + $0x104] sm:$0xf]
                %377 = vst [vmem:[%s257 + $0xec] sm:$0xf] %v376
                %v378 = vld [vmem:[%s256 + $0x108] sm:$0xf]
                %379 = vst [vmem:[%s257 + $0xf0] sm:$0xf] %v378
                %v380 = vld [vmem:[%s256 + $0x10c] sm:$0xf]
                %381 = vst [vmem:[%s257 + $0xf4] sm:$0xf] %v380
                %v382 = vld [vmem:[%s256 + $0x110] sm:$0xf]
                %383 = vst [vmem:[%s257 + $0xf8] sm:$0xf] %v382
                %v384 = vld [vmem:[%s256 + $0x114] sm:$0xf]
                %385 = vst [vmem:[%s257 + $0xfc] sm:$0xf] %v384
                %s386 = sadd.s32 1, %s255
                %p387 = scmp.ge.s32.totalorder %s386, %s248
                %s388 = scalar_select %p387, 0, %s386
                %s389 = smul.u32 %s388, 64
                %s390 = smul.u32 %s388, 64
                %s391 = scalar_lea.vmem %s238, %s389
                %s392 = scalar_lea.vmem %s225, %s390 [#allocation3]
              $region45: #{tpu_custom_call.1} parent=39 // loop_footer
                %s252 = sadd.s32 %s250, 1
              $region46: #{tpu_custom_call.1} parent=39 // loop_footer_branch
                %249 = sbr.rel target = $region42
              $region47: #{tpu_custom_call.1} parent=39 // loop_exit
                _
              %s393 = sshrl.u32 %s239, 4
              %s394 = sand.u32 %s239, 15
              %s395 = smul.u32 %s393, 16
              %s396 = smul.u32 4, %s395
              %s397 = scalar_lea.vmem %s238, %s396
              %s398 = smul.u32 4, %s395
              %s399 = scalar_lea.vmem %s225, %s398 [#allocation3]
              // While loop
              $region48: #{tpu_custom_call.1} parent=39 // loop_pre_header
                _
              $region49: #{tpu_custom_call.1} parent=39 // loop_header
                %s401 = sphi 0, %s403
                %p402 = scmp.ge.s32.totalorder %s401, %s394
                %s406 = sphi 0, %s419
                %s407 = sphi %s397, %s422
                %s408 = sphi %s399, %s423
              $region50: #{tpu_custom_call.1} parent=39 // loop_header_branch
                %405 = sbr.rel (%p402) target = $region54
              $region51: #{tpu_custom_call.1} parent=39 // loop_body
                %v409 = vld [vmem:[%s407] sm:$0xf]
                %410 = vst [vmem:[%s408] sm:$0xf] %v409
                %v411 = vld [vmem:[%s407 + $0x48] sm:$0xf]
                %412 = vst [vmem:[%s408 + $0x40] sm:$0xf] %v411
                %v413 = vld [vmem:[%s407 + $0x90] sm:$0xf]
                %414 = vst [vmem:[%s408 + $0x80] sm:$0xf] %v413
                %v415 = vld [vmem:[%s407 + $0xd8] sm:$0xf]
                %416 = vst [vmem:[%s408 + $0xc0] sm:$0xf] %v415
                %s417 = sadd.s32 1, %s406
                %p418 = scmp.ge.s32.totalorder %s417, %s394
                %s419 = scalar_select %p418, 0, %s417
                %s420 = smul.u32 %s419, 4
                %s421 = smul.u32 %s419, 4
                %s422 = scalar_lea.vmem %s397, %s420
                %s423 = scalar_lea.vmem %s399, %s421 [#allocation3]
              $region52: #{tpu_custom_call.1} parent=39 // loop_footer
                %s403 = sadd.s32 %s401, 1
              $region53: #{tpu_custom_call.1} parent=39 // loop_footer_branch
                %400 = sbr.rel target = $region49
              $region54: #{tpu_custom_call.1} parent=39 // loop_exit
                _
            $region40: #{tpu_custom_call.1} parent=31 // pred_fallthru
              _
          $region32: #{tpu_custom_call.1} parent=27 // pred_fallthru
            _
          %643 = vnop
        $region28: #{tpu_custom_call.1} parent=23 // pred_fallthru
          _
        // Predicated region
        $region87: #{tpu_custom_call.1} parent=23 // pred_check
          %p644 = pneg %p94
        $region88: #{tpu_custom_call.1} parent=23 // pred_check_branch
          %646 = sbr.rel (%p644) target = $region90
        $region89: #{tpu_custom_call.1} parent=23 // pred_region
          %s647 = sand.u32 %s84, 1
          %s648 = sand.u32 %s84, 1
          %s649 = smul.addr %s648, 32
          %s650 = scalar_lea.vmem [#allocation4], %s649
          %s651 = smul.u32 %s18, 8
          %s652 = sadd.s32 %s651, 8
          %s653 = smul.addr %s652, 2
          %s654 = sadd.s32 %s20, %s653
          %s655 = smul.addr %s17, 72
          %s656 = sadd.s32 %s654, %s655
          %s657 = smul.addr %s656, 4
          %s658 = scalar_lea.vmem %s1, %s657
          // Predicated region
          $region91: #{tpu_custom_call.1} parent=89 // pred_check
            _
          $region92: #{tpu_custom_call.1} parent=89 // pred_check_branch
            %660 = sbr.rel (0) target = $region94
          $region93: #{tpu_custom_call.1} parent=89 // pred_region
            // Predicated region
            $region95: #{tpu_custom_call.1} parent=93 // pred_check
              _
            $region96: #{tpu_custom_call.1} parent=93 // pred_check_branch
              %662 = sbr.rel target = $region98
            $region97: #{tpu_custom_call.1} parent=93 // pred_region
              // Predicated region
              $region110: #{tpu_custom_call.1} parent=97 // pred_check
                _
              $region111: #{tpu_custom_call.1} parent=97 // pred_check_branch
                %691 = sbr.rel (0) target = $region113
              $region112: #{tpu_custom_call.1} parent=97 // pred_region
                loop: start=0, step=1, limit=1
                $region114: #{tpu_custom_call.1} parent=112 // loop_pre_header
                  _
                $region115: #{tpu_custom_call.1} parent=112 // loop_header
                  %s693 = sphi 0, %s697
                  %p694 = scmp.ge.s32.totalorder %s693, 1
                  %s698 = sphi %s658, %s658
                  %s699 = sphi %s650, %s650
                $region116: #{tpu_custom_call.1} parent=112 // loop_header_branch
                  %696 = sbr.rel (%p694) target = $region120
                $region117: #{tpu_custom_call.1} parent=112 // loop_body
                  _
                $region118: #{tpu_custom_call.1} parent=112 // loop_footer
                  %s697 = sadd.s32 1, %s693
                $region119: #{tpu_custom_call.1} parent=112 // loop_footer_branch
                  %692 = sbr.rel target = $region115
                $region120: #{tpu_custom_call.1} parent=112 // loop_exit
                  _
                loop: start=0, step=1, limit=1
                $region121: #{tpu_custom_call.1} parent=112 // loop_pre_header
                  _
                $region122: #{tpu_custom_call.1} parent=112 // loop_header
                  %s702 = sphi 0, %s706
                  %p703 = scmp.ge.s32.totalorder %s702, 1
                  %s707 = sphi %s658, %s658
                  %s708 = sphi %s650, %s650
                $region123: #{tpu_custom_call.1} parent=112 // loop_header_branch
                  %705 = sbr.rel (%p703) target = $region127
                $region124: #{tpu_custom_call.1} parent=112 // loop_body
                  %v709 = vld [vmem:[%s707] sm:$0xf]
                  %710 = vst [vmem:[%s708] sm:$0xf] %v709
                  %v711 = vld [vmem:[%s707 + $0x4] sm:$0xf]
                  %712 = vst [vmem:[%s708 + $0x4] sm:$0xf] %v711
                  %v713 = vld [vmem:[%s707 + $0x48] sm:$0xf]
                  %714 = vst [vmem:[%s708 + $0x8] sm:$0xf] %v713
                  %v715 = vld [vmem:[%s707 + $0x4c] sm:$0xf]
                  %716 = vst [vmem:[%s708 + $0xc] sm:$0xf] %v715
                  %v717 = vld [vmem:[%s707 + $0x90] sm:$0xf]
                  %718 = vst [vmem:[%s708 + $0x10] sm:$0xf] %v717
                  %v719 = vld [vmem:[%s707 + $0x94] sm:$0xf]
                  %720 = vst [vmem:[%s708 + $0x14] sm:$0xf] %v719
                  %v721 = vld [vmem:[%s707 + $0xd8] sm:$0xf]
                  %722 = vst [vmem:[%s708 + $0x18] sm:$0xf] %v721
                  %v723 = vld [vmem:[%s707 + $0xdc] sm:$0xf]
                  %724 = vst [vmem:[%s708 + $0x1c] sm:$0xf] %v723
                $region125: #{tpu_custom_call.1} parent=112 // loop_footer
                  %s706 = sadd.s32 1, %s702
                $region126: #{tpu_custom_call.1} parent=112 // loop_footer_branch
                  %701 = sbr.rel target = $region122
                $region127: #{tpu_custom_call.1} parent=112 // loop_exit
                  _
              $region113: #{tpu_custom_call.1} parent=97 // pred_fallthru
                _
            $region98: #{tpu_custom_call.1} parent=93 // pred_fallthru
              _
            // Predicated region
            $region99: #{tpu_custom_call.1} parent=93 // pred_check
              _
            $region100: #{tpu_custom_call.1} parent=93 // pred_check_branch
              %664 = sbr.rel (0) target = $region102
            $region101: #{tpu_custom_call.1} parent=93 // pred_region
              loop: start=0, step=1, limit=1
              $region103: #{tpu_custom_call.1} parent=101 // loop_pre_header
                _
              $region104: #{tpu_custom_call.1} parent=101 // loop_header
                %s667 = sphi 0, %s671
                %p668 = scmp.ge.s32.totalorder %s667, 1
                %s672 = sphi %s658, %s658
                %s673 = sphi %s650, %s650
              $region105: #{tpu_custom_call.1} parent=101 // loop_header_branch
                %670 = sbr.rel (%p668) target = $region109
              $region106: #{tpu_custom_call.1} parent=101 // loop_body
                %v674 = vld [vmem:[%s672] sm:$0xf]
                %675 = vst [vmem:[%s673] sm:$0xf] %v674
                %v676 = vld [vmem:[%s672 + $0x4] sm:$0xf]
                %677 = vst [vmem:[%s673 + $0x4] sm:$0xf] %v676
                %v678 = vld [vmem:[%s672 + $0x48] sm:$0xf]
                %679 = vst [vmem:[%s673 + $0x8] sm:$0xf] %v678
                %v680 = vld [vmem:[%s672 + $0x4c] sm:$0xf]
                %681 = vst [vmem:[%s673 + $0xc] sm:$0xf] %v680
                %v682 = vld [vmem:[%s672 + $0x90] sm:$0xf]
                %683 = vst [vmem:[%s673 + $0x10] sm:$0xf] %v682
                %v684 = vld [vmem:[%s672 + $0x94] sm:$0xf]
                %685 = vst [vmem:[%s673 + $0x14] sm:$0xf] %v684
                %v686 = vld [vmem:[%s672 + $0xd8] sm:$0xf]
                %687 = vst [vmem:[%s673 + $0x18] sm:$0xf] %v686
                %v688 = vld [vmem:[%s672 + $0xdc] sm:$0xf]
                %689 = vst [vmem:[%s673 + $0x1c] sm:$0xf] %v688
              $region107: #{tpu_custom_call.1} parent=101 // loop_footer
                %s671 = sadd.s32 1, %s667
              $region108: #{tpu_custom_call.1} parent=101 // loop_footer_branch
                %666 = sbr.rel target = $region104
              $region109: #{tpu_custom_call.1} parent=101 // loop_exit
                _
            $region102: #{tpu_custom_call.1} parent=93 // pred_fallthru
              _
          $region94: #{tpu_custom_call.1} parent=89 // pred_fallthru
            _
          %725 = vnop
        $region90: #{tpu_custom_call.1} parent=23 // pred_fallthru
          _
      $region24: #{tpu_custom_call.1} parent=5 // pred_fallthru
        _
      %p726 = scmp.le.s32.totalorder 1, %s10
      %p727 = scmp.lt.s32.totalorder %s10, 3
      %p728 = pnand %p726, %p727
      %p729 = pneg %p728
      // Predicated region
      $region128: #{tpu_custom_call.1} parent=5 // pred_check
        _
      $region129: #{tpu_custom_call.1} parent=5 // pred_check_branch
        %731 = sbr.rel (%p728) target = $region131
      $region130: #{tpu_custom_call.1} parent=5 // pred_region
        %s732 = ssub.s32 %s10, 1
        %s733 = sand.u32 %s53, 1
        %s734 = sand.u32 %s53, 1
        %s735 = smul.addr %s734, 256
        %s736 = scalar_lea.vmem [#allocation3], %s735
        // Predicated region
        $region132: #{tpu_custom_call.1} parent=130 // pred_check
          %p737 = pneg %p66
        $region133: #{tpu_custom_call.1} parent=130 // pred_check_branch
          %739 = sbr.rel (%p737) target = $region135
        $region134: #{tpu_custom_call.1} parent=130 // pred_region
          _
        $region135: #{tpu_custom_call.1} parent=130 // pred_fallthru
          _
        %s740 = sand.u32 %s87, 1
        %s741 = sand.u32 %s87, 1
        %s742 = smul.addr %s741, 32
        %s743 = scalar_lea.vmem [#allocation4], %s742
        // Predicated region
        $region136: #{tpu_custom_call.1} parent=130 // pred_check
          %p744 = pneg %p100
        $region137: #{tpu_custom_call.1} parent=130 // pred_check_branch
          %746 = sbr.rel (%p744) target = $region139
        $region138: #{tpu_custom_call.1} parent=130 // pred_region
          _
        $region139: #{tpu_custom_call.1} parent=130 // pred_fallthru
          _
        %s747 = sand.u32 %s53, 1
        %s748 = sand.u32 %s53, 1
        %s749 = smul.addr %s748, 256
        %s750 = scalar_lea.vmem [#allocation3], %s749
        %p751 = pneg %p66
        %p752 = pneg %p63
        %s753 = sand.u32 %s87, 1
        %s754 = sand.u32 %s87, 1
        %s755 = smul.addr %s754, 32
        %s756 = scalar_lea.vmem [#allocation4], %s755
        %p757 = pneg %p100
        %p758 = pneg %p97
        %p759 = scmp.lt.s32.totalorder %s24, 0
        %s760 = scalar_select %p759, %s24, 0
        %p761 = scmp.lt.s32.totalorder %s23, 0
        %s762 = scalar_select %p761, %s23, 0
        %s763 = sadd.s32 %s762, %s760
        %s764 = smul.addr %s763, 2
        %s765 = scalar_lea.vmem %s2, %s764
        %p766 = pneg %p128
        %p767 = pneg %p125
        %p768 = scmp.lt.s32.totalorder %s23, 0
        %s769 = scalar_select %p768, %s23, 0
        %s770 = scalar_lea.vmem %s3, %s769
        %p771 = pneg %p154
        %p772 = pneg %p151
        %p773 = pneg %p184
        %p774 = pneg %p181
        %s775 = smul.u32 8, %s22
        %p776 = scmp.lt.s32.totalorder %s21, 1
        %s777 = scalar_select %p776, %s21, 1
        %p778 = scmp.lt.s32.totalorder %s775, 7
        %s779 = scalar_select %p778, %s775, 7
        %p780 = scmp.lt.s32.totalorder %s23, 0
        %s781 = scalar_select %p780, %s23, 0
        %s782 = sadd.s32 %s781, %s779
        %s783 = smul.addr %s777, 8
        %s784 = sadd.s32 %s782, %s783
        %s785 = smul.addr %s784, 8
        %s786 = scalar_lea.vmem %s4, %s785
        %s787 = smul.u32 8, %s22
        %s788 = ssub.s32 9, %s787
        %p789 = scmp.lt.s32.totalorder %s788, 8
        %s790 = scalar_select %p789, %s788, 8
        %s791 = smul.u32 256, %s790
        %s792 = smul.u32 %s791, 2
        %s793 = smul.u32 %s22, 8
        %s794 = sadd.s32 %s793, 8
        %p795 = scmp.lt.s32.totalorder %s24, 0
        %s796 = scalar_select %p795, %s24, 0
        %p797 = scmp.lt.s32.totalorder %s23, 0
        %s798 = scalar_select %p797, %s23, 0
        %s799 = sadd.s32 %s798, %s796
        %s800 = smul.addr %s799, 2
        %s801 = scalar_lea.vmem %s2, %s800
        %p802 = scmp.lt.s32.totalorder %s23, 0
        %s803 = scalar_select %p802, %s23, 0
        %s804 = scalar_lea.vmem %s3, %s803
        %s805 = smul.u32 8, %s22
        %p806 = scmp.lt.s32.totalorder %s21, 1
        %s807 = scalar_select %p806, %s21, 1
        %p808 = scmp.lt.s32.totalorder %s805, 7
        %s809 = scalar_select %p808, %s805, 7
        %p810 = scmp.lt.s32.totalorder %s23, 0
        %s811 = scalar_select %p810, %s23, 0
        %s812 = sadd.s32 %s811, %s809
        %s813 = smul.addr %s807, 8
        %s814 = sadd.s32 %s812, %s813
        %s815 = smul.addr %s814, 8
        %s816 = scalar_lea.vmem %s4, %s815
        %s817 = smul.u32 8, %s22
        %p819 = scmp.eq.s32.totalorder %s24, 0
        // Predicated region
        $region140: #{tpu_custom_call.1} parent=130 // pred_check
          %p820 = pneg %p819
        $region141: #{tpu_custom_call.1} parent=130 // pred_check_branch
          %822 = sbr.rel (%p820) target = $region143
        $region142: #{tpu_custom_call.1} parent=130 // pred_region
          %vm823 = vcmask 31744
          %824 = vst.msk [vmem:[#allocation2] sm:$0xff] %vm823, 0.0
          %825 = vst.msk [vmem:[#allocation2 + $0x8] sm:$0xff] %vm823, 0.0
          %826 = vst.msk [vmem:[#allocation2 + $0x10] sm:$0xff] %vm823, 0.0
          %827 = vst.msk [vmem:[#allocation2 + $0x18] sm:$0xff] %vm823, 0.0
          %828 = vst.msk [vmem:[#allocation2 + $0x20] sm:$0xff] %vm823, 0.0
          %829 = vst.msk [vmem:[#allocation2 + $0x28] sm:$0xff] %vm823, 0.0
          %830 = vst.msk [vmem:[#allocation2 + $0x30] sm:$0xff] %vm823, 0.0
          %831 = vst.msk [vmem:[#allocation2 + $0x38] sm:$0xff] %vm823, 0.0
        $region143: #{tpu_custom_call.1} parent=130 // pred_fallthru
          _
        %v832 = vld [vmem:[%s736] sm:$0xf]
        %v833 = vld [vmem:[%s736 + $0x4] sm:$0x1]
        %v834 = vld [vmem:[%s736 + $0x8] sm:$0xf]
        %v835 = vld [vmem:[%s736 + $0xc] sm:$0x1]
        %v836 = vld [vmem:[%s736 + $0x10] sm:$0xf]
        %v837 = vld [vmem:[%s736 + $0x14] sm:$0x1]
        %v838 = vld [vmem:[%s736 + $0x18] sm:$0xf]
        %v839 = vld [vmem:[%s736 + $0x1c] sm:$0x1]
        %v840 = vld [vmem:[%s736 + $0x20] sm:$0xf]
        %v841 = vld [vmem:[%s736 + $0x24] sm:$0x1]
        %v842 = vld [vmem:[%s736 + $0x28] sm:$0xf]
        %v843 = vld [vmem:[%s736 + $0x2c] sm:$0x1]
        %v844 = vld [vmem:[%s736 + $0x30] sm:$0xf]
        %v845 = vld [vmem:[%s736 + $0x34] sm:$0x1]
        %v846 = vld [vmem:[%s736 + $0x38] sm:$0xf]
        %v847 = vld [vmem:[%s736 + $0x3c] sm:$0x1]
        %v848 = vld [vmem:[%s743] sm:$0xf]
        %v849 = vld [vmem:[%s743 + $0x4] sm:$0x1]
        %v850 = vld [vmem:[%s801] sm:$0x3]
        %vm851 = vsmask.f32 3328
        %vm852 = vsmask.f32 7440
        %vm853 = vmor %vm851, %vm852
        %v855 = vshrl.u32 %v832, 16
        %v857 = vrot.slane %v855, 4
        %v858 = vshll.u32 %v832, 16
        %v860 = vrot.slane %v858, 5
        %v861 = vor.u32 %v857, %v860
        %v862 = vrot.slane %v861, 4
        %v864 = vshll.u32 %v833, 16
        %v866 = vrot.slane %v864, 5
        %v867 = vsel %vm853, %v862, %v866
        %v869 = vshrl.u32 %v834, 16
        %v871 = vrot.slane %v869, 4
        %v872 = vshll.u32 %v834, 16
        %v874 = vrot.slane %v872, 5
        %v875 = vor.u32 %v871, %v874
        %v876 = vrot.slane %v875, 4
        %v878 = vshll.u32 %v835, 16
        %v880 = vrot.slane %v878, 5
        %v881 = vsel %vm853, %v876, %v880
        %v883 = vshrl.u32 %v836, 16
        %v885 = vrot.slane %v883, 4
        %v886 = vshll.u32 %v836, 16
        %v888 = vrot.slane %v886, 5
        %v889 = vor.u32 %v885, %v888
        %v890 = vrot.slane %v889, 4
        %v892 = vshll.u32 %v837, 16
        %v894 = vrot.slane %v892, 5
        %v895 = vsel %vm853, %v890, %v894
        %v897 = vshrl.u32 %v838, 16
        %v899 = vrot.slane %v897, 4
        %v900 = vshll.u32 %v838, 16
        %v902 = vrot.slane %v900, 5
        %v903 = vor.u32 %v899, %v902
        %v904 = vrot.slane %v903, 4
        %v906 = vshll.u32 %v839, 16
        %v908 = vrot.slane %v906, 5
        %v909 = vsel %vm853, %v904, %v908
        %v911 = vshrl.u32 %v840, 16
        %v913 = vrot.slane %v911, 4
        %v914 = vshll.u32 %v840, 16
        %v916 = vrot.slane %v914, 5
        %v917 = vor.u32 %v913, %v916
        %v918 = vrot.slane %v917, 4
        %v920 = vshll.u32 %v841, 16
        %v922 = vrot.slane %v920, 5
        %v923 = vsel %vm853, %v918, %v922
        %v925 = vshrl.u32 %v842, 16
        %v927 = vrot.slane %v925, 4
        %v928 = vshll.u32 %v842, 16
        %v930 = vrot.slane %v928, 5
        %v931 = vor.u32 %v927, %v930
        %v932 = vrot.slane %v931, 4
        %v934 = vshll.u32 %v843, 16
        %v936 = vrot.slane %v934, 5
        %v937 = vsel %vm853, %v932, %v936
        %v939 = vshrl.u32 %v844, 16
        %v941 = vrot.slane %v939, 4
        %v942 = vshll.u32 %v844, 16
        %v944 = vrot.slane %v942, 5
        %v945 = vor.u32 %v941, %v944
        %v946 = vrot.slane %v945, 4
        %v948 = vshll.u32 %v845, 16
        %v950 = vrot.slane %v948, 5
        %v951 = vsel %vm853, %v946, %v950
        %v953 = vshrl.u32 %v846, 16
        %v955 = vrot.slane %v953, 4
        %v956 = vshll.u32 %v846, 16
        %v958 = vrot.slane %v956, 5
        %v959 = vor.u32 %v955, %v958
        %v960 = vrot.slane %v959, 4
        %v962 = vshll.u32 %v847, 16
        %v964 = vrot.slane %v962, 5
        %v965 = vsel %vm853, %v960, %v964
        %s966 = scalar_lea.vmem %s801, 4
        %v967 = vld [vmem:[%s966] sm:$0x3]
        %v968 = vunpack.c.l.b16 %v867
        %v969 = vunpack.c.l.b16 %v881
        %v970 = vunpack.c.l.b16 %v895
        %v971 = vunpack.c.l.b16 %v909
        %v972 = vunpack.c.l.b16 %v923
        %v973 = vunpack.c.l.b16 %v937
        %v974 = vunpack.c.l.b16 %v951
        %v975 = vunpack.c.l.b16 %v965
        %v976 = vpack.c.b16 %v969, %v968
        %v977 = vpack.c.b16 %v971, %v970
        %v978 = vpack.c.b16 %v973, %v972
        %v979 = vpack.c.b16 %v975, %v974
        %vm980 = vcmask 31744
        %v982 = vsel %vm980, %v976, 0
        %v985 = vsel %vm980, %v977, 0
        %v988 = vsel %vm980, %v978, 0
        %v991 = vsel %vm980, %v979, 0
        %vm993 = vcmask 1041408
        %v995 = vsel %vm993, %v967, 0
        %997 = vmatprep.subr.bf16.mxu0 0
        %998 = vmatpush1.bf16.msra.mxu0 %v995
        %999 = vmatprep.subr.bf16.mxu0 0
        %1000 = vmatpush1.bf16.msra.mxu0 0
        %1001 = vmatprep.subr.bf16.mxu0 0
        %1002 = vmatpush1.bf16.msra.mxu0 0
        %1003 = vmatprep.subr.bf16.mxu0 0
        %1004 = vmatpush1.bf16.msra.mxu0 0
        %1005 = vmatprep.subr.bf16.mxu0 0
        %1006 = vmatpush1.bf16.msra.mxu0 0
        %1007 = vmatprep.subr.bf16.mxu0 0
        %1008 = vmatpush1.bf16.msra.mxu0 0
        %1009 = vmatprep.subr.bf16.mxu0 0
        %1010 = vmatpush1.bf16.msra.mxu0 0
        %1011 = vmatprep.subr.bf16.mxu0 0
        %1012 = vmatpush1.bf16.msra.mxu0 0
        %1013 = vmatprep.subr.bf16.mxu0 0
        %1014 = vmatpush1.bf16.msra.mxu0 0
        %1015 = vmatprep.subr.bf16.mxu0 0
        %1016 = vmatpush1.bf16.msra.mxu0 0
        %1017 = vmatprep.subr.bf16.mxu0 0
        %1018 = vmatpush1.bf16.msra.mxu0 0
        %1019 = vmatprep.subr.bf16.mxu0 0
        %1020 = vmatpush1.bf16.msra.mxu0 0
        %1021 = vmatprep.subr.bf16.mxu0 0
        %1022 = vmatpush1.bf16.msra.mxu0 0
        %1023 = vmatprep.subr.bf16.mxu0 0
        %1024 = vmatpush1.bf16.msra.mxu0 0
        %1025 = vmatprep.subr.bf16.mxu0 0
        %1026 = vmatpush1.bf16.msra.mxu0 0
        %1027 = vmatprep.subr.bf16.mxu0 0
        %1028 = vmatpush1.bf16.msra.mxu0 0
        %1029 = vmatprep.mubr.bf16.mxu0 0
        %1030 = vmatmul.mubr.bf16.gmra.mrb[0].mxu0 %v982
        %v1031 = vpop.f32.mrb[0].mxu0
        %v1032 = vadd.f32 0.0, %v1031
        %v1033 = vpop.f32.mrb[0].mxu0
        %v1034 = vpop.f32.mrb[0].mxu0
        %v1035 = vadd.f32 0.0, %v1034
        %v1036 = vpop.f32.mrb[0].mxu0
        %1037 = vmatprep.mubr.bf16.mxu0 0
        %1038 = vmatmul.mubr.bf16.gmra.mrb[0].mxu0 %v985
        %v1039 = vpop.f32.mrb[0].mxu0
        %v1040 = vadd.f32 0.0, %v1039
        %v1041 = vpop.f32.mrb[0].mxu0
        %v1042 = vpop.f32.mrb[0].mxu0
        %v1043 = vadd.f32 0.0, %v1042
        %v1044 = vpop.f32.mrb[0].mxu0
        %1045 = vmatprep.mubr.bf16.mxu0 0
        %1046 = vmatmul.mubr.bf16.gmra.mrb[0].mxu0 %v988
        %v1047 = vpop.f32.mrb[0].mxu0
        %v1048 = vadd.f32 0.0, %v1047
        %v1049 = vpop.f32.mrb[0].mxu0
        %v1050 = vpop.f32.mrb[0].mxu0
        %v1051 = vadd.f32 0.0, %v1050
        %v1052 = vpop.f32.mrb[0].mxu0
        %1053 = vmatprep.mubr.bf16.mxu0 0
        %1054 = vmatmul.mubr.bf16.gmra.mrb[0].mxu0 %v991
        %v1055 = vpop.f32.mrb[0].mxu0
        %v1056 = vadd.f32 0.0, %v1055
        %v1057 = vpop.f32.mrb[0].mxu0
        %v1058 = vpop.f32.mrb[0].mxu0
        %v1059 = vadd.f32 0.0, %v1058
        %v1060 = vpop.f32.mrb[0].mxu0
        %1061 = vdwg.mxu0
        %v1070 = vunpack.c.l.b16 %v832
        %v1071 = vunpack.c.l.b16 %v834
        %v1072 = vunpack.c.l.b16 %v836
        %v1073 = vunpack.c.l.b16 %v838
        %v1074 = vunpack.c.l.b16 %v840
        %v1075 = vunpack.c.l.b16 %v842
        %v1076 = vunpack.c.l.b16 %v844
        %v1077 = vunpack.c.l.b16 %v846
        %v1078 = vpack.c.b16 %v1071, %v1070
        %v1079 = vpack.c.b16 %v1073, %v1072
        %v1080 = vpack.c.b16 %v1075, %v1074
        %v1081 = vpack.c.b16 %v1077, %v1076
        %v1083 = vsel %vm980, %v1078, 0
        %v1086 = vsel %vm980, %v1079, 0
        %v1089 = vsel %vm980, %v1080, 0
        %v1092 = vsel %vm980, %v1081, 0
        %v1095 = vsel %vm993, %v850, 0
        %1097 = vmatprep.subr.bf16.mxu0 0
        %1098 = vmatpush1.bf16.msra.mxu0 %v1095
        %1099 = vmatprep.subr.bf16.mxu0 0
        %1100 = vmatpush1.bf16.msra.mxu0 0
        %1101 = vmatprep.subr.bf16.mxu0 0
        %1102 = vmatpush1.bf16.msra.mxu0 0
        %1103 = vmatprep.subr.bf16.mxu0 0
        %1104 = vmatpush1.bf16.msra.mxu0 0
        %1105 = vmatprep.subr.bf16.mxu0 0
        %1106 = vmatpush1.bf16.msra.mxu0 0
        %1107 = vmatprep.subr.bf16.mxu0 0
        %1108 = vmatpush1.bf16.msra.mxu0 0
        %1109 = vmatprep.subr.bf16.mxu0 0
        %1110 = vmatpush1.bf16.msra.mxu0 0
        %1111 = vmatprep.subr.bf16.mxu0 0
        %1112 = vmatpush1.bf16.msra.mxu0 0
        %1113 = vmatprep.subr.bf16.mxu0 0
        %1114 = vmatpush1.bf16.msra.mxu0 0
        %1115 = vmatprep.subr.bf16.mxu0 0
        %1116 = vmatpush1.bf16.msra.mxu0 0
        %1117 = vmatprep.subr.bf16.mxu0 0
        %1118 = vmatpush1.bf16.msra.mxu0 0
        %1119 = vmatprep.subr.bf16.mxu0 0
        %1120 = vmatpush1.bf16.msra.mxu0 0
        %1121 = vmatprep.subr.bf16.mxu0 0
        %1122 = vmatpush1.bf16.msra.mxu0 0
        %1123 = vmatprep.subr.bf16.mxu0 0
        %1124 = vmatpush1.bf16.msra.mxu0 0
        %1125 = vmatprep.subr.bf16.mxu0 0
        %1126 = vmatpush1.bf16.msra.mxu0 0
        %1127 = vmatprep.subr.bf16.mxu0 0
        %1128 = vmatpush1.bf16.msra.mxu0 0
        %1129 = vmatprep.mubr.bf16.mxu0 0
        %1130 = vmatmul.mubr.bf16.gmra.mrb[0].mxu0 %v1083
        %v1131 = vpop.f32.mrb[0].mxu0
        %v1132 = vadd.f32 %v1032, %v1131
        %v1133 = vpop.f32.mrb[0].mxu0
        %v1134 = vpop.f32.mrb[0].mxu0
        %v1135 = vadd.f32 %v1035, %v1134
        %v1136 = vpop.f32.mrb[0].mxu0
        %1137 = vmatprep.mubr.bf16.mxu0 0
        %1138 = vmatmul.mubr.bf16.gmra.mrb[0].mxu0 %v1086
        %v1139 = vpop.f32.mrb[0].mxu0
        %v1140 = vadd.f32 %v1040, %v1139
        %v1141 = vpop.f32.mrb[0].mxu0
        %v1142 = vpop.f32.mrb[0].mxu0
        %v1143 = vadd.f32 %v1043, %v1142
        %v1144 = vpop.f32.mrb[0].mxu0
        %1145 = vmatprep.mubr.bf16.mxu0 0
        %1146 = vmatmul.mubr.bf16.gmra.mrb[0].mxu0 %v1089
        %v1147 = vpop.f32.mrb[0].mxu0
        %v1148 = vadd.f32 %v1048, %v1147
        %v1149 = vpop.f32.mrb[0].mxu0
        %v1150 = vpop.f32.mrb[0].mxu0
        %v1151 = vadd.f32 %v1051, %v1150
        %v1152 = vpop.f32.mrb[0].mxu0
        %1153 = vmatprep.mubr.bf16.mxu0 0
        %1154 = vmatmul.mubr.bf16.gmra.mrb[0].mxu0 %v1092
        %v1155 = vpop.f32.mrb[0].mxu0
        %v1156 = vadd.f32 %v1056, %v1155
        %v1157 = vpop.f32.mrb[0].mxu0
        %v1158 = vpop.f32.mrb[0].mxu0
        %v1159 = vadd.f32 %v1059, %v1158
        %v1160 = vpop.f32.mrb[0].mxu0
        %1161 = vdwg.mxu0
        %s1162 = scalar_lea.vmem %s801, 12
        %v1163 = vld [vmem:[%s1162] sm:$0x3]
        %v1165 = vunpack.c.l.b16 %v848
        %v1166 = vpack.c.b16 %v1072, %v1071
        %v1167 = vpack.c.b16 %v1074, %v1073
        %v1168 = vpack.c.b16 %v1076, %v1075
        %v1169 = vpack.c.b16 %v1165, %v1077
        %v1171 = vsel %vm980, %v1166, 0
        %v1174 = vsel %vm980, %v1167, 0
        %v1177 = vsel %vm980, %v1168, 0
        %v1180 = vsel %vm980, %v1169, 0
        %v1183 = vsel %vm993, %v1163, 0
        %1185 = vmatprep.subr.bf16.mxu0 0
        %1186 = vmatpush1.bf16.msra.mxu0 %v1183
        %1187 = vmatprep.subr.bf16.mxu0 0
        %1188 = vmatpush1.bf16.msra.mxu0 0
        %1189 = vmatprep.subr.bf16.mxu0 0
        %1190 = vmatpush1.bf16.msra.mxu0 0
        %1191 = vmatprep.subr.bf16.mxu0 0
        %1192 = vmatpush1.bf16.msra.mxu0 0
        %1193 = vmatprep.subr.bf16.mxu0 0
        %1194 = vmatpush1.bf16.msra.mxu0 0
        %1195 = vmatprep.subr.bf16.mxu0 0
        %1196 = vmatpush1.bf16.msra.mxu0 0
        %1197 = vmatprep.subr.bf16.mxu0 0
        %1198 = vmatpush1.bf16.msra.mxu0 0
        %1199 = vmatprep.subr.bf16.mxu0 0
        %1200 = vmatpush1.bf16.msra.mxu0 0
        %1201 = vmatprep.subr.bf16.mxu0 0
        %1202 = vmatpush1.bf16.msra.mxu0 0
        %1203 = vmatprep.subr.bf16.mxu0 0
        %1204 = vmatpush1.bf16.msra.mxu0 0
        %1205 = vmatprep.subr.bf16.mxu0 0
        %1206 = vmatpush1.bf16.msra.mxu0 0
        %1207 = vmatprep.subr.bf16.mxu0 0
        %1208 = vmatpush1.bf16.msra.mxu0 0
        %1209 = vmatprep.subr.bf16.mxu0 0
        %1210 = vmatpush1.bf16.msra.mxu0 0
        %1211 = vmatprep.subr.bf16.mxu0 0
        %1212 = vmatpush1.bf16.msra.mxu0 0
        %1213 = vmatprep.subr.bf16.mxu0 0
        %1214 = vmatpush1.bf16.msra.mxu0 0
        %1215 = vmatprep.subr.bf16.mxu0 0
        %1216 = vmatpush1.bf16.msra.mxu0 0
        %1217 = vmatprep.mubr.bf16.mxu0 0
        %1218 = vmatmul.mubr.bf16.gmra.mrb[0].mxu0 %v1171
        %v1219 = vpop.f32.mrb[0].mxu0
        %v1220 = vadd.f32 0.0, %v1219
        %v1221 = vpop.f32.mrb[0].mxu0
        %v1222 = vpop.f32.mrb[0].mxu0
        %v1223 = vadd.f32 0.0, %v1222
        %v1224 = vpop.f32.mrb[0].mxu0
        %1225 = vmatprep.mubr.bf16.mxu0 0
        %1226 = vmatmul.mubr.bf16.gmra.mrb[0].mxu0 %v1174
        %v1227 = vpop.f32.mrb[0].mxu0
        %v1228 = vadd.f32 0.0, %v1227
        %v1229 = vpop.f32.mrb[0].mxu0
        %v1230 = vpop.f32.mrb[0].mxu0
        %v1231 = vadd.f32 0.0, %v1230
        %v1232 = vpop.f32.mrb[0].mxu0
        %1233 = vmatprep.mubr.bf16.mxu0 0
        %1234 = vmatmul.mubr.bf16.gmra.mrb[0].mxu0 %v1177
        %v1235 = vpop.f32.mrb[0].mxu0
        %v1236 = vadd.f32 0.0, %v1235
        %v1237 = vpop.f32.mrb[0].mxu0
        %v1238 = vpop.f32.mrb[0].mxu0
        %v1239 = vadd.f32 0.0, %v1238
        %v1240 = vpop.f32.mrb[0].mxu0
        %1241 = vmatprep.mubr.bf16.mxu0 0
        %1242 = vmatmul.mubr.bf16.gmra.mrb[0].mxu0 %v1180
        %v1243 = vpop.f32.mrb[0].mxu0
        %v1244 = vadd.f32 0.0, %v1243
        %v1245 = vpop.f32.mrb[0].mxu0
        %v1246 = vpop.f32.mrb[0].mxu0
        %v1247 = vadd.f32 0.0, %v1246
        %v1248 = vpop.f32.mrb[0].mxu0
        %1249 = vdwg.mxu0
        %v1250 = vadd.f32 %v1132, %v1220
        %v1251 = vadd.f32 %v1135, %v1223
        %v1252 = vadd.f32 %v1140, %v1228
        %v1253 = vadd.f32 %v1143, %v1231
        %v1254 = vadd.f32 %v1148, %v1236
        %v1255 = vadd.f32 %v1151, %v1239
        %v1256 = vadd.f32 %v1156, %v1244
        %v1257 = vadd.f32 %v1159, %v1247
        %v1259 = vshrl.u32 %v848, 16
        %v1261 = vrot.slane %v1259, 4
        %v1262 = vshll.u32 %v848, 16
        %v1264 = vrot.slane %v1262, 5
        %v1265 = vor.u32 %v1261, %v1264
        %v1266 = vrot.slane %v1265, 4
        %v1268 = vshll.u32 %v849, 16
        %v1270 = vrot.slane %v1268, 5
        %v1271 = vsel %vm853, %v1266, %v1270
        %s1272 = scalar_lea.vmem %s801, 16
        %v1273 = vld [vmem:[%s1272] sm:$0x3]
        %v1274 = vunpack.c.l.b16 %v1271
        %v1275 = vpack.c.b16 %v970, %v969
        %v1276 = vpack.c.b16 %v972, %v971
        %v1277 = vpack.c.b16 %v974, %v973
        %v1278 = vpack.c.b16 %v1274, %v975
        %v1280 = vsel %vm980, %v1275, 0
        %v1283 = vsel %vm980, %v1276, 0
        %v1286 = vsel %vm980, %v1277, 0
        %v1289 = vsel %vm980, %v1278, 0
        %v1292 = vsel %vm993, %v1273, 0
        %1294 = vmatprep.subr.bf16.mxu0 0
        %1295 = vmatpush1.bf16.msra.mxu0 %v1292
        %1296 = vmatprep.subr.bf16.mxu0 0
        %1297 = vmatpush1.bf16.msra.mxu0 0
        %1298 = vmatprep.subr.bf16.mxu0 0
        %1299 = vmatpush1.bf16.msra.mxu0 0
        %1300 = vmatprep.subr.bf16.mxu0 0
        %1301 = vmatpush1.bf16.msra.mxu0 0
        %1302 = vmatprep.subr.bf16.mxu0 0
        %1303 = vmatpush1.bf16.msra.mxu0 0
        %1304 = vmatprep.subr.bf16.mxu0 0
        %1305 = vmatpush1.bf16.msra.mxu0 0
        %1306 = vmatprep.subr.bf16.mxu0 0
        %1307 = vmatpush1.bf16.msra.mxu0 0
        %1308 = vmatprep.subr.bf16.mxu0 0
        %1309 = vmatpush1.bf16.msra.mxu0 0
        %1310 = vmatprep.subr.bf16.mxu0 0
        %1311 = vmatpush1.bf16.msra.mxu0 0
        %1312 = vmatprep.subr.bf16.mxu0 0
        %1313 = vmatpush1.bf16.msra.mxu0 0
        %1314 = vmatprep.subr.bf16.mxu0 0
        %1315 = vmatpush1.bf16.msra.mxu0 0
        %1316 = vmatprep.subr.bf16.mxu0 0
        %1317 = vmatpush1.bf16.msra.mxu0 0
        %1318 = vmatprep.subr.bf16.mxu0 0
        %1319 = vmatpush1.bf16.msra.mxu0 0
        %1320 = vmatprep.subr.bf16.mxu0 0
        %1321 = vmatpush1.bf16.msra.mxu0 0
        %1322 = vmatprep.subr.bf16.mxu0 0
        %1323 = vmatpush1.bf16.msra.mxu0 0
        %1324 = vmatprep.subr.bf16.mxu0 0
        %1325 = vmatpush1.bf16.msra.mxu0 0
        %1326 = vmatprep.mubr.bf16.mxu0 0
        %1327 = vmatmul.mubr.bf16.gmra.mrb[0].mxu0 %v1280
        %v1328 = vpop.f32.mrb[0].mxu0
        %v1329 = vadd.f32 0.0, %v1328
        %v1330 = vpop.f32.mrb[0].mxu0
        %v1331 = vpop.f32.mrb[0].mxu0
        %v1332 = vadd.f32 0.0, %v1331
        %v1333 = vpop.f32.mrb[0].mxu0
        %1334 = vmatprep.mubr.bf16.mxu0 0
        %1335 = vmatmul.mubr.bf16.gmra.mrb[0].mxu0 %v1283
        %v1336 = vpop.f32.mrb[0].mxu0
        %v1337 = vadd.f32 0.0, %v1336
        %v1338 = vpop.f32.mrb[0].mxu0
        %v1339 = vpop.f32.mrb[0].mxu0
        %v1340 = vadd.f32 0.0, %v1339
        %v1341 = vpop.f32.mrb[0].mxu0
        %1342 = vmatprep.mubr.bf16.mxu0 0
        %1343 = vmatmul.mubr.bf16.gmra.mrb[0].mxu0 %v1286
        %v1344 = vpop.f32.mrb[0].mxu0
        %v1345 = vadd.f32 0.0, %v1344
        %v1346 = vpop.f32.mrb[0].mxu0
        %v1347 = vpop.f32.mrb[0].mxu0
        %v1348 = vadd.f32 0.0, %v1347
        %v1349 = vpop.f32.mrb[0].mxu0
        %1350 = vmatprep.mubr.bf16.mxu0 0
        %1351 = vmatmul.mubr.bf16.gmra.mrb[0].mxu0 %v1289
        %v1352 = vpop.f32.mrb[0].mxu0
        %v1353 = vadd.f32 0.0, %v1352
        %v1354 = vpop.f32.mrb[0].mxu0
        %v1355 = vpop.f32.mrb[0].mxu0
        %v1356 = vadd.f32 0.0, %v1355
        %v1357 = vpop.f32.mrb[0].mxu0
        %1358 = vdwg.mxu0
        %v1359 = vadd.f32 %v1250, %v1329
        %v1360 = vadd.f32 %v1251, %v1332
        %v1361 = vadd.f32 %v1252, %v1337
        %v1362 = vadd.f32 %v1253, %v1340
        %v1363 = vadd.f32 %v1254, %v1345
        %v1364 = vadd.f32 %v1255, %v1348
        %v1365 = vadd.f32 %v1256, %v1353
        %v1366 = vadd.f32 %v1257, %v1356
        %s1367 = scalar_lea.vmem %s736, 64 [#allocation3]
        %v1368 = vld [vmem:[%s1367] sm:$0xf]
        %v1369 = vld [vmem:[%s1367 + $0x8] sm:$0xf]
        %v1370 = vld [vmem:[%s1367 + $0x10] sm:$0xf]
        %v1371 = vld [vmem:[%s1367 + $0x18] sm:$0xf]
        %v1372 = vld [vmem:[%s1367 + $0x20] sm:$0xf]
        %v1373 = vld [vmem:[%s1367 + $0x28] sm:$0xf]
        %v1374 = vld [vmem:[%s1367 + $0x30] sm:$0xf]
        %v1375 = vld [vmem:[%s1367 + $0x38] sm:$0xf]
        %s1376 = scalar_lea.vmem %s743, 8 [#allocation4]
        %v1377 = vld [vmem:[%s1376] sm:$0xf]
        %s1378 = scalar_lea.vmem %s801, 2
        %v1379 = vld [vmem:[%s1378] sm:$0x3]
        %v1388 = vunpack.c.l.b16 %v1368
        %v1389 = vunpack.c.l.b16 %v1369
        %v1390 = vunpack.c.l.b16 %v1370
        %v1391 = vunpack.c.l.b16 %v1371
        %v1392 = vunpack.c.l.b16 %v1372
        %v1393 = vunpack.c.l.b16 %v1373
        %v1394 = vunpack.c.l.b16 %v1374
        %v1395 = vunpack.c.l.b16 %v1375
        %v1396 = vpack.c.b16 %v1389, %v1388
        %v1397 = vpack.c.b16 %v1391, %v1390
        %v1398 = vpack.c.b16 %v1393, %v1392
        %v1399 = vpack.c.b16 %v1395, %v1394
        %v1401 = vsel %vm980, %v1396, 0
        %v1404 = vsel %vm980, %v1397, 0
        %v1407 = vsel %vm980, %v1398, 0
        %v1410 = vsel %vm980, %v1399, 0
        %v1413 = vsel %vm993, %v1379, 0
        %1415 = vmatprep.subr.bf16.mxu0 0
        %1416 = vmatpush1.bf16.msra.mxu0 %v1413
        %1417 = vmatprep.subr.bf16.mxu0 0
        %1418 = vmatpush1.bf16.msra.mxu0 0
        %1419 = vmatprep.subr.bf16.mxu0 0
        %1420 = vmatpush1.bf16.msra.mxu0 0
        %1421 = vmatprep.subr.bf16.mxu0 0
        %1422 = vmatpush1.bf16.msra.mxu0 0
        %1423 = vmatprep.subr.bf16.mxu0 0
        %1424 = vmatpush1.bf16.msra.mxu0 0
        %1425 = vmatprep.subr.bf16.mxu0 0
        %1426 = vmatpush1.bf16.msra.mxu0 0
        %1427 = vmatprep.subr.bf16.mxu0 0
        %1428 = vmatpush1.bf16.msra.mxu0 0
        %1429 = vmatprep.subr.bf16.mxu0 0
        %1430 = vmatpush1.bf16.msra.mxu0 0
        %1431 = vmatprep.subr.bf16.mxu0 0
        %1432 = vmatpush1.bf16.msra.mxu0 0
        %1433 = vmatprep.subr.bf16.mxu0 0
        %1434 = vmatpush1.bf16.msra.mxu0 0
        %1435 = vmatprep.subr.bf16.mxu0 0
        %1436 = vmatpush1.bf16.msra.mxu0 0
        %1437 = vmatprep.subr.bf16.mxu0 0
        %1438 = vmatpush1.bf16.msra.mxu0 0
        %1439 = vmatprep.subr.bf16.mxu0 0
        %1440 = vmatpush1.bf16.msra.mxu0 0
        %1441 = vmatprep.subr.bf16.mxu0 0
        %1442 = vmatpush1.bf16.msra.mxu0 0
        %1443 = vmatprep.subr.bf16.mxu0 0
        %1444 = vmatpush1.bf16.msra.mxu0 0
        %1445 = vmatprep.subr.bf16.mxu0 0
        %1446 = vmatpush1.bf16.msra.mxu0 0
        %1447 = vmatprep.mubr.bf16.mxu0 0
        %1448 = vmatmul.mubr.bf16.gmra.mrb[0].mxu0 %v1401
        %v1449 = vpop.f32.mrb[0].mxu0
        %v1450 = vadd.f32 0.0, %v1449
        %v1451 = vpop.f32.mrb[0].mxu0
        %v1452 = vpop.f32.mrb[0].mxu0
        %v1453 = vadd.f32 0.0, %v1452
        %v1454 = vpop.f32.mrb[0].mxu0
        %1455 = vmatprep.mubr.bf16.mxu0 0
        %1456 = vmatmul.mubr.bf16.gmra.mrb[0].mxu0 %v1404
        %v1457 = vpop.f32.mrb[0].mxu0
        %v1458 = vadd.f32 0.0, %v1457
        %v1459 = vpop.f32.mrb[0].mxu0
        %v1460 = vpop.f32.mrb[0].mxu0
        %v1461 = vadd.f32 0.0, %v1460
        %v1462 = vpop.f32.mrb[0].mxu0
        %1463 = vmatprep.mubr.bf16.mxu0 0
        %1464 = vmatmul.mubr.bf16.gmra.mrb[0].mxu0 %v1407
        %v1465 = vpop.f32.mrb[0].mxu0
        %v1466 = vadd.f32 0.0, %v1465
        %v1467 = vpop.f32.mrb[0].mxu0
        %v1468 = vpop.f32.mrb[0].mxu0
        %v1469 = vadd.f32 0.0, %v1468
        %v1470 = vpop.f32.mrb[0].mxu0
        %1471 = vmatprep.mubr.bf16.mxu0 0
        %1472 = vmatmul.mubr.bf16.gmra.mrb[0].mxu0 %v1410
        %v1473 = vpop.f32.mrb[0].mxu0
        %v1474 = vadd.f32 0.0, %v1473
        %v1475 = vpop.f32.mrb[0].mxu0
        %v1476 = vpop.f32.mrb[0].mxu0
        %v1477 = vadd.f32 0.0, %v1476
        %v1478 = vpop.f32.mrb[0].mxu0
        %1479 = vdwg.mxu0
        %v1480 = vadd.f32 %v1359, %v1450
        %v1481 = vadd.f32 %v1360, %v1453
        %v1482 = vadd.f32 %v1361, %v1458
        %v1483 = vadd.f32 %v1362, %v1461
        %v1484 = vadd.f32 %v1363, %v1466
        %v1485 = vadd.f32 %v1364, %v1469
        %v1486 = vadd.f32 %v1365, %v1474
        %v1487 = vadd.f32 %v1366, %v1477
        %s1488 = scalar_lea.vmem %s801, 14
        %v1489 = vld [vmem:[%s1488] sm:$0x3]
        %v1491 = vunpack.c.l.b16 %v1377
        %v1492 = vpack.c.b16 %v1390, %v1389
        %v1493 = vpack.c.b16 %v1392, %v1391
        %v1494 = vpack.c.b16 %v1394, %v1393
        %v1495 = vpack.c.b16 %v1491, %v1395
        %v1497 = vsel %vm980, %v1492, 0
        %v1500 = vsel %vm980, %v1493, 0
        %v1503 = vsel %vm980, %v1494, 0
        %v1506 = vsel %vm980, %v1495, 0
        %v1509 = vsel %vm993, %v1489, 0
        %1511 = vmatprep.subr.bf16.mxu0 0
        %1512 = vmatpush1.bf16.msra.mxu0 %v1509
        %1513 = vmatprep.subr.bf16.mxu0 0
        %1514 = vmatpush1.bf16.msra.mxu0 0
        %1515 = vmatprep.subr.bf16.mxu0 0
        %1516 = vmatpush1.bf16.msra.mxu0 0
        %1517 = vmatprep.subr.bf16.mxu0 0
        %1518 = vmatpush1.bf16.msra.mxu0 0
        %1519 = vmatprep.subr.bf16.mxu0 0
        %1520 = vmatpush1.bf16.msra.mxu0 0
        %1521 = vmatprep.subr.bf16.mxu0 0
        %1522 = vmatpush1.bf16.msra.mxu0 0
        %1523 = vmatprep.subr.bf16.mxu0 0
        %1524 = vmatpush1.bf16.msra.mxu0 0
        %1525 = vmatprep.subr.bf16.mxu0 0
        %1526 = vmatpush1.bf16.msra.mxu0 0
        %1527 = vmatprep.subr.bf16.mxu0 0
        %1528 = vmatpush1.bf16.msra.mxu0 0
        %1529 = vmatprep.subr.bf16.mxu0 0
        %1530 = vmatpush1.bf16.msra.mxu0 0
        %1531 = vmatprep.subr.bf16.mxu0 0
        %1532 = vmatpush1.bf16.msra.mxu0 0
        %1533 = vmatprep.subr.bf16.mxu0 0
        %1534 = vmatpush1.bf16.msra.mxu0 0
        %1535 = vmatprep.subr.bf16.mxu0 0
        %1536 = vmatpush1.bf16.msra.mxu0 0
        %1537 = vmatprep.subr.bf16.mxu0 0
        %1538 = vmatpush1.bf16.msra.mxu0 0
        %1539 = vmatprep.subr.bf16.mxu0 0
        %1540 = vmatpush1.bf16.msra.mxu0 0
        %1541 = vmatprep.subr.bf16.mxu0 0
        %1542 = vmatpush1.bf16.msra.mxu0 0
        %1543 = vmatprep.mubr.bf16.mxu0 0
        %1544 = vmatmul.mubr.bf16.gmra.mrb[0].mxu0 %v1497
        %v1545 = vpop.f32.mrb[0].mxu0
        %v1546 = vadd.f32 0.0, %v1545
        %v1547 = vpop.f32.mrb[0].mxu0
        %v1548 = vpop.f32.mrb[0].mxu0
        %v1549 = vadd.f32 0.0, %v1548
        %v1550 = vpop.f32.mrb[0].mxu0
        %1551 = vmatprep.mubr.bf16.mxu0 0
        %1552 = vmatmul.mubr.bf16.gmra.mrb[0].mxu0 %v1500
        %v1553 = vpop.f32.mrb[0].mxu0
        %v1554 = vadd.f32 0.0, %v1553
        %v1555 = vpop.f32.mrb[0].mxu0
        %v1556 = vpop.f32.mrb[0].mxu0
        %v1557 = vadd.f32 0.0, %v1556
        %v1558 = vpop.f32.mrb[0].mxu0
        %1559 = vmatprep.mubr.bf16.mxu0 0
        %1560 = vmatmul.mubr.bf16.gmra.mrb[0].mxu0 %v1503
        %v1561 = vpop.f32.mrb[0].mxu0
        %v1562 = vadd.f32 0.0, %v1561
        %v1563 = vpop.f32.mrb[0].mxu0
        %v1564 = vpop.f32.mrb[0].mxu0
        %v1565 = vadd.f32 0.0, %v1564
        %v1566 = vpop.f32.mrb[0].mxu0
        %1567 = vmatprep.mubr.bf16.mxu0 0
        %1568 = vmatmul.mubr.bf16.gmra.mrb[0].mxu0 %v1506
        %v1569 = vpop.f32.mrb[0].mxu0
        %v1570 = vadd.f32 0.0, %v1569
        %v1571 = vpop.f32.mrb[0].mxu0
        %v1572 = vpop.f32.mrb[0].mxu0
        %v1573 = vadd.f32 0.0, %v1572
        %v1574 = vpop.f32.mrb[0].mxu0
        %1575 = vdwg.mxu0
        %v1576 = vadd.f32 %v1480, %v1546
        %v1577 = vadd.f32 %v1481, %v1549
        %v1578 = vadd.f32 %v1482, %v1554
        %v1579 = vadd.f32 %v1483, %v1557
        %v1580 = vadd.f32 %v1484, %v1562
        %v1581 = vadd.f32 %v1485, %v1565
        %v1582 = vadd.f32 %v1486, %v1570
        %v1583 = vadd.f32 %v1487, %v1573
        %s1584 = scalar_lea.vmem %s736, 128 [#allocation3]
        %v1585 = vld [vmem:[%s1584] sm:$0xf]
        %v1586 = vld [vmem:[%s1584 + $0x4] sm:$0x1]
        %v1587 = vld [vmem:[%s1584 + $0x8] sm:$0xf]
        %v1588 = vld [vmem:[%s1584 + $0xc] sm:$0x1]
        %v1589 = vld [vmem:[%s1584 + $0x10] sm:$0xf]
        %v1590 = vld [vmem:[%s1584 + $0x14] sm:$0x1]
        %v1591 = vld [vmem:[%s1584 + $0x18] sm:$0xf]
        %v1592 = vld [vmem:[%s1584 + $0x1c] sm:$0x1]
        %v1593 = vld [vmem:[%s1584 + $0x20] sm:$0xf]
        %v1594 = vld [vmem:[%s1584 + $0x24] sm:$0x1]
        %v1595 = vld [vmem:[%s1584 + $0x28] sm:$0xf]
        %v1596 = vld [vmem:[%s1584 + $0x2c] sm:$0x1]
        %v1597 = vld [vmem:[%s1584 + $0x30] sm:$0xf]
        %v1598 = vld [vmem:[%s1584 + $0x34] sm:$0x1]
        %v1599 = vld [vmem:[%s1584 + $0x38] sm:$0xf]
        %v1600 = vld [vmem:[%s1584 + $0x3c] sm:$0x1]
        %s1601 = scalar_lea.vmem %s801, 6
        %v1602 = vld [vmem:[%s1601] sm:$0x3]
        %v1611 = vunpack.c.l.b16 %v1585
        %v1612 = vunpack.c.l.b16 %v1587
        %v1613 = vunpack.c.l.b16 %v1589
        %v1614 = vunpack.c.l.b16 %v1591
        %v1615 = vunpack.c.l.b16 %v1593
        %v1616 = vunpack.c.l.b16 %v1595
        %v1617 = vunpack.c.l.b16 %v1597
        %v1618 = vunpack.c.l.b16 %v1599
        %v1619 = vpack.c.b16 %v1612, %v1611
        %v1620 = vpack.c.b16 %v1614, %v1613
        %v1621 = vpack.c.b16 %v1616, %v1615
        %v1622 = vpack.c.b16 %v1618, %v1617
        %v1624 = vsel %vm980, %v1619, 0
        %v1627 = vsel %vm980, %v1620, 0
        %v1630 = vsel %vm980, %v1621, 0
        %v1633 = vsel %vm980, %v1622, 0
        %v1636 = vsel %vm993, %v1602, 0
        %1638 = vmatprep.subr.bf16.mxu0 0
        %1639 = vmatpush1.bf16.msra.mxu0 %v1636
        %1640 = vmatprep.subr.bf16.mxu0 0
        %1641 = vmatpush1.bf16.msra.mxu0 0
        %1642 = vmatprep.subr.bf16.mxu0 0
        %1643 = vmatpush1.bf16.msra.mxu0 0
        %1644 = vmatprep.subr.bf16.mxu0 0
        %1645 = vmatpush1.bf16.msra.mxu0 0
        %1646 = vmatprep.subr.bf16.mxu0 0
        %1647 = vmatpush1.bf16.msra.mxu0 0
        %1648 = vmatprep.subr.bf16.mxu0 0
        %1649 = vmatpush1.bf16.msra.mxu0 0
        %1650 = vmatprep.subr.bf16.mxu0 0
        %1651 = vmatpush1.bf16.msra.mxu0 0
        %1652 = vmatprep.subr.bf16.mxu0 0
        %1653 = vmatpush1.bf16.msra.mxu0 0
        %1654 = vmatprep.subr.bf16.mxu0 0
        %1655 = vmatpush1.bf16.msra.mxu0 0
        %1656 = vmatprep.subr.bf16.mxu0 0
        %1657 = vmatpush1.bf16.msra.mxu0 0
        %1658 = vmatprep.subr.bf16.mxu0 0
        %1659 = vmatpush1.bf16.msra.mxu0 0
        %1660 = vmatprep.subr.bf16.mxu0 0
        %1661 = vmatpush1.bf16.msra.mxu0 0
        %1662 = vmatprep.subr.bf16.mxu0 0
        %1663 = vmatpush1.bf16.msra.mxu0 0
        %1664 = vmatprep.subr.bf16.mxu0 0
        %1665 = vmatpush1.bf16.msra.mxu0 0
        %1666 = vmatprep.subr.bf16.mxu0 0
        %1667 = vmatpush1.bf16.msra.mxu0 0
        %1668 = vmatprep.subr.bf16.mxu0 0
        %1669 = vmatpush1.bf16.msra.mxu0 0
        %1670 = vmatprep.mubr.bf16.mxu0 0
        %1671 = vmatmul.mubr.bf16.gmra.mrb[0].mxu0 %v1624
        %v1672 = vpop.f32.mrb[0].mxu0
        %v1673 = vadd.f32 0.0, %v1672
        %v1674 = vpop.f32.mrb[0].mxu0
        %v1675 = vpop.f32.mrb[0].mxu0
        %v1676 = vadd.f32 0.0, %v1675
        %v1677 = vpop.f32.mrb[0].mxu0
        %1678 = vmatprep.mubr.bf16.mxu0 0
        %1679 = vmatmul.mubr.bf16.gmra.mrb[0].mxu0 %v1627
        %v1680 = vpop.f32.mrb[0].mxu0
        %v1681 = vadd.f32 0.0, %v1680
        %v1682 = vpop.f32.mrb[0].mxu0
        %v1683 = vpop.f32.mrb[0].mxu0
        %v1684 = vadd.f32 0.0, %v1683
        %v1685 = vpop.f32.mrb[0].mxu0
        %1686 = vmatprep.mubr.bf16.mxu0 0
        %1687 = vmatmul.mubr.bf16.gmra.mrb[0].mxu0 %v1630
        %v1688 = vpop.f32.mrb[0].mxu0
        %v1689 = vadd.f32 0.0, %v1688
        %v1690 = vpop.f32.mrb[0].mxu0
        %v1691 = vpop.f32.mrb[0].mxu0
        %v1692 = vadd.f32 0.0, %v1691
        %v1693 = vpop.f32.mrb[0].mxu0
        %1694 = vmatprep.mubr.bf16.mxu0 0
        %1695 = vmatmul.mubr.bf16.gmra.mrb[0].mxu0 %v1633
        %v1696 = vpop.f32.mrb[0].mxu0
        %v1697 = vadd.f32 0.0, %v1696
        %v1698 = vpop.f32.mrb[0].mxu0
        %v1699 = vpop.f32.mrb[0].mxu0
        %v1700 = vadd.f32 0.0, %v1699
        %v1701 = vpop.f32.mrb[0].mxu0
        %1702 = vdwg.mxu0
        %v1703 = vadd.f32 %v1576, %v1673
        %v1704 = vadd.f32 %v1577, %v1676
        %v1705 = vadd.f32 %v1578, %v1681
        %v1706 = vadd.f32 %v1579, %v1684
        %v1707 = vadd.f32 %v1580, %v1689
        %v1708 = vadd.f32 %v1581, %v1692
        %v1709 = vadd.f32 %v1582, %v1697
        %v1710 = vadd.f32 %v1583, %v1700
        %v1712 = vshrl.u32 %v1585, 16
        %v1714 = vrot.slane %v1712, 4
        %v1715 = vshll.u32 %v1585, 16
        %v1717 = vrot.slane %v1715, 5
        %v1718 = vor.u32 %v1714, %v1717
        %v1719 = vrot.slane %v1718, 4
        %v1721 = vshll.u32 %v1586, 16
        %v1723 = vrot.slane %v1721, 5
        %v1724 = vsel %vm853, %v1719, %v1723
        %v1726 = vshrl.u32 %v1587, 16
        %v1728 = vrot.slane %v1726, 4
        %v1729 = vshll.u32 %v1587, 16
        %v1731 = vrot.slane %v1729, 5
        %v1732 = vor.u32 %v1728, %v1731
        %v1733 = vrot.slane %v1732, 4
        %v1735 = vshll.u32 %v1588, 16
        %v1737 = vrot.slane %v1735, 5
        %v1738 = vsel %vm853, %v1733, %v1737
        %v1740 = vshrl.u32 %v1589, 16
        %v1742 = vrot.slane %v1740, 4
        %v1743 = vshll.u32 %v1589, 16
        %v1745 = vrot.slane %v1743, 5
        %v1746 = vor.u32 %v1742, %v1745
        %v1747 = vrot.slane %v1746, 4
        %v1749 = vshll.u32 %v1590, 16
        %v1751 = vrot.slane %v1749, 5
        %v1752 = vsel %vm853, %v1747, %v1751
        %v1754 = vshrl.u32 %v1591, 16
        %v1756 = vrot.slane %v1754, 4
        %v1757 = vshll.u32 %v1591, 16
        %v1759 = vrot.slane %v1757, 5
        %v1760 = vor.u32 %v1756, %v1759
        %v1761 = vrot.slane %v1760, 4
        %v1763 = vshll.u32 %v1592, 16
        %v1765 = vrot.slane %v1763, 5
        %v1766 = vsel %vm853, %v1761, %v1765
        %v1768 = vshrl.u32 %v1593, 16
        %v1770 = vrot.slane %v1768, 4
        %v1771 = vshll.u32 %v1593, 16
        %v1773 = vrot.slane %v1771, 5
        %v1774 = vor.u32 %v1770, %v1773
        %v1775 = vrot.slane %v1774, 4
        %v1777 = vshll.u32 %v1594, 16
        %v1779 = vrot.slane %v1777, 5
        %v1780 = vsel %vm853, %v1775, %v1779
        %v1782 = vshrl.u32 %v1595, 16
        %v1784 = vrot.slane %v1782, 4
        %v1785 = vshll.u32 %v1595, 16
        %v1787 = vrot.slane %v1785, 5
        %v1788 = vor.u32 %v1784, %v1787
        %v1789 = vrot.slane %v1788, 4
        %v1791 = vshll.u32 %v1596, 16
        %v1793 = vrot.slane %v1791, 5
        %v1794 = vsel %vm853, %v1789, %v1793
        %v1796 = vshrl.u32 %v1597, 16
        %v1798 = vrot.slane %v1796, 4
        %v1799 = vshll.u32 %v1597, 16
        %v1801 = vrot.slane %v1799, 5
        %v1802 = vor.u32 %v1798, %v1801
        %v1803 = vrot.slane %v1802, 4
        %v1805 = vshll.u32 %v1598, 16
        %v1807 = vrot.slane %v1805, 5
        %v1808 = vsel %vm853, %v1803, %v1807
        %v1810 = vshrl.u32 %v1599, 16
        %v1812 = vrot.slane %v1810, 4
        %v1813 = vshll.u32 %v1599, 16
        %v1815 = vrot.slane %v1813, 5
        %v1816 = vor.u32 %v1812, %v1815
        %v1817 = vrot.slane %v1816, 4
        %v1819 = vshll.u32 %v1600, 16
        %v1821 = vrot.slane %v1819, 5
        %v1822 = vsel %vm853, %v1817, %v1821
        %s1823 = scalar_lea.vmem %s801, 10
        %v1824 = vld [vmem:[%s1823] sm:$0x3]
        %v1825 = vunpack.c.l.b16 %v1724
        %v1826 = vunpack.c.l.b16 %v1738
        %v1827 = vunpack.c.l.b16 %v1752
        %v1828 = vunpack.c.l.b16 %v1766
        %v1829 = vunpack.c.l.b16 %v1780
        %v1830 = vunpack.c.l.b16 %v1794
        %v1831 = vunpack.c.l.b16 %v1808
        %v1832 = vunpack.c.l.b16 %v1822
        %v1833 = vpack.c.b16 %v1826, %v1825
        %v1834 = vpack.c.b16 %v1828, %v1827
        %v1835 = vpack.c.b16 %v1830, %v1829
        %v1836 = vpack.c.b16 %v1832, %v1831
        %v1838 = vsel %vm980, %v1833, 0
        %v1841 = vsel %vm980, %v1834, 0
        %v1844 = vsel %vm980, %v1835, 0
        %v1847 = vsel %vm980, %v1836, 0
        %v1850 = vsel %vm993, %v1824, 0
        %1852 = vmatprep.subr.bf16.mxu0 0
        %1853 = vmatpush1.bf16.msra.mxu0 %v1850
        %1854 = vmatprep.subr.bf16.mxu0 0
        %1855 = vmatpush1.bf16.msra.mxu0 0
        %1856 = vmatprep.subr.bf16.mxu0 0
        %1857 = vmatpush1.bf16.msra.mxu0 0
        %1858 = vmatprep.subr.bf16.mxu0 0
        %1859 = vmatpush1.bf16.msra.mxu0 0
        %1860 = vmatprep.subr.bf16.mxu0 0
        %1861 = vmatpush1.bf16.msra.mxu0 0
        %1862 = vmatprep.subr.bf16.mxu0 0
        %1863 = vmatpush1.bf16.msra.mxu0 0
        %1864 = vmatprep.subr.bf16.mxu0 0
        %1865 = vmatpush1.bf16.msra.mxu0 0
        %1866 = vmatprep.subr.bf16.mxu0 0
        %1867 = vmatpush1.bf16.msra.mxu0 0
        %1868 = vmatprep.subr.bf16.mxu0 0
        %1869 = vmatpush1.bf16.msra.mxu0 0
        %1870 = vmatprep.subr.bf16.mxu0 0
        %1871 = vmatpush1.bf16.msra.mxu0 0
        %1872 = vmatprep.subr.bf16.mxu0 0
        %1873 = vmatpush1.bf16.msra.mxu0 0
        %1874 = vmatprep.subr.bf16.mxu0 0
        %1875 = vmatpush1.bf16.msra.mxu0 0
        %1876 = vmatprep.subr.bf16.mxu0 0
        %1877 = vmatpush1.bf16.msra.mxu0 0
        %1878 = vmatprep.subr.bf16.mxu0 0
        %1879 = vmatpush1.bf16.msra.mxu0 0
        %1880 = vmatprep.subr.bf16.mxu0 0
        %1881 = vmatpush1.bf16.msra.mxu0 0
        %1882 = vmatprep.subr.bf16.mxu0 0
        %1883 = vmatpush1.bf16.msra.mxu0 0
        %1884 = vmatprep.mubr.bf16.mxu0 0
        %1885 = vmatmul.mubr.bf16.gmra.mrb[0].mxu0 %v1838
        %v1886 = vpop.f32.mrb[0].mxu0
        %v1887 = vadd.f32 0.0, %v1886
        %v1888 = vpop.f32.mrb[0].mxu0
        %v1889 = vpop.f32.mrb[0].mxu0
        %v1890 = vadd.f32 0.0, %v1889
        %v1891 = vpop.f32.mrb[0].mxu0
        %1892 = vmatprep.mubr.bf16.mxu0 0
        %1893 = vmatmul.mubr.bf16.gmra.mrb[0].mxu0 %v1841
        %v1894 = vpop.f32.mrb[0].mxu0
        %v1895 = vadd.f32 0.0, %v1894
        %v1896 = vpop.f32.mrb[0].mxu0
        %v1897 = vpop.f32.mrb[0].mxu0
        %v1898 = vadd.f32 0.0, %v1897
        %v1899 = vpop.f32.mrb[0].mxu0
        %1900 = vmatprep.mubr.bf16.mxu0 0
        %1901 = vmatmul.mubr.bf16.gmra.mrb[0].mxu0 %v1844
        %v1902 = vpop.f32.mrb[0].mxu0
        %v1903 = vadd.f32 0.0, %v1902
        %v1904 = vpop.f32.mrb[0].mxu0
        %v1905 = vpop.f32.mrb[0].mxu0
        %v1906 = vadd.f32 0.0, %v1905
        %v1907 = vpop.f32.mrb[0].mxu0
        %1908 = vmatprep.mubr.bf16.mxu0 0
        %1909 = vmatmul.mubr.bf16.gmra.mrb[0].mxu0 %v1847
        %v1910 = vpop.f32.mrb[0].mxu0
        %v1911 = vadd.f32 0.0, %v1910
        %v1912 = vpop.f32.mrb[0].mxu0
        %v1913 = vpop.f32.mrb[0].mxu0
        %v1914 = vadd.f32 0.0, %v1913
        %v1915 = vpop.f32.mrb[0].mxu0
        %1916 = vdwg.mxu0
        %v1917 = vadd.f32 %v1703, %v1887
        %v1918 = vadd.f32 %v1704, %v1890
        %v1919 = vadd.f32 %v1705, %v1895
        %v1920 = vadd.f32 %v1706, %v1898
        %v1921 = vadd.f32 %v1707, %v1903
        %v1922 = vadd.f32 %v1708, %v1906
        %v1923 = vadd.f32 %v1709, %v1911
        %v1924 = vadd.f32 %v1710, %v1914
        %s1925 = scalar_lea.vmem %s736, 192 [#allocation3]
        %v1926 = vld [vmem:[%s1925] sm:$0xf]
        %v1927 = vld [vmem:[%s1925 + $0x8] sm:$0xf]
        %v1928 = vld [vmem:[%s1925 + $0x10] sm:$0xf]
        %v1929 = vld [vmem:[%s1925 + $0x18] sm:$0xf]
        %v1930 = vld [vmem:[%s1925 + $0x20] sm:$0xf]
        %v1931 = vld [vmem:[%s1925 + $0x28] sm:$0xf]
        %v1932 = vld [vmem:[%s1925 + $0x30] sm:$0xf]
        %v1933 = vld [vmem:[%s1925 + $0x38] sm:$0xf]
        %s1934 = scalar_lea.vmem %s801, 8
        %v1935 = vld [vmem:[%s1934] sm:$0x3]
        %v1944 = vunpack.c.l.b16 %v1926
        %v1945 = vunpack.c.l.b16 %v1927
        %v1946 = vunpack.c.l.b16 %v1928
        %v1947 = vunpack.c.l.b16 %v1929
        %v1948 = vunpack.c.l.b16 %v1930
        %v1949 = vunpack.c.l.b16 %v1931
        %v1950 = vunpack.c.l.b16 %v1932
        %v1951 = vunpack.c.l.b16 %v1933
        %v1952 = vpack.c.b16 %v1945, %v1944
        %v1953 = vpack.c.b16 %v1947, %v1946
        %v1954 = vpack.c.b16 %v1949, %v1948
        %v1955 = vpack.c.b16 %v1951, %v1950
        %v1957 = vsel %vm980, %v1952, 0
        %v1960 = vsel %vm980, %v1953, 0
        %v1963 = vsel %vm980, %v1954, 0
        %v1966 = vsel %vm980, %v1955, 0
        %v1969 = vsel %vm993, %v1935, 0
        %1971 = vmatprep.subr.bf16.mxu0 0
        %1972 = vmatpush1.bf16.msra.mxu0 %v1969
        %1973 = vmatprep.subr.bf16.mxu0 0
        %1974 = vmatpush1.bf16.msra.mxu0 0
        %1975 = vmatprep.subr.bf16.mxu0 0
        %1976 = vmatpush1.bf16.msra.mxu0 0
        %1977 = vmatprep.subr.bf16.mxu0 0
        %1978 = vmatpush1.bf16.msra.mxu0 0
        %1979 = vmatprep.subr.bf16.mxu0 0
        %1980 = vmatpush1.bf16.msra.mxu0 0
        %1981 = vmatprep.subr.bf16.mxu0 0
        %1982 = vmatpush1.bf16.msra.mxu0 0
        %1983 = vmatprep.subr.bf16.mxu0 0
        %1984 = vmatpush1.bf16.msra.mxu0 0
        %1985 = vmatprep.subr.bf16.mxu0 0
        %1986 = vmatpush1.bf16.msra.mxu0 0
        %1987 = vmatprep.subr.bf16.mxu0 0
        %1988 = vmatpush1.bf16.msra.mxu0 0
        %1989 = vmatprep.subr.bf16.mxu0 0
        %1990 = vmatpush1.bf16.msra.mxu0 0
        %1991 = vmatprep.subr.bf16.mxu0 0
        %1992 = vmatpush1.bf16.msra.mxu0 0
        %1993 = vmatprep.subr.bf16.mxu0 0
        %1994 = vmatpush1.bf16.msra.mxu0 0
        %1995 = vmatprep.subr.bf16.mxu0 0
        %1996 = vmatpush1.bf16.msra.mxu0 0
        %1997 = vmatprep.subr.bf16.mxu0 0
        %1998 = vmatpush1.bf16.msra.mxu0 0
        %1999 = vmatprep.subr.bf16.mxu0 0
        %2000 = vmatpush1.bf16.msra.mxu0 0
        %2001 = vmatprep.subr.bf16.mxu0 0
        %2002 = vmatpush1.bf16.msra.mxu0 0
        %2003 = vmatprep.mubr.bf16.mxu0 0
        %2004 = vmatmul.mubr.bf16.gmra.mrb[0].mxu0 %v1957
        %v2005 = vpop.f32.mrb[0].mxu0
        %v2006 = vadd.f32 0.0, %v2005
        %v2007 = vpop.f32.mrb[0].mxu0
        %v2008 = vpop.f32.mrb[0].mxu0
        %v2009 = vadd.f32 0.0, %v2008
        %v2010 = vpop.f32.mrb[0].mxu0
        %2011 = vmatprep.mubr.bf16.mxu0 0
        %2012 = vmatmul.mubr.bf16.gmra.mrb[0].mxu0 %v1960
        %v2013 = vpop.f32.mrb[0].mxu0
        %v2014 = vadd.f32 0.0, %v2013
        %v2015 = vpop.f32.mrb[0].mxu0
        %v2016 = vpop.f32.mrb[0].mxu0
        %v2017 = vadd.f32 0.0, %v2016
        %v2018 = vpop.f32.mrb[0].mxu0
        %2019 = vmatprep.mubr.bf16.mxu0 0
        %2020 = vmatmul.mubr.bf16.gmra.mrb[0].mxu0 %v1963
        %v2021 = vpop.f32.mrb[0].mxu0
        %v2022 = vadd.f32 0.0, %v2021
        %v2023 = vpop.f32.mrb[0].mxu0
        %v2024 = vpop.f32.mrb[0].mxu0
        %v2025 = vadd.f32 0.0, %v2024
        %v2026 = vpop.f32.mrb[0].mxu0
        %2027 = vmatprep.mubr.bf16.mxu0 0
        %2028 = vmatmul.mubr.bf16.gmra.mrb[0].mxu0 %v1966
        %v2029 = vpop.f32.mrb[0].mxu0
        %v2030 = vadd.f32 0.0, %v2029
        %v2031 = vpop.f32.mrb[0].mxu0
        %v2032 = vpop.f32.mrb[0].mxu0
        %v2033 = vadd.f32 0.0, %v2032
        %v2034 = vpop.f32.mrb[0].mxu0
        %2035 = vdwg.mxu0
        %v2036 = vadd.f32 %v1917, %v2006
        %v2037 = vadd.f32 %v1918, %v2009
        %v2038 = vadd.f32 %v1919, %v2014
        %v2039 = vadd.f32 %v1920, %v2017
        %v2040 = vadd.f32 %v1921, %v2022
        %v2041 = vadd.f32 %v1922, %v2025
        %v2042 = vadd.f32 %v1923, %v2030
        %v2043 = vadd.f32 %v1924, %v2033
        %v2044 = vld [vmem:[#allocation2] sm:$0xff]
        %v2045 = vld [vmem:[#allocation2 + $0x8] sm:$0xff]
        %v2046 = vld [vmem:[#allocation2 + $0x10] sm:$0xff]
        %v2047 = vld [vmem:[#allocation2 + $0x18] sm:$0xff]
        %v2048 = vld [vmem:[#allocation2 + $0x20] sm:$0xff]
        %v2049 = vld [vmem:[#allocation2 + $0x28] sm:$0xff]
        %v2050 = vld [vmem:[#allocation2 + $0x30] sm:$0xff]
        %v2051 = vld [vmem:[#allocation2 + $0x38] sm:$0xff]
        %v2052 = vadd.f32 %v2044, %v2036
        %v2053 = vadd.f32 %v2045, %v2037
        %v2054 = vadd.f32 %v2046, %v2038
        %v2055 = vadd.f32 %v2047, %v2039
        %v2056 = vadd.f32 %v2048, %v2040
        %v2057 = vadd.f32 %v2049, %v2041
        %v2058 = vadd.f32 %v2050, %v2042
        %v2059 = vadd.f32 %v2051, %v2043
        %2060 = vst.msk [vmem:[#allocation2] sm:$0xff] %vm980, %v2052
        %2061 = vst.msk [vmem:[#allocation2 + $0x8] sm:$0xff] %vm980, %v2053
        %2062 = vst.msk [vmem:[#allocation2 + $0x10] sm:$0xff] %vm980, %v2054
        %2063 = vst.msk [vmem:[#allocation2 + $0x18] sm:$0xff] %vm980, %v2055
        %2064 = vst.msk [vmem:[#allocation2 + $0x20] sm:$0xff] %vm980, %v2056
        %2065 = vst.msk [vmem:[#allocation2 + $0x28] sm:$0xff] %vm980, %v2057
        %2066 = vst.msk [vmem:[#allocation2 + $0x30] sm:$0xff] %vm980, %v2058
        %2067 = vst.msk [vmem:[#allocation2 + $0x38] sm:$0xff] %vm980, %v2059
        // Predicated region
        $region144: #{tpu_custom_call.1} parent=130 // pred_check
          %p2068 = pneg %p819
        $region145: #{tpu_custom_call.1} parent=130 // pred_check_branch
          %2070 = sbr.rel (%p2068) target = $region147
        $region146: #{tpu_custom_call.1} parent=130 // pred_region
          %v2071 = vld [vmem:[#allocation2] sm:$0xff]
          %v2072 = vld [vmem:[#allocation2 + $0x8] sm:$0xff]
          %v2073 = vld [vmem:[#allocation2 + $0x10] sm:$0xff]
          %v2074 = vld [vmem:[#allocation2 + $0x18] sm:$0xff]
          %v2075 = vld [vmem:[#allocation2 + $0x20] sm:$0xff]
          %v2076 = vld [vmem:[#allocation2 + $0x28] sm:$0xff]
          %v2077 = vld [vmem:[#allocation2 + $0x30] sm:$0xff]
          %v2078 = vld [vmem:[#allocation2 + $0x38] sm:$0xff]
          %v2079 = vld [vmem:[%s804] sm:$0x1]
          %v2081 = vlaneseq
          %v2082 = vshrl.u32 %v2081, 7
          %v2083 = vsub.s32 0, %v2082
          %v2084 = vrot.slane %v2079, %v2083
          %v2086 = vadd.f32 %v2071, %v2084
          %v2087 = vadd.f32 %v2072, %v2084
          %v2088 = vadd.f32 %v2073, %v2084
          %v2089 = vadd.f32 %v2074, %v2084
          %v2090 = vadd.f32 %v2075, %v2084
          %v2091 = vadd.f32 %v2076, %v2084
          %v2092 = vadd.f32 %v2077, %v2084
          %v2093 = vadd.f32 %v2078, %v2084
          %2094 = vst.msk [vmem:[%s816] sm:$0xff] %vm980, %v2086
          %2095 = vst.msk [vmem:[%s816 + $0x8] sm:$0xff] %vm980, %v2087
          %2096 = vst.msk [vmem:[%s816 + $0x10] sm:$0xff] %vm980, %v2088
          %2097 = vst.msk [vmem:[%s816 + $0x18] sm:$0xff] %vm980, %v2089
          %2098 = vst.msk [vmem:[%s816 + $0x20] sm:$0xff] %vm980, %v2090
          %2099 = vst.msk [vmem:[%s816 + $0x28] sm:$0xff] %vm980, %v2091
          %2100 = vst.msk [vmem:[%s816 + $0x30] sm:$0xff] %vm980, %v2092
          %2101 = vst.msk [vmem:[%s816 + $0x38] sm:$0xff] %vm980, %v2093
        $region147: #{tpu_custom_call.1} parent=130 // pred_fallthru
          _
        %s2102 = smul.u32 8, %s22
        %p2103 = scmp.lt.s32.totalorder %s21, 1
        %s2104 = scalar_select %p2103, %s21, 1
        %p2105 = scmp.lt.s32.totalorder %s2102, 7
        %s2106 = scalar_select %p2105, %s2102, 7
        %p2107 = scmp.lt.s32.totalorder %s23, 0
        %s2108 = scalar_select %p2107, %s23, 0
        %s2109 = sadd.s32 %s2108, %s2106
        %s2110 = smul.addr %s2104, 8
        %s2111 = sadd.s32 %s2109, %s2110
        %s2112 = smul.addr %s2111, 8
        %s2113 = scalar_lea.vmem %s4, %s2112
        // Predicated region
        $region148: #{tpu_custom_call.1} parent=130 // pred_check
          %p2114 = pneg %p181
        $region149: #{tpu_custom_call.1} parent=130 // pred_check_branch
          %2116 = sbr.rel (%p2114) target = $region151
        $region150: #{tpu_custom_call.1} parent=130 // pred_region
          %s2117 = smul.u32 8, %s22
        $region151: #{tpu_custom_call.1} parent=130 // pred_fallthru
          _
      $region131: #{tpu_custom_call.1} parent=5 // pred_fallthru
        _
      %p2118 = scmp.le.s32.totalorder 2, %s10
      // Predicated region
      $region152: #{tpu_custom_call.1} parent=5 // pred_check
        %p2119 = pneg %p2118
      $region153: #{tpu_custom_call.1} parent=5 // pred_check_branch
        %2121 = sbr.rel (%p2119) target = $region155
      $region154: #{tpu_custom_call.1} parent=5 // pred_region
        %s2122 = ssub.s32 %s10, 2
        // Predicated region
        $region156: #{tpu_custom_call.1} parent=154 // pred_check
          %p2123 = pneg %p187
        $region157: #{tpu_custom_call.1} parent=154 // pred_check_branch
          %2125 = sbr.rel (%p2123) target = $region159
        $region158: #{tpu_custom_call.1} parent=154 // pred_region
          %s2126 = smul.u32 8, %s26
          %p2127 = scmp.lt.s32.totalorder %s25, 1
          %s2128 = scalar_select %p2127, %s25, 1
          %p2129 = scmp.lt.s32.totalorder %s2126, 7
          %s2130 = scalar_select %p2129, %s2126, 7
          %p2131 = scmp.lt.s32.totalorder %s27, 0
          %s2132 = scalar_select %p2131, %s27, 0
          %s2133 = sadd.s32 %s2132, %s2130
          %s2134 = smul.addr %s2128, 8
          %s2135 = sadd.s32 %s2133, %s2134
          %s2136 = smul.addr %s2135, 8
          %s2137 = scalar_lea.vmem %s4, %s2136
        $region159: #{tpu_custom_call.1} parent=154 // pred_fallthru
          _
      $region155: #{tpu_custom_call.1} parent=5 // pred_fallthru
        _
    $region6: #{tpu_custom_call.1} parent=1 // loop_footer
      %s14 = sadd.s32 1, %s10
    $region7: #{tpu_custom_call.1} parent=1 // loop_footer_branch
      %9 = sbr.rel target = $region3
    $region8: #{tpu_custom_call.1} parent=1 // loop_exit
      _

</llo_original>
